<compile_context>
chip_gen: v6e
topology: v6e:2x2x1
jax: 0.10.0
libtpu: 0.0.40
codegen_flags: <defaults>
</compile_context>

<pallas_src>
import jax
import jax.numpy as jnp
from jax.experimental import pallas as pl
from jax.experimental.pallas import tpu as pltpu

# ----------------------------------------------------------------------------
# Static problem sizes (small demo shapes consistent with the module).
# ----------------------------------------------------------------------------
B = 2
CIN = 12
H_IN = W_IN = 16
C1, C2 = 32, 64
S1, S2 = 8, 4                        # conv1 / conv2 output spatial sizes
FEATURE_DIM, ACTION_DIM, HIDDEN_DIM = 512, 3, 256
ACTION_PAD = 8                       # pad tiny action K to a sublane-friendly width

# conv2 scratch layout: a single (rows, 128) lane-packed buffer; lanes = (parity class, C1),
# rows = FRONT leading zero rows + a zero-padded (S2+1)x(S2+1) block grid, batch-minor.
PG = S2 + 1                          # 5
FRONT = 16                           # >= (PG+1)*B, multiple of 8
DATA_ROWS = PG * PG * B              # 50
SS_ROWS = FRONT + DATA_ROWS          # 66

# Block shifts (dh, dw) a conv2 tap can need; each shift reads a full 128-lane scratch slice.
_SHIFTS = ((-1, -1), (-1, 0), (0, -1), (0, 0))
_SHIFT_OFFS = tuple((dh * PG + dw) * B for dh, dw in _SHIFTS)   # (-12, -10, -2, 0)


# ----------------------------------------------------------------------------
# The fused kernel: conv1 + conv2 + feature FC + reward head, all in VMEM.
# ----------------------------------------------------------------------------
def _fused_kernel(cols_ref, act_ref, w1_ref, b1_ref, w2_ref, b2_ref, bfc_ref,
                  wh1a_ref, bh1_ref, bh2_ref, wh3_ref, bh3_ref,
                  wf_hbm_ref, wh1f_hbm_ref, wh2_hbm_ref,
                  out_ref,
                  ss_ref, wf_ref, wh1f_ref, wh2_ref, dma_sem):
    f32, bf16 = jnp.float32, jnp.bfloat16

    # ---- start the big late-layer weight fetches; they overlap conv1/conv2 compute -------
    cp_wf = pltpu.make_async_copy(wf_hbm_ref, wf_ref, dma_sem.at[0])
    cp_h1f = pltpu.make_async_copy(wh1f_hbm_ref, wh1f_ref, dma_sem.at[1])
    cp_h2 = pltpu.make_async_copy(wh2_hbm_ref, wh2_ref, dma_sem.at[2])
    cp_wf.start()
    cp_h1f.start()
    cp_h2.start()

    # ---- conv1: ONE matmul; block-diagonal weight emits all 4 parity classes along lanes --
    y1 = jnp.dot(cols_ref[...], w1_ref[...], preferred_element_type=f32)
    y1 = jnp.maximum(y1 + b1_ref[...], 0.0).astype(bf16)            # (32, 128)

    # ---- zero ONLY the pad rows of the scratch, then 4 lane-dense (8,128) scatter stores --
    lo = FRONT + (PG + 1) * B                                       # 28: FRONT + U=0 row + (U=1,V=0)
    ss_ref[0:lo, :] = jnp.zeros((lo, 4 * C1), bf16)
    for uu in range(2, PG):                                         # V=0 pad column, U=2..4
        r0 = FRONT + uu * PG * B
        ss_ref[r0:r0 + B, :] = jnp.zeros((B, 4 * C1), bf16)
    for u in range(S2):
        dst = FRONT + ((u + 1) * PG + 1) * B                        # 28 + 10*u
        ss_ref[dst:dst + S2 * B, :] = y1[u * S2 * B:(u + 1) * S2 * B, :]

    # ---- conv2: ONE (50,512)x(512,64) matmul over 4 shifted, lane-dense scratch slices ----
    x2 = jnp.concatenate(
        [ss_ref[FRONT + off:FRONT + off + DATA_ROWS, :] for off in _SHIFT_OFFS], axis=1)
    y2 = jnp.dot(x2, w2_ref[...], preferred_element_type=f32)
    y2 = jnp.maximum(y2 + b2_ref[...], 0.0)                         # (50, 64) f32

    # ---- feature FC: pack the 16 valid (B,64) blocks along lanes -> ONE (B,1024)x(1024,512)
    pieces = []
    for u in range(S2):
        for v in range(S2):
            r = ((u + 1) * PG + (v + 1)) * B
            pieces.append(y2[r:r + B, :])
    xf = jnp.concatenate(pieces, axis=1).astype(bf16)               # (B, 1024)
    cp_wf.wait()
    feats = jnp.dot(xf, wf_ref[...], preferred_element_type=f32)
    feats = jnp.maximum(feats + bfc_ref[...], 0.0).astype(bf16)     # (B, 512)

    # ---- reward head: concat([features, action]) replaced by split matmuls ----------------
    cp_h1f.wait()
    h = jnp.dot(feats, wh1f_ref[...], preferred_element_type=f32)
    h = h + jnp.dot(act_ref[...], wh1a_ref[...], preferred_element_type=f32)
    h = jnp.maximum(h + bh1_ref[...], 0.0).astype(bf16)             # (B, 256)
    cp_h2.wait()
    h = jnp.dot(h, wh2_ref[...], preferred_element_type=f32)
    h = jnp.maximum(h + bh2_ref[...], 0.0).astype(bf16)             # (B, 256)
    out = jnp.dot(h, wh3_ref[...], preferred_element_type=f32) + bh3_ref[...]
    out_ref[...] = out                                              # (B, 128) lane-dense


# ----------------------------------------------------------------------------
# Wrapper glue (tiny, XLA-side): conv1 im2col on the raw input, grouped so that one
# block-diagonal matmul produces the lane-packed (class-major) conv1 output.
# Row order: (u, v, b); column order: (class q=(pi,pj), kh, kw, cin) -- matches w1big.
# ----------------------------------------------------------------------------
def _build_cols(state_nchw):
    x = jnp.transpose(state_nchw, (0, 2, 3, 1)).astype(jnp.float32)   # (B, 16, 16, CIN)
    xp = jnp.pad(x, ((0, 0), (1, 1), (1, 1), (0, 0)))                 # (B, 18, 18, CIN)
    classes = []
    for pi in range(2):
        for pj in range(2):
            taps = []
            for kh in range(3):
                for kw in range(3):
                    r0 = 2 * pi + kh
                    c0 = 2 * pj + kw
                    taps.append(xp[:, r0:r0 + 4 * (S2 - 1) + 1:4,
                                   c0:c0 + 4 * (S2 - 1) + 1:4, :])     # (B, 4, 4, CIN)
            cls = jnp.stack(taps, axis=3)                              # (B, 4, 4, 9, CIN)
            classes.append(cls.reshape(B, S2, S2, 9 * CIN))
    cols = jnp.stack(classes, axis=3)                                  # (B, 4, 4, 4, 108)
    cols = jnp.transpose(cols, (1, 2, 0, 3, 4))                        # (u, v, b, q, 108)
    return cols.reshape(S2 * S2 * B, 4 * 9 * CIN).astype(jnp.bfloat16)  # (32, 432)


@jax.jit
def reward_network_forward(kp, state, action):
    cols = _build_cols(state)
    act = jnp.pad(action.astype(jnp.bfloat16),
                  ((0, 0), (0, ACTION_PAD - ACTION_DIM)))              # (B, 8)
    vmem = lambda: pl.BlockSpec(memory_space=pltpu.MemorySpace.VMEM)
    hbm = lambda: pl.BlockSpec(memory_space=pl.ANY)
    out = pl.pallas_call(
        _fused_kernel,
        out_shape=jax.ShapeDtypeStruct((B, 128), jnp.float32),
        in_specs=[vmem() for _ in range(12)] + [hbm() for _ in range(3)],
        out_specs=vmem(),
        scratch_shapes=[
            pltpu.VMEM((SS_ROWS, 4 * C1), jnp.bfloat16),                      # conv2 scratch
            pltpu.VMEM((C2 * S2 * S2, FEATURE_DIM), jnp.bfloat16),            # wf landing buf
            pltpu.VMEM((FEATURE_DIM, HIDDEN_DIM), jnp.bfloat16),              # wh1f landing buf
            pltpu.VMEM((HIDDEN_DIM, HIDDEN_DIM), jnp.bfloat16),               # wh2 landing buf
            pltpu.SemaphoreType.DMA((3,)),
        ],
        cost_estimate=pl.CostEstimate(flops=10_000_000, transcendentals=0,
                                      bytes_accessed=1_700_000),
    )(cols, act,
      kp["w1"], kp["b1"], kp["w2"], kp["b2"], kp["bfc"],
      kp["wh1a"], kp["bh1"], kp["bh2"], kp["wh3"], kp["bh3"],
      kp["wf"], kp["wh1f"], kp["wh2"])
    return out[:, :1]                                                  # (B, 1) reward


# ----------------------------------------------------------------------------
# Parameters: canonical (torch-like) layouts + one-time kernel relayout / bf16 cast.
# ----------------------------------------------------------------------------
def init_params(key):
    ks = jax.random.split(key, 12)
    flat = C2 * S2 * S2

    def w(k, shape, fan_in):
        return jax.random.normal(k, shape, jnp.float32) / jnp.sqrt(fan_in)

    def bias(k, shape):
        return 0.05 * jax.random.normal(k, shape, jnp.float32)

    return {
        "conv1_w": w(ks[0], (C1, CIN, 3, 3), CIN * 9), "conv1_b": bias(ks[1], (C1,)),
        "conv2_w": w(ks[2], (C2, C1, 3, 3), C1 * 9), "conv2_b": bias(ks[3], (C2,)),
        "fc_w": w(ks[4], (flat, FEATURE_DIM), flat), "fc_b": bias(ks[5], (FEATURE_DIM,)),
        "h1_w": w(ks[6], (FEATURE_DIM + ACTION_DIM, HIDDEN_DIM), FEATURE_DIM + ACTION_DIM),
        "h1_b": bias(ks[7], (HIDDEN_DIM,)),
        "h2_w": w(ks[8], (HIDDEN_DIM, HIDDEN_DIM), HIDDEN_DIM), "h2_b": bias(ks[9], (HIDDEN_DIM,)),
        "h3_w": w(ks[10], (HIDDEN_DIM, 1), HIDDEN_DIM), "h3_b": bias(ks[11], (1,)),
    }


def preprocess_params(p):
    """One-time (outside the hot path) weight relayout + bf16 cast for the fused kernel."""
    bf = jnp.bfloat16
    f32 = jnp.float32

    # conv1: block-diagonal so ONE matmul emits all 4 parity classes along lanes.
    w1r = jnp.transpose(p["conv1_w"], (2, 3, 1, 0)).reshape(9 * CIN, C1)       # (108, 32)
    w1big = jnp.zeros((4 * 9 * CIN, 4 * C1), f32)
    for q in range(4):
        w1big = w1big.at[q * 9 * CIN:(q + 1) * 9 * CIN, q * C1:(q + 1) * C1].set(w1r)
    b1big = jnp.tile(p["conv1_b"], 4).reshape(1, 4 * C1)

    # conv2: (shift, class, cin)-ordered K=512 weight; unused (shift,class) blocks are zero.
    w2r = jnp.transpose(p["conv2_w"], (2, 3, 1, 0))                             # (3,3,32,64)
    w2big = jnp.zeros((4 * 4 * C1, C2), f32)
    k_of = {(-1, 1): 0, (0, 0): 1, (0, 1): 2}                                   # (shift, parity) -> tap
    for s, (dh, dw) in enumerate(_SHIFTS):
        for pi in range(2):
            for pj in range(2):
                kh = k_of.get((dh, pi))
                kw = k_of.get((dw, pj))
                if kh is None or kw is None:
                    continue
                r0 = s * 4 * C1 + (pi * 2 + pj) * C1
                w2big = w2big.at[r0:r0 + C1, :].set(w2r[kh, kw])

    # feature FC: fold the NCHW flatten; rows ordered (spatial position, channel).
    wf = p["fc_w"].reshape(C2, S2 * S2, FEATURE_DIM).transpose(1, 0, 2) \
        .reshape(C2 * S2 * S2, FEATURE_DIM)

    # split h1 so torch.cat([features, action]) is never materialized; pad action K to 8.
    wh1a = jnp.zeros((ACTION_PAD, HIDDEN_DIM), f32).at[:ACTION_DIM].set(p["h1_w"][FEATURE_DIM:])

    # lane-pad the final Linear(hidden, 1) to 128 columns (lane-dense store).
    wh3 = jnp.zeros((HIDDEN_DIM, 128), f32).at[:, 0].set(p["h3_w"][:, 0])
    bh3 = jnp.zeros((1, 128), f32).at[0, 0].set(p["h3_b"][0])

    return {
        "w1": w1big.astype(bf), "b1": b1big.astype(f32),
        "w2": w2big.astype(bf), "b2": p["conv2_b"].reshape(1, C2).astype(f32),
        "wf": wf.astype(bf), "bfc": p["fc_b"].reshape(1, FEATURE_DIM).astype(f32),
        "wh1f": p["h1_w"][:FEATURE_DIM].astype(bf),
        "wh1a": wh1a.astype(bf),
        "bh1": p["h1_b"].reshape(1, HIDDEN_DIM).astype(f32),
        "wh2": p["h2_w"].astype(bf),
        "bh2": p["h2_b"].reshape(1, HIDDEN_DIM).astype(f32),
        "wh3": wh3.astype(bf), "bh3": bh3,
    }


# ----------------------------------------------------------------------------
# Pure-JAX reference (mirrors the PyTorch module; same bf16-operand / f32-accum policy).
# ----------------------------------------------------------------------------
def reference_forward(p, state, action):
    bf = jnp.bfloat16

    def conv(x, wgt, b):
        y = jax.lax.conv_general_dilated(
            x.astype(bf), wgt.astype(bf), window_strides=(2, 2),
            padding=((1, 1), (1, 1)), dimension_numbers=("NCHW", "OIHW", "NCHW"),
            preferred_element_type=jnp.float32)
        return jnp.maximum(y + b[None, :, None, None], 0.0)

    def lin(x, wgt, b, relu):
        y = jnp.dot(x.astype(bf), wgt.astype(bf), preferred_element_type=jnp.float32) + b
        return jnp.maximum(y, 0.0) if relu else y

    x = conv(state.astype(jnp.float32), p["conv1_w"], p["conv1_b"])
    x = conv(x, p["conv2_w"], p["conv2_b"])
    flat = x.reshape(x.shape[0], -1)                                   # NCHW flatten (torch order)
    feats = lin(flat, p["fc_w"], p["fc_b"], True)
    comb = jnp.concatenate([feats, action.astype(jnp.float32)], axis=1)
    h = lin(comb, p["h1_w"], p["h1_b"], True)
    h = lin(h, p["h2_w"], p["h2_b"], True)
    return lin(h, p["h3_w"], p["h3_b"], False)


if __name__ == "__main__":
    key = jax.random.PRNGKey(0)
    k_params, k_state, k_action = jax.random.split(key, 3)

    params = init_params(k_params)
    kparams = preprocess_params(params)

    state = jax.random.normal(k_state, (B, CIN, H_IN, W_IN), jnp.float32)
    action = jax.random.normal(k_action, (B, ACTION_DIM), jnp.float32)

    reward = reward_network_forward(kparams, state, action)
    jax.block_until_ready(reward)

    assert reward.shape == (B, 1), reward.shape
    assert reward.dtype == jnp.float32

    ref = reference_forward(params, state, action)
    err = float(jnp.max(jnp.abs(reward - ref)))
    assert err < 1e-2, f"mismatch vs reference: {err}"
    print("KERNEL_OK")
</pallas_src>

<mosaic_0001>
module attributes {stable_mosaic.version = 11 : i64} {
  func.func @_fused_kernel(%arg0: memref<32x432xbf16, #tpu.memory_space<vmem>>, %arg1: memref<2x8xbf16, #tpu.memory_space<vmem>>, %arg2: memref<432x128xbf16, #tpu.memory_space<vmem>>, %arg3: memref<1x128xf32, #tpu.memory_space<vmem>>, %arg4: memref<512x64xbf16, #tpu.memory_space<vmem>>, %arg5: memref<1x64xf32, #tpu.memory_space<vmem>>, %arg6: memref<1x512xf32, #tpu.memory_space<vmem>>, %arg7: memref<8x256xbf16, #tpu.memory_space<vmem>>, %arg8: memref<1x256xf32, #tpu.memory_space<vmem>>, %arg9: memref<1x256xf32, #tpu.memory_space<vmem>>, %arg10: memref<256x128xbf16, #tpu.memory_space<vmem>>, %arg11: memref<1x128xf32, #tpu.memory_space<vmem>>, %arg12: memref<1024x512xbf16, #tpu.memory_space<any>>, %arg13: memref<512x256xbf16, #tpu.memory_space<any>>, %arg14: memref<256x256xbf16, #tpu.memory_space<any>>, %arg15: memref<2x128xf32, #tpu.memory_space<vmem>>, %arg16: memref<66x128xbf16, #tpu.memory_space<vmem>>, %arg17: memref<1024x512xbf16, #tpu.memory_space<vmem>>, %arg18: memref<512x256xbf16, #tpu.memory_space<vmem>>, %arg19: memref<256x256xbf16, #tpu.memory_space<vmem>>, %arg20: memref<3x!tpu.dma_semaphore, #tpu.memory_space<semaphore_mem>>) attributes {dimension_semantics = [], scalar_prefetch = 0 : i64, scratch_operands = 5 : i64, tpu.core_type = #tpu.core_type<tc>} {
    %c0_i32 = arith.constant 0 : i32
    %0 = tpu.memref_slice %arg20[%c0_i32] : memref<3x!tpu.dma_semaphore, #tpu.memory_space<semaphore_mem>> -> memref<1x!tpu.dma_semaphore, #tpu.memory_space<semaphore_mem>>
    %1 = tpu.memref_squeeze %0 : memref<1x!tpu.dma_semaphore, #tpu.memory_space<semaphore_mem>> -> memref<!tpu.dma_semaphore, #tpu.memory_space<semaphore_mem>>
    tpu.enqueue_dma source(%arg12 : memref<1024x512xbf16, #tpu.memory_space<any>>) target(%arg17 : memref<1024x512xbf16, #tpu.memory_space<vmem>>) target_semaphore(%1 : memref<!tpu.dma_semaphore, #tpu.memory_space<semaphore_mem>>)
    %c1_i32 = arith.constant 1 : i32
    %2 = tpu.memref_slice %arg20[%c1_i32] : memref<3x!tpu.dma_semaphore, #tpu.memory_space<semaphore_mem>> -> memref<1x!tpu.dma_semaphore, #tpu.memory_space<semaphore_mem>>
    %3 = tpu.memref_squeeze %2 : memref<1x!tpu.dma_semaphore, #tpu.memory_space<semaphore_mem>> -> memref<!tpu.dma_semaphore, #tpu.memory_space<semaphore_mem>>
    tpu.enqueue_dma source(%arg13 : memref<512x256xbf16, #tpu.memory_space<any>>) target(%arg18 : memref<512x256xbf16, #tpu.memory_space<vmem>>) target_semaphore(%3 : memref<!tpu.dma_semaphore, #tpu.memory_space<semaphore_mem>>)
    %c2_i32 = arith.constant 2 : i32
    %4 = tpu.memref_slice %arg20[%c2_i32] : memref<3x!tpu.dma_semaphore, #tpu.memory_space<semaphore_mem>> -> memref<1x!tpu.dma_semaphore, #tpu.memory_space<semaphore_mem>>
    %5 = tpu.memref_squeeze %4 : memref<1x!tpu.dma_semaphore, #tpu.memory_space<semaphore_mem>> -> memref<!tpu.dma_semaphore, #tpu.memory_space<semaphore_mem>>
    tpu.enqueue_dma source(%arg14 : memref<256x256xbf16, #tpu.memory_space<any>>) target(%arg19 : memref<256x256xbf16, #tpu.memory_space<vmem>>) target_semaphore(%5 : memref<!tpu.dma_semaphore, #tpu.memory_space<semaphore_mem>>)
    %c0 = arith.constant 0 : index
    %c0_0 = arith.constant 0 : index
    %6 = vector.load %arg0[%c0, %c0_0] : memref<32x432xbf16, #tpu.memory_space<vmem>>, vector<32x432xbf16>
    %c0_1 = arith.constant 0 : index
    %c0_2 = arith.constant 0 : index
    %7 = vector.load %arg2[%c0_1, %c0_2] : memref<432x128xbf16, #tpu.memory_space<vmem>>, vector<432x128xbf16>
    %cst = arith.constant dense<0.000000e+00> : vector<32x128xf32>
    %8 = tpu.matmul %6, %7, %cst {dimension_numbers = #tpu.dot_dimension_numbers<[1], [0], [0], [1], [0, 0, 1, 1], [], []>} : vector<32x432xbf16>, vector<432x128xbf16>, vector<32x128xf32> -> vector<32x128xf32>
    %c0_3 = arith.constant 0 : index
    %c0_4 = arith.constant 0 : index
    %9 = vector.load %arg3[%c0_3, %c0_4] : memref<1x128xf32, #tpu.memory_space<vmem>>, vector<1x128xf32>
    %10 = vector.broadcast %9 : vector<1x128xf32> to vector<32x128xf32>
    %11 = arith.addf %8, %10 : vector<32x128xf32>
    %cst_5 = arith.constant 0.000000e+00 : f32
    %12 = vector.broadcast %cst_5 : f32 to vector<32x128xf32>
    %13 = arith.maximumf %11, %12 : vector<32x128xf32>
    %14 = arith.truncf %13 : vector<32x128xf32> to vector<32x128xbf16>
    %cst_6 = arith.constant 0.000000e+00 : bf16
    %15 = vector.broadcast %cst_6 : bf16 to vector<28x128xbf16>
    %c0_7 = arith.constant 0 : index
    %c0_8 = arith.constant 0 : index
    %16 = vector.load %arg16[%c0_7, %c0_8] : memref<66x128xbf16, #tpu.memory_space<vmem>>, vector<28x128xbf16>
    tpu.vector_store %arg16[%c0_7, %c0_8], %15 {strides = array<i32>} : memref<66x128xbf16, #tpu.memory_space<vmem>>, vector<28x128xbf16>,
    %cst_9 = arith.constant 0.000000e+00 : bf16
    %17 = vector.broadcast %cst_9 : bf16 to vector<2x128xbf16>
    %c36 = arith.constant 36 : index
    %c0_10 = arith.constant 0 : index
    %18 = vector.load %arg16[%c36, %c0_10] : memref<66x128xbf16, #tpu.memory_space<vmem>>, vector<2x128xbf16>
    tpu.vector_store %arg16[%c36, %c0_10], %17 {strides = array<i32>} : memref<66x128xbf16, #tpu.memory_space<vmem>>, vector<2x128xbf16>,
    %cst_11 = arith.constant 0.000000e+00 : bf16
    %19 = vector.broadcast %cst_11 : bf16 to vector<2x128xbf16>
    %c46 = arith.constant 46 : index
    %c0_12 = arith.constant 0 : index
    %20 = vector.load %arg16[%c46, %c0_12] : memref<66x128xbf16, #tpu.memory_space<vmem>>, vector<2x128xbf16>
    tpu.vector_store %arg16[%c46, %c0_12], %19 {strides = array<i32>} : memref<66x128xbf16, #tpu.memory_space<vmem>>, vector<2x128xbf16>,
    %cst_13 = arith.constant 0.000000e+00 : bf16
    %21 = vector.broadcast %cst_13 : bf16 to vector<2x128xbf16>
    %c56 = arith.constant 56 : index
    %c0_14 = arith.constant 0 : index
    %22 = vector.load %arg16[%c56, %c0_14] : memref<66x128xbf16, #tpu.memory_space<vmem>>, vector<2x128xbf16>
    tpu.vector_store %arg16[%c56, %c0_14], %21 {strides = array<i32>} : memref<66x128xbf16, #tpu.memory_space<vmem>>, vector<2x128xbf16>,
    %23 = vector.extract_strided_slice %14 {offsets = [0, 0], sizes = [8, 128], strides = [1, 1]} : vector<32x128xbf16> to vector<8x128xbf16>
    %c28 = arith.constant 28 : index
    %c0_15 = arith.constant 0 : index
    %24 = vector.load %arg16[%c28, %c0_15] : memref<66x128xbf16, #tpu.memory_space<vmem>>, vector<8x128xbf16>
    tpu.vector_store %arg16[%c28, %c0_15], %23 {strides = array<i32>} : memref<66x128xbf16, #tpu.memory_space<vmem>>, vector<8x128xbf16>,
    %25 = vector.extract_strided_slice %14 {offsets = [8, 0], sizes = [8, 128], strides = [1, 1]} : vector<32x128xbf16> to vector<8x128xbf16>
    %c38 = arith.constant 38 : index
    %c0_16 = arith.constant 0 : index
    %26 = vector.load %arg16[%c38, %c0_16] : memref<66x128xbf16, #tpu.memory_space<vmem>>, vector<8x128xbf16>
    tpu.vector_store %arg16[%c38, %c0_16], %25 {strides = array<i32>} : memref<66x128xbf16, #tpu.memory_space<vmem>>, vector<8x128xbf16>,
    %27 = vector.extract_strided_slice %14 {offsets = [16, 0], sizes = [8, 128], strides = [1, 1]} : vector<32x128xbf16> to vector<8x128xbf16>
    %c48 = arith.constant 48 : index
    %c0_17 = arith.constant 0 : index
    %28 = vector.load %arg16[%c48, %c0_17] : memref<66x128xbf16, #tpu.memory_space<vmem>>, vector<8x128xbf16>
    tpu.vector_store %arg16[%c48, %c0_17], %27 {strides = array<i32>} : memref<66x128xbf16, #tpu.memory_space<vmem>>, vector<8x128xbf16>,
    %29 = vector.extract_strided_slice %14 {offsets = [24, 0], sizes = [8, 128], strides = [1, 1]} : vector<32x128xbf16> to vector<8x128xbf16>
    %c58 = arith.constant 58 : index
    %c0_18 = arith.constant 0 : index
    %30 = vector.load %arg16[%c58, %c0_18] : memref<66x128xbf16, #tpu.memory_space<vmem>>, vector<8x128xbf16>
    tpu.vector_store %arg16[%c58, %c0_18], %29 {strides = array<i32>} : memref<66x128xbf16, #tpu.memory_space<vmem>>, vector<8x128xbf16>,
    %c4 = arith.constant 4 : index
    %c0_19 = arith.constant 0 : index
    %31 = vector.load %arg16[%c4, %c0_19] : memref<66x128xbf16, #tpu.memory_space<vmem>>, vector<50x128xbf16>
    %c6 = arith.constant 6 : index
    %c0_20 = arith.constant 0 : index
    %32 = vector.load %arg16[%c6, %c0_20] : memref<66x128xbf16, #tpu.memory_space<vmem>>, vector<50x128xbf16>
    %c14 = arith.constant 14 : index
    %c0_21 = arith.constant 0 : index
    %33 = vector.load %arg16[%c14, %c0_21] : memref<66x128xbf16, #tpu.memory_space<vmem>>, vector<50x128xbf16>
    %c16 = arith.constant 16 : index
    %c0_22 = arith.constant 0 : index
    %34 = vector.load %arg16[%c16, %c0_22] : memref<66x128xbf16, #tpu.memory_space<vmem>>, vector<50x128xbf16>
    %35 = tpu.concatenate %31, %32, %33, %34 in 1 : vector<50x128xbf16>, vector<50x128xbf16>, vector<50x128xbf16>, vector<50x128xbf16> -> vector<50x512xbf16>
    %c0_23 = arith.constant 0 : index
    %c0_24 = arith.constant 0 : index
    %36 = vector.load %arg4[%c0_23, %c0_24] : memref<512x64xbf16, #tpu.memory_space<vmem>>, vector<512x64xbf16>
    %cst_25 = arith.constant dense<0.000000e+00> : vector<50x64xf32>
    %37 = tpu.matmul %35, %36, %cst_25 {dimension_numbers = #tpu.dot_dimension_numbers<[1], [0], [0], [1], [0, 0, 1, 1], [], []>} : vector<50x512xbf16>, vector<512x64xbf16>, vector<50x64xf32> -> vector<50x64xf32>
    %c0_26 = arith.constant 0 : index
    %c0_27 = arith.constant 0 : index
    %38 = vector.load %arg5[%c0_26, %c0_27] : memref<1x64xf32, #tpu.memory_space<vmem>>, vector<1x64xf32>
    %39 = vector.broadcast %38 : vector<1x64xf32> to vector<50x64xf32>
    %40 = arith.addf %37, %39 : vector<50x64xf32>
    %cst_28 = arith.constant 0.000000e+00 : f32
    %41 = vector.broadcast %cst_28 : f32 to vector<50x64xf32>
    %42 = arith.maximumf %40, %41 : vector<50x64xf32>
    %43 = vector.extract_strided_slice %42 {offsets = [12, 0], sizes = [2, 64], strides = [1, 1]} : vector<50x64xf32> to vector<2x64xf32>
    %44 = vector.extract_strided_slice %42 {offsets = [14, 0], sizes = [2, 64], strides = [1, 1]} : vector<50x64xf32> to vector<2x64xf32>
    %45 = vector.extract_strided_slice %42 {offsets = [16, 0], sizes = [2, 64], strides = [1, 1]} : vector<50x64xf32> to vector<2x64xf32>
    %46 = vector.extract_strided_slice %42 {offsets = [18, 0], sizes = [2, 64], strides = [1, 1]} : vector<50x64xf32> to vector<2x64xf32>
    %47 = vector.extract_strided_slice %42 {offsets = [22, 0], sizes = [2, 64], strides = [1, 1]} : vector<50x64xf32> to vector<2x64xf32>
    %48 = vector.extract_strided_slice %42 {offsets = [24, 0], sizes = [2, 64], strides = [1, 1]} : vector<50x64xf32> to vector<2x64xf32>
    %49 = vector.extract_strided_slice %42 {offsets = [26, 0], sizes = [2, 64], strides = [1, 1]} : vector<50x64xf32> to vector<2x64xf32>
    %50 = vector.extract_strided_slice %42 {offsets = [28, 0], sizes = [2, 64], strides = [1, 1]} : vector<50x64xf32> to vector<2x64xf32>
    %51 = vector.extract_strided_slice %42 {offsets = [32, 0], sizes = [2, 64], strides = [1, 1]} : vector<50x64xf32> to vector<2x64xf32>
    %52 = vector.extract_strided_slice %42 {offsets = [34, 0], sizes = [2, 64], strides = [1, 1]} : vector<50x64xf32> to vector<2x64xf32>
    %53 = vector.extract_strided_slice %42 {offsets = [36, 0], sizes = [2, 64], strides = [1, 1]} : vector<50x64xf32> to vector<2x64xf32>
    %54 = vector.extract_strided_slice %42 {offsets = [38, 0], sizes = [2, 64], strides = [1, 1]} : vector<50x64xf32> to vector<2x64xf32>
    %55 = vector.extract_strided_slice %42 {offsets = [42, 0], sizes = [2, 64], strides = [1, 1]} : vector<50x64xf32> to vector<2x64xf32>
    %56 = vector.extract_strided_slice %42 {offsets = [44, 0], sizes = [2, 64], strides = [1, 1]} : vector<50x64xf32> to vector<2x64xf32>
    %57 = vector.extract_strided_slice %42 {offsets = [46, 0], sizes = [2, 64], strides = [1, 1]} : vector<50x64xf32> to vector<2x64xf32>
    %58 = vector.extract_strided_slice %42 {offsets = [48, 0], sizes = [2, 64], strides = [1, 1]} : vector<50x64xf32> to vector<2x64xf32>
    %59 = tpu.concatenate %43, %44, %45, %46, %47, %48, %49, %50, %51, %52, %53, %54, %55, %56, %57, %58 in 1 : vector<2x64xf32>, vector<2x64xf32>, vector<2x64xf32>, vector<2x64xf32>, vector<2x64xf32>, vector<2x64xf32>, vector<2x64xf32>, vector<2x64xf32>, vector<2x64xf32>, vector<2x64xf32>, vector<2x64xf32>, vector<2x64xf32>, vector<2x64xf32>, vector<2x64xf32>, vector<2x64xf32>, vector<2x64xf32> -> vector<2x1024xf32>
    %60 = arith.truncf %59 : vector<2x1024xf32> to vector<2x1024xbf16>
    %c0_i32_29 = arith.constant 0 : i32
    %61 = tpu.memref_slice %arg20[%c0_i32_29] : memref<3x!tpu.dma_semaphore, #tpu.memory_space<semaphore_mem>> -> memref<1x!tpu.dma_semaphore, #tpu.memory_space<semaphore_mem>>
    %62 = tpu.memref_squeeze %61 : memref<1x!tpu.dma_semaphore, #tpu.memory_space<semaphore_mem>> -> memref<!tpu.dma_semaphore, #tpu.memory_space<semaphore_mem>>
    tpu.wait_dma2 semaphore(%62 : memref<!tpu.dma_semaphore, #tpu.memory_space<semaphore_mem>>) src(%arg12 : memref<1024x512xbf16, #tpu.memory_space<any>>) dst(%arg17 : memref<1024x512xbf16, #tpu.memory_space<vmem>>)
    %c0_30 = arith.constant 0 : index
    %c0_31 = arith.constant 0 : index
    %63 = vector.load %arg17[%c0_30, %c0_31] : memref<1024x512xbf16, #tpu.memory_space<vmem>>, vector<1024x512xbf16>
    %cst_32 = arith.constant dense<0.000000e+00> : vector<2x512xf32>
    %64 = tpu.matmul %60, %63, %cst_32 {dimension_numbers = #tpu.dot_dimension_numbers<[1], [0], [0], [1], [0, 0, 1, 1], [], []>} : vector<2x1024xbf16>, vector<1024x512xbf16>, vector<2x512xf32> -> vector<2x512xf32>
    %c0_33 = arith.constant 0 : index
    %c0_34 = arith.constant 0 : index
    %65 = vector.load %arg6[%c0_33, %c0_34] : memref<1x512xf32, #tpu.memory_space<vmem>>, vector<1x512xf32>
    %66 = vector.broadcast %65 : vector<1x512xf32> to vector<2x512xf32>
    %67 = arith.addf %64, %66 : vector<2x512xf32>
    %cst_35 = arith.constant 0.000000e+00 : f32
    %68 = vector.broadcast %cst_35 : f32 to vector<2x512xf32>
    %69 = arith.maximumf %67, %68 : vector<2x512xf32>
    %70 = arith.truncf %69 : vector<2x512xf32> to vector<2x512xbf16>
    %c1_i32_36 = arith.constant 1 : i32
    %71 = tpu.memref_slice %arg20[%c1_i32_36] : memref<3x!tpu.dma_semaphore, #tpu.memory_space<semaphore_mem>> -> memref<1x!tpu.dma_semaphore, #tpu.memory_space<semaphore_mem>>
    %72 = tpu.memref_squeeze %71 : memref<1x!tpu.dma_semaphore, #tpu.memory_space<semaphore_mem>> -> memref<!tpu.dma_semaphore, #tpu.memory_space<semaphore_mem>>
    tpu.wait_dma2 semaphore(%72 : memref<!tpu.dma_semaphore, #tpu.memory_space<semaphore_mem>>) src(%arg13 : memref<512x256xbf16, #tpu.memory_space<any>>) dst(%arg18 : memref<512x256xbf16, #tpu.memory_space<vmem>>)
    %c0_37 = arith.constant 0 : index
    %c0_38 = arith.constant 0 : index
    %73 = vector.load %arg18[%c0_37, %c0_38] : memref<512x256xbf16, #tpu.memory_space<vmem>>, vector<512x256xbf16>
    %cst_39 = arith.constant dense<0.000000e+00> : vector<2x256xf32>
    %74 = tpu.matmul %70, %73, %cst_39 {dimension_numbers = #tpu.dot_dimension_numbers<[1], [0], [0], [1], [0, 0, 1, 1], [], []>} : vector<2x512xbf16>, vector<512x256xbf16>, vector<2x256xf32> -> vector<2x256xf32>
    %c0_40 = arith.constant 0 : index
    %c0_41 = arith.constant 0 : index
    %75 = vector.load %arg1[%c0_40, %c0_41] : memref<2x8xbf16, #tpu.memory_space<vmem>>, vector<2x8xbf16>
    %c0_42 = arith.constant 0 : index
    %c0_43 = arith.constant 0 : index
    %76 = vector.load %arg7[%c0_42, %c0_43] : memref<8x256xbf16, #tpu.memory_space<vmem>>, vector<8x256xbf16>
    %cst_44 = arith.constant dense<0.000000e+00> : vector<2x256xf32>
    %77 = tpu.matmul %75, %76, %cst_44 {dimension_numbers = #tpu.dot_dimension_numbers<[1], [0], [0], [1], [0, 0, 1, 1], [], []>} : vector<2x8xbf16>, vector<8x256xbf16>, vector<2x256xf32> -> vector<2x256xf32>
    %78 = arith.addf %74, %77 : vector<2x256xf32>
    %c0_45 = arith.constant 0 : index
    %c0_46 = arith.constant 0 : index
    %79 = vector.load %arg8[%c0_45, %c0_46] : memref<1x256xf32, #tpu.memory_space<vmem>>, vector<1x256xf32>
    %80 = vector.broadcast %79 : vector<1x256xf32> to vector<2x256xf32>
    %81 = arith.addf %78, %80 : vector<2x256xf32>
    %cst_47 = arith.constant 0.000000e+00 : f32
    %82 = vector.broadcast %cst_47 : f32 to vector<2x256xf32>
    %83 = arith.maximumf %81, %82 : vector<2x256xf32>
    %84 = arith.truncf %83 : vector<2x256xf32> to vector<2x256xbf16>
    %c2_i32_48 = arith.constant 2 : i32
    %85 = tpu.memref_slice %arg20[%c2_i32_48] : memref<3x!tpu.dma_semaphore, #tpu.memory_space<semaphore_mem>> -> memref<1x!tpu.dma_semaphore, #tpu.memory_space<semaphore_mem>>
    %86 = tpu.memref_squeeze %85 : memref<1x!tpu.dma_semaphore, #tpu.memory_space<semaphore_mem>> -> memref<!tpu.dma_semaphore, #tpu.memory_space<semaphore_mem>>
    tpu.wait_dma2 semaphore(%86 : memref<!tpu.dma_semaphore, #tpu.memory_space<semaphore_mem>>) src(%arg14 : memref<256x256xbf16, #tpu.memory_space<any>>) dst(%arg19 : memref<256x256xbf16, #tpu.memory_space<vmem>>)
    %c0_49 = arith.constant 0 : index
    %c0_50 = arith.constant 0 : index
    %87 = vector.load %arg19[%c0_49, %c0_50] : memref<256x256xbf16, #tpu.memory_space<vmem>>, vector<256x256xbf16>
    %cst_51 = arith.constant dense<0.000000e+00> : vector<2x256xf32>
    %88 = tpu.matmul %84, %87, %cst_51 {dimension_numbers = #tpu.dot_dimension_numbers<[1], [0], [0], [1], [0, 0, 1, 1], [], []>} : vector<2x256xbf16>, vector<256x256xbf16>, vector<2x256xf32> -> vector<2x256xf32>
    %c0_52 = arith.constant 0 : index
    %c0_53 = arith.constant 0 : index
    %89 = vector.load %arg9[%c0_52, %c0_53] : memref<1x256xf32, #tpu.memory_space<vmem>>, vector<1x256xf32>
    %90 = vector.broadcast %89 : vector<1x256xf32> to vector<2x256xf32>
    %91 = arith.addf %88, %90 : vector<2x256xf32>
    %cst_54 = arith.constant 0.000000e+00 : f32
    %92 = vector.broadcast %cst_54 : f32 to vector<2x256xf32>
    %93 = arith.maximumf %91, %92 : vector<2x256xf32>
    %94 = arith.truncf %93 : vector<2x256xf32> to vector<2x256xbf16>
    %c0_55 = arith.constant 0 : index
    %c0_56 = arith.constant 0 : index
    %95 = vector.load %arg10[%c0_55, %c0_56] : memref<256x128xbf16, #tpu.memory_space<vmem>>, vector<256x128xbf16>
    %cst_57 = arith.constant dense<0.000000e+00> : vector<2x128xf32>
    %96 = tpu.matmul %94, %95, %cst_57 {dimension_numbers = #tpu.dot_dimension_numbers<[1], [0], [0], [1], [0, 0, 1, 1], [], []>} : vector<2x256xbf16>, vector<256x128xbf16>, vector<2x128xf32> -> vector<2x128xf32>
    %c0_58 = arith.constant 0 : index
    %c0_59 = arith.constant 0 : index
    %97 = vector.load %arg11[%c0_58, %c0_59] : memref<1x128xf32, #tpu.memory_space<vmem>>, vector<1x128xf32>
    %98 = vector.broadcast %97 : vector<1x128xf32> to vector<2x128xf32>
    %99 = arith.addf %96, %98 : vector<2x128xf32>
    %c0_60 = arith.constant 0 : index
    %c0_61 = arith.constant 0 : index
    %100 = vector.load %arg15[%c0_60, %c0_61] : memref<2x128xf32, #tpu.memory_space<vmem>>, vector<2x128xf32>
    tpu.vector_store %arg15[%c0_60, %c0_61], %99 {strides = array<i32>} : memref<2x128xf32, #tpu.memory_space<vmem>>, vector<2x128xf32>,
    return
  }
}

</mosaic_0001>

<llo_original>
// kernel: reward_network_forward.1
$region0: #{reward_network_forward.1}
  #allocation0 [shape = 'u32[]', space=smem, size = 0x4, offset = 0x4, fixed_abs, tag = 'smem constant byte address 0x4 - core index']
  #allocation1 [shape = 'u32[144,128]{1,0:T(1,128)}', space=vmem, size = 0x12000, scoped, tag = 'internal scratch']
  #allocation2 [shape = 'bf16[66,128]{1,0:T(8,128)(2,1)}', space=vmem, size = 0x4800, scoped, tag = 'scratch operand']
  #allocation3 [shape = 'bf16[1024,512]{1,0:T(8,128)(2,1)}', space=vmem, size = 0x100000, scoped, tag = 'scratch operand']
  #allocation4 [shape = 'bf16[512,256]{1,0:T(8,128)(2,1)}', space=vmem, size = 0x40000, scoped, tag = 'scratch operand']
  #allocation5 [shape = 'bf16[256,256]{1,0:T(8,128)(2,1)}', space=vmem, size = 0x20000, scoped, tag = 'scratch operand']
  #allocation6 [shape = 's32[3]{0}', space=sflag, size = 0xc, scoped, tag = 'scratch operand']
  #allocation7 [shape = 's32[]', space=sflag, size = 0x4, offset = 0, fixed_abs, tag = 'sflag constant byte address 0x0 - dummy sync flag']
  #allocation8 [shape = 's32[]', space=sflag, size = 0x4, offset = 0, fixed_abs, tag = 'sflag constant byte address 0x0 - dummy sync flag']
  #allocation9 [shape = 's32[]', space=sflag, size = 0x4, offset = 0, fixed_abs, tag = 'sflag constant byte address 0x0 - dummy sync flag']
  %s0 = inlined_call_operand.vmem [shape: bf16[32,432], index: 0, kind: input, shape index: {}]
  %s1 = inlined_call_operand.vmem [shape: bf16[2,8], index: 1, kind: input, shape index: {}]
  %s2 = inlined_call_operand.vmem [shape: bf16[432,128], index: 2, kind: input, shape index: {}]
  %s3 = inlined_call_operand.vmem [shape: f32[1,128], index: 3, kind: input, shape index: {}]
  %s4 = inlined_call_operand.vmem [shape: bf16[512,64], index: 4, kind: input, shape index: {}]
  %s5 = inlined_call_operand.vmem [shape: f32[1,64], index: 5, kind: input, shape index: {}]
  %s6 = inlined_call_operand.vmem [shape: f32[1,512], index: 6, kind: input, shape index: {}]
  %s7 = inlined_call_operand.vmem [shape: bf16[8,256], index: 7, kind: input, shape index: {}]
  %s8 = inlined_call_operand.vmem [shape: f32[1,256], index: 8, kind: input, shape index: {}]
  %s9 = inlined_call_operand.vmem [shape: f32[1,256], index: 9, kind: input, shape index: {}]
  %s10 = inlined_call_operand.vmem [shape: bf16[256,128], index: 10, kind: input, shape index: {}]
  %s11 = inlined_call_operand.vmem [shape: f32[1,128], index: 11, kind: input, shape index: {}]
  %s12 = inlined_call_operand.vmem [shape: bf16[1024,512], index: 12, kind: input, shape index: {}]
  %s13 = inlined_call_operand.vmem [shape: bf16[512,256], index: 13, kind: input, shape index: {}]
  %s14 = inlined_call_operand.vmem [shape: bf16[256,256], index: 14, kind: input, shape index: {}]
  %s15 = inlined_call_operand.vmem [shape: f32[2,128], index: 15, kind: output, shape index: {}]
  %s16 = sld [smem:[#allocation0]]
  $region160: #{reward_network_forward.1} parent=0
    _
  %s18 = ssub.s32 1, %s16
  %s19 = scalar_select 0, %s18, %s16
  // Predicated region
  $region2: #{reward_network_forward.1} parent=0 // pred_check
    _
  $region3: #{reward_network_forward.1} parent=0 // pred_check_branch
    %21 = sbr.rel (0) target = $region5
  $region4: #{reward_network_forward.1} parent=0 // pred_region
    _
  $region5: #{reward_network_forward.1} parent=0 // pred_fallthru
    _
  // Predicated region
  $region6: #{reward_network_forward.1} parent=0 // pred_check
    _
  $region7: #{reward_network_forward.1} parent=0 // pred_check_branch
    %23 = sbr.rel (0) target = $region9
  $region8: #{reward_network_forward.1} parent=0 // pred_region
    _
  $region9: #{reward_network_forward.1} parent=0 // pred_fallthru
    _
  // Predicated region
  $region10: #{reward_network_forward.1} parent=0 // pred_check
    _
  $region11: #{reward_network_forward.1} parent=0 // pred_check_branch
    %25 = sbr.rel (0) target = $region13
  $region12: #{reward_network_forward.1} parent=0 // pred_region
    _
  $region13: #{reward_network_forward.1} parent=0 // pred_fallthru
    _
  // Predicated region
  $region14: #{reward_network_forward.1} parent=0 // pred_check
    _
  $region15: #{reward_network_forward.1} parent=0 // pred_check_branch
    %27 = sbr.rel (0) target = $region17
  $region16: #{reward_network_forward.1} parent=0 // pred_region
    _
  $region17: #{reward_network_forward.1} parent=0 // pred_fallthru
    _
  // Predicated region
  $region18: #{reward_network_forward.1} parent=0 // pred_check
    _
  $region19: #{reward_network_forward.1} parent=0 // pred_check_branch
    %29 = sbr.rel (0) target = $region21
  $region20: #{reward_network_forward.1} parent=0 // pred_region
    _
  $region21: #{reward_network_forward.1} parent=0 // pred_fallthru
    _
  // Predicated region
  $region22: #{reward_network_forward.1} parent=0 // pred_check
    _
  $region23: #{reward_network_forward.1} parent=0 // pred_check_branch
    %31 = sbr.rel (0) target = $region25
  $region24: #{reward_network_forward.1} parent=0 // pred_region
    _
  $region25: #{reward_network_forward.1} parent=0 // pred_fallthru
    _
  // Predicated region
  $region26: #{reward_network_forward.1} parent=0 // pred_check
    _
  $region27: #{reward_network_forward.1} parent=0 // pred_check_branch
    %33 = sbr.rel (0) target = $region29
  $region28: #{reward_network_forward.1} parent=0 // pred_region
    _
  $region29: #{reward_network_forward.1} parent=0 // pred_fallthru
    _
  // Predicated region
  $region30: #{reward_network_forward.1} parent=0 // pred_check
    _
  $region31: #{reward_network_forward.1} parent=0 // pred_check_branch
    %35 = sbr.rel (0) target = $region33
  $region32: #{reward_network_forward.1} parent=0 // pred_region
    _
  $region33: #{reward_network_forward.1} parent=0 // pred_fallthru
    _
  // Predicated region
  $region34: #{reward_network_forward.1} parent=0 // pred_check
    _
  $region35: #{reward_network_forward.1} parent=0 // pred_check_branch
    %37 = sbr.rel (0) target = $region37
  $region36: #{reward_network_forward.1} parent=0 // pred_region
    _
  $region37: #{reward_network_forward.1} parent=0 // pred_fallthru
    _
  // Predicated region
  $region38: #{reward_network_forward.1} parent=0 // pred_check
    _
  $region39: #{reward_network_forward.1} parent=0 // pred_check_branch
    %39 = sbr.rel (0) target = $region41
  $region40: #{reward_network_forward.1} parent=0 // pred_region
    _
  $region41: #{reward_network_forward.1} parent=0 // pred_fallthru
    _
  // Predicated region
  $region42: #{reward_network_forward.1} parent=0 // pred_check
    _
  $region43: #{reward_network_forward.1} parent=0 // pred_check_branch
    %41 = sbr.rel (0) target = $region45
  $region44: #{reward_network_forward.1} parent=0 // pred_region
    _
  $region45: #{reward_network_forward.1} parent=0 // pred_fallthru
    _
  // Predicated region
  $region46: #{reward_network_forward.1} parent=0 // pred_check
    _
  $region47: #{reward_network_forward.1} parent=0 // pred_check_branch
    %43 = sbr.rel (0) target = $region49
  $region48: #{reward_network_forward.1} parent=0 // pred_region
    _
  $region49: #{reward_network_forward.1} parent=0 // pred_fallthru
    _
  %p46 = scmp.lt.u32.totalorder 2048, 8
  %p47 = pneg %p46
  // Predicated region
  $region50: #{reward_network_forward.1} parent=0 // pred_check
    _
  $region51: #{reward_network_forward.1} parent=0 // pred_check_branch
    %49 = sbr.rel (%p46) target = $region53
  $region52: #{reward_network_forward.1} parent=0 // pred_region
    %s65 = sand.u32 2048, 7
    %p66 = scmp.eq.s32.totalorder %s65, 0
    // Predicated region
    $region65: #{reward_network_forward.1} parent=52 // pred_check
      %p67 = pneg %p66
    $region66: #{reward_network_forward.1} parent=52 // pred_check_branch
      %69 = sbr.rel (%p67) target = $region68
    $region67: #{reward_network_forward.1} parent=52 // pred_region
      loop: start=0, step=1, limit=1
      $region69: #{reward_network_forward.1} parent=67 // loop_pre_header
        _
      $region70: #{reward_network_forward.1} parent=67 // loop_header
        %s71 = sphi 0, %s75
        %p72 = scmp.ge.s32.totalorder %s71, 1
        %s76 = sphi %s12, %s12
        %s77 = sphi [#allocation3], [#allocation3]
      $region71: #{reward_network_forward.1} parent=67 // loop_header_branch
        %74 = sbr.rel (%p72) target = $region75
      $region72: #{reward_network_forward.1} parent=67 // loop_body
        %v78 = vld [vmem:[%s76] sm:$0xff]
        %79 = vst [vmem:[%s77] sm:$0xff] %v78
        %v80 = vld [vmem:[%s76 + $0x8] sm:$0xff]
        %81 = vst [vmem:[%s77 + $0x8] sm:$0xff] %v80
        %v82 = vld [vmem:[%s76 + $0x10] sm:$0xff]
        %83 = vst [vmem:[%s77 + $0x10] sm:$0xff] %v82
        %v84 = vld [vmem:[%s76 + $0x18] sm:$0xff]
        %85 = vst [vmem:[%s77 + $0x18] sm:$0xff] %v84
        %v86 = vld [vmem:[%s76 + $0x20] sm:$0xff]
        %87 = vst [vmem:[%s77 + $0x20] sm:$0xff] %v86
        %v88 = vld [vmem:[%s76 + $0x28] sm:$0xff]
        %89 = vst [vmem:[%s77 + $0x28] sm:$0xff] %v88
        %v90 = vld [vmem:[%s76 + $0x30] sm:$0xff]
        %91 = vst [vmem:[%s77 + $0x30] sm:$0xff] %v90
        %v92 = vld [vmem:[%s76 + $0x38] sm:$0xff]
        %93 = vst [vmem:[%s77 + $0x38] sm:$0xff] %v92
        %v94 = vld [vmem:[%s76 + $0x40] sm:$0xff]
        %95 = vst [vmem:[%s77 + $0x40] sm:$0xff] %v94
        %v96 = vld [vmem:[%s76 + $0x48] sm:$0xff]
        %97 = vst [vmem:[%s77 + $0x48] sm:$0xff] %v96
        %v98 = vld [vmem:[%s76 + $0x50] sm:$0xff]
        %99 = vst [vmem:[%s77 + $0x50] sm:$0xff] %v98
        %v100 = vld [vmem:[%s76 + $0x58] sm:$0xff]
        %101 = vst [vmem:[%s77 + $0x58] sm:$0xff] %v100
        %v102 = vld [vmem:[%s76 + $0x60] sm:$0xff]
        %103 = vst [vmem:[%s77 + $0x60] sm:$0xff] %v102
        %v104 = vld [vmem:[%s76 + $0x68] sm:$0xff]
        %105 = vst [vmem:[%s77 + $0x68] sm:$0xff] %v104
        %v106 = vld [vmem:[%s76 + $0x70] sm:$0xff]
        %107 = vst [vmem:[%s77 + $0x70] sm:$0xff] %v106
        %v108 = vld [vmem:[%s76 + $0x78] sm:$0xff]
        %109 = vst [vmem:[%s77 + $0x78] sm:$0xff] %v108
        %v110 = vld [vmem:[%s76 + $0x80] sm:$0xff]
        %111 = vst [vmem:[%s77 + $0x80] sm:$0xff] %v110
        %v112 = vld [vmem:[%s76 + $0x88] sm:$0xff]
        %113 = vst [vmem:[%s77 + $0x88] sm:$0xff] %v112
        %v114 = vld [vmem:[%s76 + $0x90] sm:$0xff]
        %115 = vst [vmem:[%s77 + $0x90] sm:$0xff] %v114
        %v116 = vld [vmem:[%s76 + $0x98] sm:$0xff]
        %117 = vst [vmem:[%s77 + $0x98] sm:$0xff] %v116
        %v118 = vld [vmem:[%s76 + $0xa0] sm:$0xff]
        %119 = vst [vmem:[%s77 + $0xa0] sm:$0xff] %v118
        %v120 = vld [vmem:[%s76 + $0xa8] sm:$0xff]
        %121 = vst [vmem:[%s77 + $0xa8] sm:$0xff] %v120
        %v122 = vld [vmem:[%s76 + $0xb0] sm:$0xff]
        %123 = vst [vmem:[%s77 + $0xb0] sm:$0xff] %v122
        %v124 = vld [vmem:[%s76 + $0xb8] sm:$0xff]
        %125 = vst [vmem:[%s77 + $0xb8] sm:$0xff] %v124
        %v126 = vld [vmem:[%s76 + $0xc0] sm:$0xff]
        %127 = vst [vmem:[%s77 + $0xc0] sm:$0xff] %v126
        %v128 = vld [vmem:[%s76 + $0xc8] sm:$0xff]
        %129 = vst [vmem:[%s77 + $0xc8] sm:$0xff] %v128
        %v130 = vld [vmem:[%s76 + $0xd0] sm:$0xff]
        %131 = vst [vmem:[%s77 + $0xd0] sm:$0xff] %v130
        %v132 = vld [vmem:[%s76 + $0xd8] sm:$0xff]
        %133 = vst [vmem:[%s77 + $0xd8] sm:$0xff] %v132
        %v134 = vld [vmem:[%s76 + $0xe0] sm:$0xff]
        %135 = vst [vmem:[%s77 + $0xe0] sm:$0xff] %v134
        %v136 = vld [vmem:[%s76 + $0xe8] sm:$0xff]
        %137 = vst [vmem:[%s77 + $0xe8] sm:$0xff] %v136
        %v138 = vld [vmem:[%s76 + $0xf0] sm:$0xff]
        %139 = vst [vmem:[%s77 + $0xf0] sm:$0xff] %v138
        %v140 = vld [vmem:[%s76 + $0xf8] sm:$0xff]
        %141 = vst [vmem:[%s77 + $0xf8] sm:$0xff] %v140
        %v142 = vld [vmem:[%s76 + $0x100] sm:$0xff]
        %143 = vst [vmem:[%s77 + $0x100] sm:$0xff] %v142
        %v144 = vld [vmem:[%s76 + $0x108] sm:$0xff]
        %145 = vst [vmem:[%s77 + $0x108] sm:$0xff] %v144
        %v146 = vld [vmem:[%s76 + $0x110] sm:$0xff]
        %147 = vst [vmem:[%s77 + $0x110] sm:$0xff] %v146
        %v148 = vld [vmem:[%s76 + $0x118] sm:$0xff]
        %149 = vst [vmem:[%s77 + $0x118] sm:$0xff] %v148
        %v150 = vld [vmem:[%s76 + $0x120] sm:$0xff]
        %151 = vst [vmem:[%s77 + $0x120] sm:$0xff] %v150
        %v152 = vld [vmem:[%s76 + $0x128] sm:$0xff]
        %153 = vst [vmem:[%s77 + $0x128] sm:$0xff] %v152
        %v154 = vld [vmem:[%s76 + $0x130] sm:$0xff]
        %155 = vst [vmem:[%s77 + $0x130] sm:$0xff] %v154
        %v156 = vld [vmem:[%s76 + $0x138] sm:$0xff]
        %157 = vst [vmem:[%s77 + $0x138] sm:$0xff] %v156
        %v158 = vld [vmem:[%s76 + $0x140] sm:$0xff]
        %159 = vst [vmem:[%s77 + $0x140] sm:$0xff] %v158
        %v160 = vld [vmem:[%s76 + $0x148] sm:$0xff]
        %161 = vst [vmem:[%s77 + $0x148] sm:$0xff] %v160
        %v162 = vld [vmem:[%s76 + $0x150] sm:$0xff]
        %163 = vst [vmem:[%s77 + $0x150] sm:$0xff] %v162
        %v164 = vld [vmem:[%s76 + $0x158] sm:$0xff]
        %165 = vst [vmem:[%s77 + $0x158] sm:$0xff] %v164
        %v166 = vld [vmem:[%s76 + $0x160] sm:$0xff]
        %167 = vst [vmem:[%s77 + $0x160] sm:$0xff] %v166
        %v168 = vld [vmem:[%s76 + $0x168] sm:$0xff]
        %169 = vst [vmem:[%s77 + $0x168] sm:$0xff] %v168
        %v170 = vld [vmem:[%s76 + $0x170] sm:$0xff]
        %171 = vst [vmem:[%s77 + $0x170] sm:$0xff] %v170
        %v172 = vld [vmem:[%s76 + $0x178] sm:$0xff]
        %173 = vst [vmem:[%s77 + $0x178] sm:$0xff] %v172
        %v174 = vld [vmem:[%s76 + $0x180] sm:$0xff]
        %175 = vst [vmem:[%s77 + $0x180] sm:$0xff] %v174
        %v176 = vld [vmem:[%s76 + $0x188] sm:$0xff]
        %177 = vst [vmem:[%s77 + $0x188] sm:$0xff] %v176
        %v178 = vld [vmem:[%s76 + $0x190] sm:$0xff]
        %179 = vst [vmem:[%s77 + $0x190] sm:$0xff] %v178
        %v180 = vld [vmem:[%s76 + $0x198] sm:$0xff]
        %181 = vst [vmem:[%s77 + $0x198] sm:$0xff] %v180
        %v182 = vld [vmem:[%s76 + $0x1a0] sm:$0xff]
        %183 = vst [vmem:[%s77 + $0x1a0] sm:$0xff] %v182
        %v184 = vld [vmem:[%s76 + $0x1a8] sm:$0xff]
        %185 = vst [vmem:[%s77 + $0x1a8] sm:$0xff] %v184
        %v186 = vld [vmem:[%s76 + $0x1b0] sm:$0xff]
        %187 = vst [vmem:[%s77 + $0x1b0] sm:$0xff] %v186
        %v188 = vld [vmem:[%s76 + $0x1b8] sm:$0xff]
        %189 = vst [vmem:[%s77 + $0x1b8] sm:$0xff] %v188
        %v190 = vld [vmem:[%s76 + $0x1c0] sm:$0xff]
        %191 = vst [vmem:[%s77 + $0x1c0] sm:$0xff] %v190
        %v192 = vld [vmem:[%s76 + $0x1c8] sm:$0xff]
        %193 = vst [vmem:[%s77 + $0x1c8] sm:$0xff] %v192
        %v194 = vld [vmem:[%s76 + $0x1d0] sm:$0xff]
        %195 = vst [vmem:[%s77 + $0x1d0] sm:$0xff] %v194
        %v196 = vld [vmem:[%s76 + $0x1d8] sm:$0xff]
        %197 = vst [vmem:[%s77 + $0x1d8] sm:$0xff] %v196
        %v198 = vld [vmem:[%s76 + $0x1e0] sm:$0xff]
        %199 = vst [vmem:[%s77 + $0x1e0] sm:$0xff] %v198
        %v200 = vld [vmem:[%s76 + $0x1e8] sm:$0xff]
        %201 = vst [vmem:[%s77 + $0x1e8] sm:$0xff] %v200
        %v202 = vld [vmem:[%s76 + $0x1f0] sm:$0xff]
        %203 = vst [vmem:[%s77 + $0x1f0] sm:$0xff] %v202
        %v204 = vld [vmem:[%s76 + $0x1f8] sm:$0xff]
        %205 = vst [vmem:[%s77 + $0x1f8] sm:$0xff] %v204
        %v206 = vld [vmem:[%s76 + $0x200] sm:$0xff]
        %207 = vst [vmem:[%s77 + $0x200] sm:$0xff] %v206
        %v208 = vld [vmem:[%s76 + $0x208] sm:$0xff]
        %209 = vst [vmem:[%s77 + $0x208] sm:$0xff] %v208
        %v210 = vld [vmem:[%s76 + $0x210] sm:$0xff]
        %211 = vst [vmem:[%s77 + $0x210] sm:$0xff] %v210
        %v212 = vld [vmem:[%s76 + $0x218] sm:$0xff]
        %213 = vst [vmem:[%s77 + $0x218] sm:$0xff] %v212
        %v214 = vld [vmem:[%s76 + $0x220] sm:$0xff]
        %215 = vst [vmem:[%s77 + $0x220] sm:$0xff] %v214
        %v216 = vld [vmem:[%s76 + $0x228] sm:$0xff]
        %217 = vst [vmem:[%s77 + $0x228] sm:$0xff] %v216
        %v218 = vld [vmem:[%s76 + $0x230] sm:$0xff]
        %219 = vst [vmem:[%s77 + $0x230] sm:$0xff] %v218
        %v220 = vld [vmem:[%s76 + $0x238] sm:$0xff]
        %221 = vst [vmem:[%s77 + $0x238] sm:$0xff] %v220
        %v222 = vld [vmem:[%s76 + $0x240] sm:$0xff]
        %223 = vst [vmem:[%s77 + $0x240] sm:$0xff] %v222
        %v224 = vld [vmem:[%s76 + $0x248] sm:$0xff]
        %225 = vst [vmem:[%s77 + $0x248] sm:$0xff] %v224
        %v226 = vld [vmem:[%s76 + $0x250] sm:$0xff]
        %227 = vst [vmem:[%s77 + $0x250] sm:$0xff] %v226
        %v228 = vld [vmem:[%s76 + $0x258] sm:$0xff]
        %229 = vst [vmem:[%s77 + $0x258] sm:$0xff] %v228
        %v230 = vld [vmem:[%s76 + $0x260] sm:$0xff]
        %231 = vst [vmem:[%s77 + $0x260] sm:$0xff] %v230
        %v232 = vld [vmem:[%s76 + $0x268] sm:$0xff]
        %233 = vst [vmem:[%s77 + $0x268] sm:$0xff] %v232
        %v234 = vld [vmem:[%s76 + $0x270] sm:$0xff]
        %235 = vst [vmem:[%s77 + $0x270] sm:$0xff] %v234
        %v236 = vld [vmem:[%s76 + $0x278] sm:$0xff]
        %237 = vst [vmem:[%s77 + $0x278] sm:$0xff] %v236
        %v238 = vld [vmem:[%s76 + $0x280] sm:$0xff]
        %239 = vst [vmem:[%s77 + $0x280] sm:$0xff] %v238
        %v240 = vld [vmem:[%s76 + $0x288] sm:$0xff]
        %241 = vst [vmem:[%s77 + $0x288] sm:$0xff] %v240
        %v242 = vld [vmem:[%s76 + $0x290] sm:$0xff]
        %243 = vst [vmem:[%s77 + $0x290] sm:$0xff] %v242
        %v244 = vld [vmem:[%s76 + $0x298] sm:$0xff]
        %245 = vst [vmem:[%s77 + $0x298] sm:$0xff] %v244
        %v246 = vld [vmem:[%s76 + $0x2a0] sm:$0xff]
        %247 = vst [vmem:[%s77 + $0x2a0] sm:$0xff] %v246
        %v248 = vld [vmem:[%s76 + $0x2a8] sm:$0xff]
        %249 = vst [vmem:[%s77 + $0x2a8] sm:$0xff] %v248
        %v250 = vld [vmem:[%s76 + $0x2b0] sm:$0xff]
        %251 = vst [vmem:[%s77 + $0x2b0] sm:$0xff] %v250
        %v252 = vld [vmem:[%s76 + $0x2b8] sm:$0xff]
        %253 = vst [vmem:[%s77 + $0x2b8] sm:$0xff] %v252
        %v254 = vld [vmem:[%s76 + $0x2c0] sm:$0xff]
        %255 = vst [vmem:[%s77 + $0x2c0] sm:$0xff] %v254
        %v256 = vld [vmem:[%s76 + $0x2c8] sm:$0xff]
        %257 = vst [vmem:[%s77 + $0x2c8] sm:$0xff] %v256
        %v258 = vld [vmem:[%s76 + $0x2d0] sm:$0xff]
        %259 = vst [vmem:[%s77 + $0x2d0] sm:$0xff] %v258
        %v260 = vld [vmem:[%s76 + $0x2d8] sm:$0xff]
        %261 = vst [vmem:[%s77 + $0x2d8] sm:$0xff] %v260
        %v262 = vld [vmem:[%s76 + $0x2e0] sm:$0xff]
        %263 = vst [vmem:[%s77 + $0x2e0] sm:$0xff] %v262
        %v264 = vld [vmem:[%s76 + $0x2e8] sm:$0xff]
        %265 = vst [vmem:[%s77 + $0x2e8] sm:$0xff] %v264
        %v266 = vld [vmem:[%s76 + $0x2f0] sm:$0xff]
        %267 = vst [vmem:[%s77 + $0x2f0] sm:$0xff] %v266
        %v268 = vld [vmem:[%s76 + $0x2f8] sm:$0xff]
        %269 = vst [vmem:[%s77 + $0x2f8] sm:$0xff] %v268
        %v270 = vld [vmem:[%s76 + $0x300] sm:$0xff]
        %271 = vst [vmem:[%s77 + $0x300] sm:$0xff] %v270
        %v272 = vld [vmem:[%s76 + $0x308] sm:$0xff]
        %273 = vst [vmem:[%s77 + $0x308] sm:$0xff] %v272
        %v274 = vld [vmem:[%s76 + $0x310] sm:$0xff]
        %275 = vst [vmem:[%s77 + $0x310] sm:$0xff] %v274
        %v276 = vld [vmem:[%s76 + $0x318] sm:$0xff]
        %277 = vst [vmem:[%s77 + $0x318] sm:$0xff] %v276
        %v278 = vld [vmem:[%s76 + $0x320] sm:$0xff]
        %279 = vst [vmem:[%s77 + $0x320] sm:$0xff] %v278
        %v280 = vld [vmem:[%s76 + $0x328] sm:$0xff]
        %281 = vst [vmem:[%s77 + $0x328] sm:$0xff] %v280
        %v282 = vld [vmem:[%s76 + $0x330] sm:$0xff]
        %283 = vst [vmem:[%s77 + $0x330] sm:$0xff] %v282
        %v284 = vld [vmem:[%s76 + $0x338] sm:$0xff]
        %285 = vst [vmem:[%s77 + $0x338] sm:$0xff] %v284
        %v286 = vld [vmem:[%s76 + $0x340] sm:$0xff]
        %287 = vst [vmem:[%s77 + $0x340] sm:$0xff] %v286
        %v288 = vld [vmem:[%s76 + $0x348] sm:$0xff]
        %289 = vst [vmem:[%s77 + $0x348] sm:$0xff] %v288
        %v290 = vld [vmem:[%s76 + $0x350] sm:$0xff]
        %291 = vst [vmem:[%s77 + $0x350] sm:$0xff] %v290
        %v292 = vld [vmem:[%s76 + $0x358] sm:$0xff]
        %293 = vst [vmem:[%s77 + $0x358] sm:$0xff] %v292
        %v294 = vld [vmem:[%s76 + $0x360] sm:$0xff]
        %295 = vst [vmem:[%s77 + $0x360] sm:$0xff] %v294
        %v296 = vld [vmem:[%s76 + $0x368] sm:$0xff]
        %297 = vst [vmem:[%s77 + $0x368] sm:$0xff] %v296
        %v298 = vld [vmem:[%s76 + $0x370] sm:$0xff]
        %299 = vst [vmem:[%s77 + $0x370] sm:$0xff] %v298
        %v300 = vld [vmem:[%s76 + $0x378] sm:$0xff]
        %301 = vst [vmem:[%s77 + $0x378] sm:$0xff] %v300
        %v302 = vld [vmem:[%s76 + $0x380] sm:$0xff]
        %303 = vst [vmem:[%s77 + $0x380] sm:$0xff] %v302
        %v304 = vld [vmem:[%s76 + $0x388] sm:$0xff]
        %305 = vst [vmem:[%s77 + $0x388] sm:$0xff] %v304
        %v306 = vld [vmem:[%s76 + $0x390] sm:$0xff]
        %307 = vst [vmem:[%s77 + $0x390] sm:$0xff] %v306
        %v308 = vld [vmem:[%s76 + $0x398] sm:$0xff]
        %309 = vst [vmem:[%s77 + $0x398] sm:$0xff] %v308
        %v310 = vld [vmem:[%s76 + $0x3a0] sm:$0xff]
        %311 = vst [vmem:[%s77 + $0x3a0] sm:$0xff] %v310
        %v312 = vld [vmem:[%s76 + $0x3a8] sm:$0xff]
        %313 = vst [vmem:[%s77 + $0x3a8] sm:$0xff] %v312
        %v314 = vld [vmem:[%s76 + $0x3b0] sm:$0xff]
        %315 = vst [vmem:[%s77 + $0x3b0] sm:$0xff] %v314
        %v316 = vld [vmem:[%s76 + $0x3b8] sm:$0xff]
        %317 = vst [vmem:[%s77 + $0x3b8] sm:$0xff] %v316
        %v318 = vld [vmem:[%s76 + $0x3c0] sm:$0xff]
        %319 = vst [vmem:[%s77 + $0x3c0] sm:$0xff] %v318
        %v320 = vld [vmem:[%s76 + $0x3c8] sm:$0xff]
        %321 = vst [vmem:[%s77 + $0x3c8] sm:$0xff] %v320
        %v322 = vld [vmem:[%s76 + $0x3d0] sm:$0xff]
        %323 = vst [vmem:[%s77 + $0x3d0] sm:$0xff] %v322
        %v324 = vld [vmem:[%s76 + $0x3d8] sm:$0xff]
        %325 = vst [vmem:[%s77 + $0x3d8] sm:$0xff] %v324
        %v326 = vld [vmem:[%s76 + $0x3e0] sm:$0xff]
        %327 = vst [vmem:[%s77 + $0x3e0] sm:$0xff] %v326
        %v328 = vld [vmem:[%s76 + $0x3e8] sm:$0xff]
        %329 = vst [vmem:[%s77 + $0x3e8] sm:$0xff] %v328
        %v330 = vld [vmem:[%s76 + $0x3f0] sm:$0xff]
        %331 = vst [vmem:[%s77 + $0x3f0] sm:$0xff] %v330
        %v332 = vld [vmem:[%s76 + $0x3f8] sm:$0xff]
        %333 = vst [vmem:[%s77 + $0x3f8] sm:$0xff] %v332
        %v334 = vld [vmem:[%s76 + $0x400] sm:$0xff]
        %335 = vst [vmem:[%s77 + $0x400] sm:$0xff] %v334
        %v336 = vld [vmem:[%s76 + $0x408] sm:$0xff]
        %337 = vst [vmem:[%s77 + $0x408] sm:$0xff] %v336
        %v338 = vld [vmem:[%s76 + $0x410] sm:$0xff]
        %339 = vst [vmem:[%s77 + $0x410] sm:$0xff] %v338
        %v340 = vld [vmem:[%s76 + $0x418] sm:$0xff]
        %341 = vst [vmem:[%s77 + $0x418] sm:$0xff] %v340
        %v342 = vld [vmem:[%s76 + $0x420] sm:$0xff]
        %343 = vst [vmem:[%s77 + $0x420] sm:$0xff] %v342
        %v344 = vld [vmem:[%s76 + $0x428] sm:$0xff]
        %345 = vst [vmem:[%s77 + $0x428] sm:$0xff] %v344
        %v346 = vld [vmem:[%s76 + $0x430] sm:$0xff]
        %347 = vst [vmem:[%s77 + $0x430] sm:$0xff] %v346
        %v348 = vld [vmem:[%s76 + $0x438] sm:$0xff]
        %349 = vst [vmem:[%s77 + $0x438] sm:$0xff] %v348
        %v350 = vld [vmem:[%s76 + $0x440] sm:$0xff]
        %351 = vst [vmem:[%s77 + $0x440] sm:$0xff] %v350
        %v352 = vld [vmem:[%s76 + $0x448] sm:$0xff]
        %353 = vst [vmem:[%s77 + $0x448] sm:$0xff] %v352
        %v354 = vld [vmem:[%s76 + $0x450] sm:$0xff]
        %355 = vst [vmem:[%s77 + $0x450] sm:$0xff] %v354
        %v356 = vld [vmem:[%s76 + $0x458] sm:$0xff]
        %357 = vst [vmem:[%s77 + $0x458] sm:$0xff] %v356
        %v358 = vld [vmem:[%s76 + $0x460] sm:$0xff]
        %359 = vst [vmem:[%s77 + $0x460] sm:$0xff] %v358
        %v360 = vld [vmem:[%s76 + $0x468] sm:$0xff]
        %361 = vst [vmem:[%s77 + $0x468] sm:$0xff] %v360
        %v362 = vld [vmem:[%s76 + $0x470] sm:$0xff]
        %363 = vst [vmem:[%s77 + $0x470] sm:$0xff] %v362
        %v364 = vld [vmem:[%s76 + $0x478] sm:$0xff]
        %365 = vst [vmem:[%s77 + $0x478] sm:$0xff] %v364
        %v366 = vld [vmem:[%s76 + $0x480] sm:$0xff]
        %367 = vst [vmem:[%s77 + $0x480] sm:$0xff] %v366
        %v368 = vld [vmem:[%s76 + $0x488] sm:$0xff]
        %369 = vst [vmem:[%s77 + $0x488] sm:$0xff] %v368
        %v370 = vld [vmem:[%s76 + $0x490] sm:$0xff]
        %371 = vst [vmem:[%s77 + $0x490] sm:$0xff] %v370
        %v372 = vld [vmem:[%s76 + $0x498] sm:$0xff]
        %373 = vst [vmem:[%s77 + $0x498] sm:$0xff] %v372
        %v374 = vld [vmem:[%s76 + $0x4a0] sm:$0xff]
        %375 = vst [vmem:[%s77 + $0x4a0] sm:$0xff] %v374
        %v376 = vld [vmem:[%s76 + $0x4a8] sm:$0xff]
        %377 = vst [vmem:[%s77 + $0x4a8] sm:$0xff] %v376
        %v378 = vld [vmem:[%s76 + $0x4b0] sm:$0xff]
        %379 = vst [vmem:[%s77 + $0x4b0] sm:$0xff] %v378
        %v380 = vld [vmem:[%s76 + $0x4b8] sm:$0xff]
        %381 = vst [vmem:[%s77 + $0x4b8] sm:$0xff] %v380
        %v382 = vld [vmem:[%s76 + $0x4c0] sm:$0xff]
        %383 = vst [vmem:[%s77 + $0x4c0] sm:$0xff] %v382
        %v384 = vld [vmem:[%s76 + $0x4c8] sm:$0xff]
        %385 = vst [vmem:[%s77 + $0x4c8] sm:$0xff] %v384
        %v386 = vld [vmem:[%s76 + $0x4d0] sm:$0xff]
        %387 = vst [vmem:[%s77 + $0x4d0] sm:$0xff] %v386
        %v388 = vld [vmem:[%s76 + $0x4d8] sm:$0xff]
        %389 = vst [vmem:[%s77 + $0x4d8] sm:$0xff] %v388
        %v390 = vld [vmem:[%s76 + $0x4e0] sm:$0xff]
        %391 = vst [vmem:[%s77 + $0x4e0] sm:$0xff] %v390
        %v392 = vld [vmem:[%s76 + $0x4e8] sm:$0xff]
        %393 = vst [vmem:[%s77 + $0x4e8] sm:$0xff] %v392
        %v394 = vld [vmem:[%s76 + $0x4f0] sm:$0xff]
        %395 = vst [vmem:[%s77 + $0x4f0] sm:$0xff] %v394
        %v396 = vld [vmem:[%s76 + $0x4f8] sm:$0xff]
        %397 = vst [vmem:[%s77 + $0x4f8] sm:$0xff] %v396
        %v398 = vld [vmem:[%s76 + $0x500] sm:$0xff]
        %399 = vst [vmem:[%s77 + $0x500] sm:$0xff] %v398
        %v400 = vld [vmem:[%s76 + $0x508] sm:$0xff]
        %401 = vst [vmem:[%s77 + $0x508] sm:$0xff] %v400
        %v402 = vld [vmem:[%s76 + $0x510] sm:$0xff]
        %403 = vst [vmem:[%s77 + $0x510] sm:$0xff] %v402
        %v404 = vld [vmem:[%s76 + $0x518] sm:$0xff]
        %405 = vst [vmem:[%s77 + $0x518] sm:$0xff] %v404
        %v406 = vld [vmem:[%s76 + $0x520] sm:$0xff]
        %407 = vst [vmem:[%s77 + $0x520] sm:$0xff] %v406
        %v408 = vld [vmem:[%s76 + $0x528] sm:$0xff]
        %409 = vst [vmem:[%s77 + $0x528] sm:$0xff] %v408
        %v410 = vld [vmem:[%s76 + $0x530] sm:$0xff]
        %411 = vst [vmem:[%s77 + $0x530] sm:$0xff] %v410
        %v412 = vld [vmem:[%s76 + $0x538] sm:$0xff]
        %413 = vst [vmem:[%s77 + $0x538] sm:$0xff] %v412
        %v414 = vld [vmem:[%s76 + $0x540] sm:$0xff]
        %415 = vst [vmem:[%s77 + $0x540] sm:$0xff] %v414
        %v416 = vld [vmem:[%s76 + $0x548] sm:$0xff]
        %417 = vst [vmem:[%s77 + $0x548] sm:$0xff] %v416
        %v418 = vld [vmem:[%s76 + $0x550] sm:$0xff]
        %419 = vst [vmem:[%s77 + $0x550] sm:$0xff] %v418
        %v420 = vld [vmem:[%s76 + $0x558] sm:$0xff]
        %421 = vst [vmem:[%s77 + $0x558] sm:$0xff] %v420
        %v422 = vld [vmem:[%s76 + $0x560] sm:$0xff]
        %423 = vst [vmem:[%s77 + $0x560] sm:$0xff] %v422
        %v424 = vld [vmem:[%s76 + $0x568] sm:$0xff]
        %425 = vst [vmem:[%s77 + $0x568] sm:$0xff] %v424
        %v426 = vld [vmem:[%s76 + $0x570] sm:$0xff]
        %427 = vst [vmem:[%s77 + $0x570] sm:$0xff] %v426
        %v428 = vld [vmem:[%s76 + $0x578] sm:$0xff]
        %429 = vst [vmem:[%s77 + $0x578] sm:$0xff] %v428
        %v430 = vld [vmem:[%s76 + $0x580] sm:$0xff]
        %431 = vst [vmem:[%s77 + $0x580] sm:$0xff] %v430
        %v432 = vld [vmem:[%s76 + $0x588] sm:$0xff]
        %433 = vst [vmem:[%s77 + $0x588] sm:$0xff] %v432
        %v434 = vld [vmem:[%s76 + $0x590] sm:$0xff]
        %435 = vst [vmem:[%s77 + $0x590] sm:$0xff] %v434
        %v436 = vld [vmem:[%s76 + $0x598] sm:$0xff]
        %437 = vst [vmem:[%s77 + $0x598] sm:$0xff] %v436
        %v438 = vld [vmem:[%s76 + $0x5a0] sm:$0xff]
        %439 = vst [vmem:[%s77 + $0x5a0] sm:$0xff] %v438
        %v440 = vld [vmem:[%s76 + $0x5a8] sm:$0xff]
        %441 = vst [vmem:[%s77 + $0x5a8] sm:$0xff] %v440
        %v442 = vld [vmem:[%s76 + $0x5b0] sm:$0xff]
        %443 = vst [vmem:[%s77 + $0x5b0] sm:$0xff] %v442
        %v444 = vld [vmem:[%s76 + $0x5b8] sm:$0xff]
        %445 = vst [vmem:[%s77 + $0x5b8] sm:$0xff] %v444
        %v446 = vld [vmem:[%s76 + $0x5c0] sm:$0xff]
        %447 = vst [vmem:[%s77 + $0x5c0] sm:$0xff] %v446
        %v448 = vld [vmem:[%s76 + $0x5c8] sm:$0xff]
        %449 = vst [vmem:[%s77 + $0x5c8] sm:$0xff] %v448
        %v450 = vld [vmem:[%s76 + $0x5d0] sm:$0xff]
        %451 = vst [vmem:[%s77 + $0x5d0] sm:$0xff] %v450
        %v452 = vld [vmem:[%s76 + $0x5d8] sm:$0xff]
        %453 = vst [vmem:[%s77 + $0x5d8] sm:$0xff] %v452
        %v454 = vld [vmem:[%s76 + $0x5e0] sm:$0xff]
        %455 = vst [vmem:[%s77 + $0x5e0] sm:$0xff] %v454
        %v456 = vld [vmem:[%s76 + $0x5e8] sm:$0xff]
        %457 = vst [vmem:[%s77 + $0x5e8] sm:$0xff] %v456
        %v458 = vld [vmem:[%s76 + $0x5f0] sm:$0xff]
        %459 = vst [vmem:[%s77 + $0x5f0] sm:$0xff] %v458
        %v460 = vld [vmem:[%s76 + $0x5f8] sm:$0xff]
        %461 = vst [vmem:[%s77 + $0x5f8] sm:$0xff] %v460
        %v462 = vld [vmem:[%s76 + $0x600] sm:$0xff]
        %463 = vst [vmem:[%s77 + $0x600] sm:$0xff] %v462
        %v464 = vld [vmem:[%s76 + $0x608] sm:$0xff]
        %465 = vst [vmem:[%s77 + $0x608] sm:$0xff] %v464
        %v466 = vld [vmem:[%s76 + $0x610] sm:$0xff]
        %467 = vst [vmem:[%s77 + $0x610] sm:$0xff] %v466
        %v468 = vld [vmem:[%s76 + $0x618] sm:$0xff]
        %469 = vst [vmem:[%s77 + $0x618] sm:$0xff] %v468
        %v470 = vld [vmem:[%s76 + $0x620] sm:$0xff]
        %471 = vst [vmem:[%s77 + $0x620] sm:$0xff] %v470
        %v472 = vld [vmem:[%s76 + $0x628] sm:$0xff]
        %473 = vst [vmem:[%s77 + $0x628] sm:$0xff] %v472
        %v474 = vld [vmem:[%s76 + $0x630] sm:$0xff]
        %475 = vst [vmem:[%s77 + $0x630] sm:$0xff] %v474
        %v476 = vld [vmem:[%s76 + $0x638] sm:$0xff]
        %477 = vst [vmem:[%s77 + $0x638] sm:$0xff] %v476
        %v478 = vld [vmem:[%s76 + $0x640] sm:$0xff]
        %479 = vst [vmem:[%s77 + $0x640] sm:$0xff] %v478
        %v480 = vld [vmem:[%s76 + $0x648] sm:$0xff]
        %481 = vst [vmem:[%s77 + $0x648] sm:$0xff] %v480
        %v482 = vld [vmem:[%s76 + $0x650] sm:$0xff]
        %483 = vst [vmem:[%s77 + $0x650] sm:$0xff] %v482
        %v484 = vld [vmem:[%s76 + $0x658] sm:$0xff]
        %485 = vst [vmem:[%s77 + $0x658] sm:$0xff] %v484
        %v486 = vld [vmem:[%s76 + $0x660] sm:$0xff]
        %487 = vst [vmem:[%s77 + $0x660] sm:$0xff] %v486
        %v488 = vld [vmem:[%s76 + $0x668] sm:$0xff]
        %489 = vst [vmem:[%s77 + $0x668] sm:$0xff] %v488
        %v490 = vld [vmem:[%s76 + $0x670] sm:$0xff]
        %491 = vst [vmem:[%s77 + $0x670] sm:$0xff] %v490
        %v492 = vld [vmem:[%s76 + $0x678] sm:$0xff]
        %493 = vst [vmem:[%s77 + $0x678] sm:$0xff] %v492
        %v494 = vld [vmem:[%s76 + $0x680] sm:$0xff]
        %495 = vst [vmem:[%s77 + $0x680] sm:$0xff] %v494
        %v496 = vld [vmem:[%s76 + $0x688] sm:$0xff]
        %497 = vst [vmem:[%s77 + $0x688] sm:$0xff] %v496
        %v498 = vld [vmem:[%s76 + $0x690] sm:$0xff]
        %499 = vst [vmem:[%s77 + $0x690] sm:$0xff] %v498
        %v500 = vld [vmem:[%s76 + $0x698] sm:$0xff]
        %501 = vst [vmem:[%s77 + $0x698] sm:$0xff] %v500
        %v502 = vld [vmem:[%s76 + $0x6a0] sm:$0xff]
        %503 = vst [vmem:[%s77 + $0x6a0] sm:$0xff] %v502
        %v504 = vld [vmem:[%s76 + $0x6a8] sm:$0xff]
        %505 = vst [vmem:[%s77 + $0x6a8] sm:$0xff] %v504
        %v506 = vld [vmem:[%s76 + $0x6b0] sm:$0xff]
        %507 = vst [vmem:[%s77 + $0x6b0] sm:$0xff] %v506
        %v508 = vld [vmem:[%s76 + $0x6b8] sm:$0xff]
        %509 = vst [vmem:[%s77 + $0x6b8] sm:$0xff] %v508
        %v510 = vld [vmem:[%s76 + $0x6c0] sm:$0xff]
        %511 = vst [vmem:[%s77 + $0x6c0] sm:$0xff] %v510
        %v512 = vld [vmem:[%s76 + $0x6c8] sm:$0xff]
        %513 = vst [vmem:[%s77 + $0x6c8] sm:$0xff] %v512
        %v514 = vld [vmem:[%s76 + $0x6d0] sm:$0xff]
        %515 = vst [vmem:[%s77 + $0x6d0] sm:$0xff] %v514
        %v516 = vld [vmem:[%s76 + $0x6d8] sm:$0xff]
        %517 = vst [vmem:[%s77 + $0x6d8] sm:$0xff] %v516
        %v518 = vld [vmem:[%s76 + $0x6e0] sm:$0xff]
        %519 = vst [vmem:[%s77 + $0x6e0] sm:$0xff] %v518
        %v520 = vld [vmem:[%s76 + $0x6e8] sm:$0xff]
        %521 = vst [vmem:[%s77 + $0x6e8] sm:$0xff] %v520
        %v522 = vld [vmem:[%s76 + $0x6f0] sm:$0xff]
        %523 = vst [vmem:[%s77 + $0x6f0] sm:$0xff] %v522
        %v524 = vld [vmem:[%s76 + $0x6f8] sm:$0xff]
        %525 = vst [vmem:[%s77 + $0x6f8] sm:$0xff] %v524
        %v526 = vld [vmem:[%s76 + $0x700] sm:$0xff]
        %527 = vst [vmem:[%s77 + $0x700] sm:$0xff] %v526
        %v528 = vld [vmem:[%s76 + $0x708] sm:$0xff]
        %529 = vst [vmem:[%s77 + $0x708] sm:$0xff] %v528
        %v530 = vld [vmem:[%s76 + $0x710] sm:$0xff]
        %531 = vst [vmem:[%s77 + $0x710] sm:$0xff] %v530
        %v532 = vld [vmem:[%s76 + $0x718] sm:$0xff]
        %533 = vst [vmem:[%s77 + $0x718] sm:$0xff] %v532
        %v534 = vld [vmem:[%s76 + $0x720] sm:$0xff]
        %535 = vst [vmem:[%s77 + $0x720] sm:$0xff] %v534
        %v536 = vld [vmem:[%s76 + $0x728] sm:$0xff]
        %537 = vst [vmem:[%s77 + $0x728] sm:$0xff] %v536
        %v538 = vld [vmem:[%s76 + $0x730] sm:$0xff]
        %539 = vst [vmem:[%s77 + $0x730] sm:$0xff] %v538
        %v540 = vld [vmem:[%s76 + $0x738] sm:$0xff]
        %541 = vst [vmem:[%s77 + $0x738] sm:$0xff] %v540
        %v542 = vld [vmem:[%s76 + $0x740] sm:$0xff]
        %543 = vst [vmem:[%s77 + $0x740] sm:$0xff] %v542
        %v544 = vld [vmem:[%s76 + $0x748] sm:$0xff]
        %545 = vst [vmem:[%s77 + $0x748] sm:$0xff] %v544
        %v546 = vld [vmem:[%s76 + $0x750] sm:$0xff]
        %547 = vst [vmem:[%s77 + $0x750] sm:$0xff] %v546
        %v548 = vld [vmem:[%s76 + $0x758] sm:$0xff]
        %549 = vst [vmem:[%s77 + $0x758] sm:$0xff] %v548
        %v550 = vld [vmem:[%s76 + $0x760] sm:$0xff]
        %551 = vst [vmem:[%s77 + $0x760] sm:$0xff] %v550
        %v552 = vld [vmem:[%s76 + $0x768] sm:$0xff]
        %553 = vst [vmem:[%s77 + $0x768] sm:$0xff] %v552
        %v554 = vld [vmem:[%s76 + $0x770] sm:$0xff]
        %555 = vst [vmem:[%s77 + $0x770] sm:$0xff] %v554
        %v556 = vld [vmem:[%s76 + $0x778] sm:$0xff]
        %557 = vst [vmem:[%s77 + $0x778] sm:$0xff] %v556
        %v558 = vld [vmem:[%s76 + $0x780] sm:$0xff]
        %559 = vst [vmem:[%s77 + $0x780] sm:$0xff] %v558
        %v560 = vld [vmem:[%s76 + $0x788] sm:$0xff]
        %561 = vst [vmem:[%s77 + $0x788] sm:$0xff] %v560
        %v562 = vld [vmem:[%s76 + $0x790] sm:$0xff]
        %563 = vst [vmem:[%s77 + $0x790] sm:$0xff] %v562
        %v564 = vld [vmem:[%s76 + $0x798] sm:$0xff]
        %565 = vst [vmem:[%s77 + $0x798] sm:$0xff] %v564
        %v566 = vld [vmem:[%s76 + $0x7a0] sm:$0xff]
        %567 = vst [vmem:[%s77 + $0x7a0] sm:$0xff] %v566
        %v568 = vld [vmem:[%s76 + $0x7a8] sm:$0xff]
        %569 = vst [vmem:[%s77 + $0x7a8] sm:$0xff] %v568
        %v570 = vld [vmem:[%s76 + $0x7b0] sm:$0xff]
        %571 = vst [vmem:[%s77 + $0x7b0] sm:$0xff] %v570
        %v572 = vld [vmem:[%s76 + $0x7b8] sm:$0xff]
        %573 = vst [vmem:[%s77 + $0x7b8] sm:$0xff] %v572
        %v574 = vld [vmem:[%s76 + $0x7c0] sm:$0xff]
        %575 = vst [vmem:[%s77 + $0x7c0] sm:$0xff] %v574
        %v576 = vld [vmem:[%s76 + $0x7c8] sm:$0xff]
        %577 = vst [vmem:[%s77 + $0x7c8] sm:$0xff] %v576
        %v578 = vld [vmem:[%s76 + $0x7d0] sm:$0xff]
        %579 = vst [vmem:[%s77 + $0x7d0] sm:$0xff] %v578
        %v580 = vld [vmem:[%s76 + $0x7d8] sm:$0xff]
        %581 = vst [vmem:[%s77 + $0x7d8] sm:$0xff] %v580
        %v582 = vld [vmem:[%s76 + $0x7e0] sm:$0xff]
        %583 = vst [vmem:[%s77 + $0x7e0] sm:$0xff] %v582
        %v584 = vld [vmem:[%s76 + $0x7e8] sm:$0xff]
        %585 = vst [vmem:[%s77 + $0x7e8] sm:$0xff] %v584
        %v586 = vld [vmem:[%s76 + $0x7f0] sm:$0xff]
        %587 = vst [vmem:[%s77 + $0x7f0] sm:$0xff] %v586
        %v588 = vld [vmem:[%s76 + $0x7f8] sm:$0xff]
        %589 = vst [vmem:[%s77 + $0x7f8] sm:$0xff] %v588
      $region73: #{reward_network_forward.1} parent=67 // loop_footer
        %s75 = sadd.s32 1, %s71
      $region74: #{reward_network_forward.1} parent=67 // loop_footer_branch
        %70 = sbr.rel target = $region70
      $region75: #{reward_network_forward.1} parent=67 // loop_exit
        _
    $region68: #{reward_network_forward.1} parent=52 // pred_fallthru
      _
    %p590 = pneg %p66
    // Predicated region
    $region76: #{reward_network_forward.1} parent=52 // pred_check
      _
    $region77: #{reward_network_forward.1} parent=52 // pred_check_branch
      %592 = sbr.rel (%p66) target = $region79
    $region78: #{reward_network_forward.1} parent=52 // pred_region
      %s593 = sand.u32 2048, 7
    $region79: #{reward_network_forward.1} parent=52 // pred_fallthru
      _
  $region53: #{reward_network_forward.1} parent=0 // pred_fallthru
    _
  // Predicated region
  $region54: #{reward_network_forward.1} parent=0 // pred_check
    %p50 = pneg %p46
  $region55: #{reward_network_forward.1} parent=0 // pred_check_branch
    %52 = sbr.rel (%p50) target = $region57
  $region56: #{reward_network_forward.1} parent=0 // pred_region
    %s53 = sshll.u32 1, 2048
    %s54 = ssub.s32 %s53, 1
    loop: start=0, step=1, limit=1
    $region58: #{reward_network_forward.1} parent=56 // loop_pre_header
      _
    $region59: #{reward_network_forward.1} parent=56 // loop_header
      %s56 = sphi 0, %s60
      %p57 = scmp.ge.s32.totalorder %s56, 1
      %s61 = sphi %s12, %s12
      %s62 = sphi [#allocation3], [#allocation3]
    $region60: #{reward_network_forward.1} parent=56 // loop_header_branch
      %59 = sbr.rel (%p57) target = $region64
    $region61: #{reward_network_forward.1} parent=56 // loop_body
      %v63 = vld [vmem:[%s61] sm:%s54]
      %64 = vst [vmem:[%s62] sm:%s54] %v63
    $region62: #{reward_network_forward.1} parent=56 // loop_footer
      %s60 = sadd.s32 1, %s56
    $region63: #{reward_network_forward.1} parent=56 // loop_footer_branch
      %55 = sbr.rel target = $region59
    $region64: #{reward_network_forward.1} parent=56 // loop_exit
      _
  $region57: #{reward_network_forward.1} parent=0 // pred_fallthru
    _
  // Predicated region
  $region80: #{reward_network_forward.1} parent=0 // pred_check
    _
  $region81: #{reward_network_forward.1} parent=0 // pred_check_branch
    %596 = sbr.rel (0) target = $region83
  $region82: #{reward_network_forward.1} parent=0 // pred_region
    %597 = vsyncadd [#allocation6], 32768
  $region83: #{reward_network_forward.1} parent=0 // pred_fallthru
    _
  %s598 = scalar_lea.sflag [#allocation6], 1
  %p600 = scmp.lt.u32.totalorder 512, 8
  %p601 = pneg %p600
  // Predicated region
  $region84: #{reward_network_forward.1} parent=0 // pred_check
    _
  $region85: #{reward_network_forward.1} parent=0 // pred_check_branch
    %603 = sbr.rel (%p600) target = $region87
  $region86: #{reward_network_forward.1} parent=0 // pred_region
    %s619 = sand.u32 512, 7
    %p620 = scmp.eq.s32.totalorder %s619, 0
    // Predicated region
    $region99: #{reward_network_forward.1} parent=86 // pred_check
      %p621 = pneg %p620
    $region100: #{reward_network_forward.1} parent=86 // pred_check_branch
      %623 = sbr.rel (%p621) target = $region102
    $region101: #{reward_network_forward.1} parent=86 // pred_region
      loop: start=0, step=1, limit=1
      $region103: #{reward_network_forward.1} parent=101 // loop_pre_header
        _
      $region104: #{reward_network_forward.1} parent=101 // loop_header
        %s625 = sphi 0, %s629
        %p626 = scmp.ge.s32.totalorder %s625, 1
        %s630 = sphi %s13, %s13
        %s631 = sphi [#allocation4], [#allocation4]
      $region105: #{reward_network_forward.1} parent=101 // loop_header_branch
        %628 = sbr.rel (%p626) target = $region109
      $region106: #{reward_network_forward.1} parent=101 // loop_body
        %v632 = vld [vmem:[%s630] sm:$0xff]
        %633 = vst [vmem:[%s631] sm:$0xff] %v632
        %v634 = vld [vmem:[%s630 + $0x8] sm:$0xff]
        %635 = vst [vmem:[%s631 + $0x8] sm:$0xff] %v634
        %v636 = vld [vmem:[%s630 + $0x10] sm:$0xff]
        %637 = vst [vmem:[%s631 + $0x10] sm:$0xff] %v636
        %v638 = vld [vmem:[%s630 + $0x18] sm:$0xff]
        %639 = vst [vmem:[%s631 + $0x18] sm:$0xff] %v638
        %v640 = vld [vmem:[%s630 + $0x20] sm:$0xff]
        %641 = vst [vmem:[%s631 + $0x20] sm:$0xff] %v640
        %v642 = vld [vmem:[%s630 + $0x28] sm:$0xff]
        %643 = vst [vmem:[%s631 + $0x28] sm:$0xff] %v642
        %v644 = vld [vmem:[%s630 + $0x30] sm:$0xff]
        %645 = vst [vmem:[%s631 + $0x30] sm:$0xff] %v644
        %v646 = vld [vmem:[%s630 + $0x38] sm:$0xff]
        %647 = vst [vmem:[%s631 + $0x38] sm:$0xff] %v646
        %v648 = vld [vmem:[%s630 + $0x40] sm:$0xff]
        %649 = vst [vmem:[%s631 + $0x40] sm:$0xff] %v648
        %v650 = vld [vmem:[%s630 + $0x48] sm:$0xff]
        %651 = vst [vmem:[%s631 + $0x48] sm:$0xff] %v650
        %v652 = vld [vmem:[%s630 + $0x50] sm:$0xff]
        %653 = vst [vmem:[%s631 + $0x50] sm:$0xff] %v652
        %v654 = vld [vmem:[%s630 + $0x58] sm:$0xff]
        %655 = vst [vmem:[%s631 + $0x58] sm:$0xff] %v654
        %v656 = vld [vmem:[%s630 + $0x60] sm:$0xff]
        %657 = vst [vmem:[%s631 + $0x60] sm:$0xff] %v656
        %v658 = vld [vmem:[%s630 + $0x68] sm:$0xff]
        %659 = vst [vmem:[%s631 + $0x68] sm:$0xff] %v658
        %v660 = vld [vmem:[%s630 + $0x70] sm:$0xff]
        %661 = vst [vmem:[%s631 + $0x70] sm:$0xff] %v660
        %v662 = vld [vmem:[%s630 + $0x78] sm:$0xff]
        %663 = vst [vmem:[%s631 + $0x78] sm:$0xff] %v662
        %v664 = vld [vmem:[%s630 + $0x80] sm:$0xff]
        %665 = vst [vmem:[%s631 + $0x80] sm:$0xff] %v664
        %v666 = vld [vmem:[%s630 + $0x88] sm:$0xff]
        %667 = vst [vmem:[%s631 + $0x88] sm:$0xff] %v666
        %v668 = vld [vmem:[%s630 + $0x90] sm:$0xff]
        %669 = vst [vmem:[%s631 + $0x90] sm:$0xff] %v668
        %v670 = vld [vmem:[%s630 + $0x98] sm:$0xff]
        %671 = vst [vmem:[%s631 + $0x98] sm:$0xff] %v670
        %v672 = vld [vmem:[%s630 + $0xa0] sm:$0xff]
        %673 = vst [vmem:[%s631 + $0xa0] sm:$0xff] %v672
        %v674 = vld [vmem:[%s630 + $0xa8] sm:$0xff]
        %675 = vst [vmem:[%s631 + $0xa8] sm:$0xff] %v674
        %v676 = vld [vmem:[%s630 + $0xb0] sm:$0xff]
        %677 = vst [vmem:[%s631 + $0xb0] sm:$0xff] %v676
        %v678 = vld [vmem:[%s630 + $0xb8] sm:$0xff]
        %679 = vst [vmem:[%s631 + $0xb8] sm:$0xff] %v678
        %v680 = vld [vmem:[%s630 + $0xc0] sm:$0xff]
        %681 = vst [vmem:[%s631 + $0xc0] sm:$0xff] %v680
        %v682 = vld [vmem:[%s630 + $0xc8] sm:$0xff]
        %683 = vst [vmem:[%s631 + $0xc8] sm:$0xff] %v682
        %v684 = vld [vmem:[%s630 + $0xd0] sm:$0xff]
        %685 = vst [vmem:[%s631 + $0xd0] sm:$0xff] %v684
        %v686 = vld [vmem:[%s630 + $0xd8] sm:$0xff]
        %687 = vst [vmem:[%s631 + $0xd8] sm:$0xff] %v686
        %v688 = vld [vmem:[%s630 + $0xe0] sm:$0xff]
        %689 = vst [vmem:[%s631 + $0xe0] sm:$0xff] %v688
        %v690 = vld [vmem:[%s630 + $0xe8] sm:$0xff]
        %691 = vst [vmem:[%s631 + $0xe8] sm:$0xff] %v690
        %v692 = vld [vmem:[%s630 + $0xf0] sm:$0xff]
        %693 = vst [vmem:[%s631 + $0xf0] sm:$0xff] %v692
        %v694 = vld [vmem:[%s630 + $0xf8] sm:$0xff]
        %695 = vst [vmem:[%s631 + $0xf8] sm:$0xff] %v694
        %v696 = vld [vmem:[%s630 + $0x100] sm:$0xff]
        %697 = vst [vmem:[%s631 + $0x100] sm:$0xff] %v696
        %v698 = vld [vmem:[%s630 + $0x108] sm:$0xff]
        %699 = vst [vmem:[%s631 + $0x108] sm:$0xff] %v698
        %v700 = vld [vmem:[%s630 + $0x110] sm:$0xff]
        %701 = vst [vmem:[%s631 + $0x110] sm:$0xff] %v700
        %v702 = vld [vmem:[%s630 + $0x118] sm:$0xff]
        %703 = vst [vmem:[%s631 + $0x118] sm:$0xff] %v702
        %v704 = vld [vmem:[%s630 + $0x120] sm:$0xff]
        %705 = vst [vmem:[%s631 + $0x120] sm:$0xff] %v704
        %v706 = vld [vmem:[%s630 + $0x128] sm:$0xff]
        %707 = vst [vmem:[%s631 + $0x128] sm:$0xff] %v706
        %v708 = vld [vmem:[%s630 + $0x130] sm:$0xff]
        %709 = vst [vmem:[%s631 + $0x130] sm:$0xff] %v708
        %v710 = vld [vmem:[%s630 + $0x138] sm:$0xff]
        %711 = vst [vmem:[%s631 + $0x138] sm:$0xff] %v710
        %v712 = vld [vmem:[%s630 + $0x140] sm:$0xff]
        %713 = vst [vmem:[%s631 + $0x140] sm:$0xff] %v712
        %v714 = vld [vmem:[%s630 + $0x148] sm:$0xff]
        %715 = vst [vmem:[%s631 + $0x148] sm:$0xff] %v714
        %v716 = vld [vmem:[%s630 + $0x150] sm:$0xff]
        %717 = vst [vmem:[%s631 + $0x150] sm:$0xff] %v716
        %v718 = vld [vmem:[%s630 + $0x158] sm:$0xff]
        %719 = vst [vmem:[%s631 + $0x158] sm:$0xff] %v718
        %v720 = vld [vmem:[%s630 + $0x160] sm:$0xff]
        %721 = vst [vmem:[%s631 + $0x160] sm:$0xff] %v720
        %v722 = vld [vmem:[%s630 + $0x168] sm:$0xff]
        %723 = vst [vmem:[%s631 + $0x168] sm:$0xff] %v722
        %v724 = vld [vmem:[%s630 + $0x170] sm:$0xff]
        %725 = vst [vmem:[%s631 + $0x170] sm:$0xff] %v724
        %v726 = vld [vmem:[%s630 + $0x178] sm:$0xff]
        %727 = vst [vmem:[%s631 + $0x178] sm:$0xff] %v726
        %v728 = vld [vmem:[%s630 + $0x180] sm:$0xff]
        %729 = vst [vmem:[%s631 + $0x180] sm:$0xff] %v728
        %v730 = vld [vmem:[%s630 + $0x188] sm:$0xff]
        %731 = vst [vmem:[%s631 + $0x188] sm:$0xff] %v730
        %v732 = vld [vmem:[%s630 + $0x190] sm:$0xff]
        %733 = vst [vmem:[%s631 + $0x190] sm:$0xff] %v732
        %v734 = vld [vmem:[%s630 + $0x198] sm:$0xff]
        %735 = vst [vmem:[%s631 + $0x198] sm:$0xff] %v734
        %v736 = vld [vmem:[%s630 + $0x1a0] sm:$0xff]
        %737 = vst [vmem:[%s631 + $0x1a0] sm:$0xff] %v736
        %v738 = vld [vmem:[%s630 + $0x1a8] sm:$0xff]
        %739 = vst [vmem:[%s631 + $0x1a8] sm:$0xff] %v738
        %v740 = vld [vmem:[%s630 + $0x1b0] sm:$0xff]
        %741 = vst [vmem:[%s631 + $0x1b0] sm:$0xff] %v740
        %v742 = vld [vmem:[%s630 + $0x1b8] sm:$0xff]
        %743 = vst [vmem:[%s631 + $0x1b8] sm:$0xff] %v742
        %v744 = vld [vmem:[%s630 + $0x1c0] sm:$0xff]
        %745 = vst [vmem:[%s631 + $0x1c0] sm:$0xff] %v744
        %v746 = vld [vmem:[%s630 + $0x1c8] sm:$0xff]
        %747 = vst [vmem:[%s631 + $0x1c8] sm:$0xff] %v746
        %v748 = vld [vmem:[%s630 + $0x1d0] sm:$0xff]
        %749 = vst [vmem:[%s631 + $0x1d0] sm:$0xff] %v748
        %v750 = vld [vmem:[%s630 + $0x1d8] sm:$0xff]
        %751 = vst [vmem:[%s631 + $0x1d8] sm:$0xff] %v750
        %v752 = vld [vmem:[%s630 + $0x1e0] sm:$0xff]
        %753 = vst [vmem:[%s631 + $0x1e0] sm:$0xff] %v752
        %v754 = vld [vmem:[%s630 + $0x1e8] sm:$0xff]
        %755 = vst [vmem:[%s631 + $0x1e8] sm:$0xff] %v754
        %v756 = vld [vmem:[%s630 + $0x1f0] sm:$0xff]
        %757 = vst [vmem:[%s631 + $0x1f0] sm:$0xff] %v756
        %v758 = vld [vmem:[%s630 + $0x1f8] sm:$0xff]
        %759 = vst [vmem:[%s631 + $0x1f8] sm:$0xff] %v758
      $region107: #{reward_network_forward.1} parent=101 // loop_footer
        %s629 = sadd.s32 1, %s625
      $region108: #{reward_network_forward.1} parent=101 // loop_footer_branch
        %624 = sbr.rel target = $region104
      $region109: #{reward_network_forward.1} parent=101 // loop_exit
        _
    $region102: #{reward_network_forward.1} parent=86 // pred_fallthru
      _
    %p760 = pneg %p620
    // Predicated region
    $region110: #{reward_network_forward.1} parent=86 // pred_check
      _
    $region111: #{reward_network_forward.1} parent=86 // pred_check_branch
      %762 = sbr.rel (%p620) target = $region113
    $region112: #{reward_network_forward.1} parent=86 // pred_region
      %s763 = sand.u32 512, 7
    $region113: #{reward_network_forward.1} parent=86 // pred_fallthru
      _
  $region87: #{reward_network_forward.1} parent=0 // pred_fallthru
    _
  // Predicated region
  $region88: #{reward_network_forward.1} parent=0 // pred_check
    %p604 = pneg %p600
  $region89: #{reward_network_forward.1} parent=0 // pred_check_branch
    %606 = sbr.rel (%p604) target = $region91
  $region90: #{reward_network_forward.1} parent=0 // pred_region
    %s607 = sshll.u32 1, 512
    %s608 = ssub.s32 %s607, 1
    loop: start=0, step=1, limit=1
    $region92: #{reward_network_forward.1} parent=90 // loop_pre_header
      _
    $region93: #{reward_network_forward.1} parent=90 // loop_header
      %s610 = sphi 0, %s614
      %p611 = scmp.ge.s32.totalorder %s610, 1
      %s615 = sphi %s13, %s13
      %s616 = sphi [#allocation4], [#allocation4]
    $region94: #{reward_network_forward.1} parent=90 // loop_header_branch
      %613 = sbr.rel (%p611) target = $region98
    $region95: #{reward_network_forward.1} parent=90 // loop_body
      %v617 = vld [vmem:[%s615] sm:%s608]
      %618 = vst [vmem:[%s616] sm:%s608] %v617
    $region96: #{reward_network_forward.1} parent=90 // loop_footer
      %s614 = sadd.s32 1, %s610
    $region97: #{reward_network_forward.1} parent=90 // loop_footer_branch
      %609 = sbr.rel target = $region93
    $region98: #{reward_network_forward.1} parent=90 // loop_exit
      _
  $region91: #{reward_network_forward.1} parent=0 // pred_fallthru
    _
  // Predicated region
  $region114: #{reward_network_forward.1} parent=0 // pred_check
    _
  $region115: #{reward_network_forward.1} parent=0 // pred_check_branch
    %766 = sbr.rel (0) target = $region117
  $region116: #{reward_network_forward.1} parent=0 // pred_region
    %767 = vsyncadd %s598, 8192
  $region117: #{reward_network_forward.1} parent=0 // pred_fallthru
    _
  %s768 = scalar_lea.sflag [#allocation6], 2
  %p770 = scmp.lt.u32.totalorder 256, 8
  %p771 = pneg %p770
  // Predicated region
  $region118: #{reward_network_forward.1} parent=0 // pred_check
    _
  $region119: #{reward_network_forward.1} parent=0 // pred_check_branch
    %773 = sbr.rel (%p770) target = $region121
  $region120: #{reward_network_forward.1} parent=0 // pred_region
    %s789 = sand.u32 256, 7
    %p790 = scmp.eq.s32.totalorder %s789, 0
    // Predicated region
    $region133: #{reward_network_forward.1} parent=120 // pred_check
      %p791 = pneg %p790
    $region134: #{reward_network_forward.1} parent=120 // pred_check_branch
      %793 = sbr.rel (%p791) target = $region136
    $region135: #{reward_network_forward.1} parent=120 // pred_region
      loop: start=0, step=1, limit=1
      $region137: #{reward_network_forward.1} parent=135 // loop_pre_header
        _
      $region138: #{reward_network_forward.1} parent=135 // loop_header
        %s795 = sphi 0, %s799
        %p796 = scmp.ge.s32.totalorder %s795, 1
        %s800 = sphi %s14, %s14
        %s801 = sphi [#allocation5], [#allocation5]
      $region139: #{reward_network_forward.1} parent=135 // loop_header_branch
        %798 = sbr.rel (%p796) target = $region143
      $region140: #{reward_network_forward.1} parent=135 // loop_body
        %v802 = vld [vmem:[%s800] sm:$0xff]
        %803 = vst [vmem:[%s801] sm:$0xff] %v802
        %v804 = vld [vmem:[%s800 + $0x8] sm:$0xff]
        %805 = vst [vmem:[%s801 + $0x8] sm:$0xff] %v804
        %v806 = vld [vmem:[%s800 + $0x10] sm:$0xff]
        %807 = vst [vmem:[%s801 + $0x10] sm:$0xff] %v806
        %v808 = vld [vmem:[%s800 + $0x18] sm:$0xff]
        %809 = vst [vmem:[%s801 + $0x18] sm:$0xff] %v808
        %v810 = vld [vmem:[%s800 + $0x20] sm:$0xff]
        %811 = vst [vmem:[%s801 + $0x20] sm:$0xff] %v810
        %v812 = vld [vmem:[%s800 + $0x28] sm:$0xff]
        %813 = vst [vmem:[%s801 + $0x28] sm:$0xff] %v812
        %v814 = vld [vmem:[%s800 + $0x30] sm:$0xff]
        %815 = vst [vmem:[%s801 + $0x30] sm:$0xff] %v814
        %v816 = vld [vmem:[%s800 + $0x38] sm:$0xff]
        %817 = vst [vmem:[%s801 + $0x38] sm:$0xff] %v816
        %v818 = vld [vmem:[%s800 + $0x40] sm:$0xff]
        %819 = vst [vmem:[%s801 + $0x40] sm:$0xff] %v818
        %v820 = vld [vmem:[%s800 + $0x48] sm:$0xff]
        %821 = vst [vmem:[%s801 + $0x48] sm:$0xff] %v820
        %v822 = vld [vmem:[%s800 + $0x50] sm:$0xff]
        %823 = vst [vmem:[%s801 + $0x50] sm:$0xff] %v822
        %v824 = vld [vmem:[%s800 + $0x58] sm:$0xff]
        %825 = vst [vmem:[%s801 + $0x58] sm:$0xff] %v824
        %v826 = vld [vmem:[%s800 + $0x60] sm:$0xff]
        %827 = vst [vmem:[%s801 + $0x60] sm:$0xff] %v826
        %v828 = vld [vmem:[%s800 + $0x68] sm:$0xff]
        %829 = vst [vmem:[%s801 + $0x68] sm:$0xff] %v828
        %v830 = vld [vmem:[%s800 + $0x70] sm:$0xff]
        %831 = vst [vmem:[%s801 + $0x70] sm:$0xff] %v830
        %v832 = vld [vmem:[%s800 + $0x78] sm:$0xff]
        %833 = vst [vmem:[%s801 + $0x78] sm:$0xff] %v832
        %v834 = vld [vmem:[%s800 + $0x80] sm:$0xff]
        %835 = vst [vmem:[%s801 + $0x80] sm:$0xff] %v834
        %v836 = vld [vmem:[%s800 + $0x88] sm:$0xff]
        %837 = vst [vmem:[%s801 + $0x88] sm:$0xff] %v836
        %v838 = vld [vmem:[%s800 + $0x90] sm:$0xff]
        %839 = vst [vmem:[%s801 + $0x90] sm:$0xff] %v838
        %v840 = vld [vmem:[%s800 + $0x98] sm:$0xff]
        %841 = vst [vmem:[%s801 + $0x98] sm:$0xff] %v840
        %v842 = vld [vmem:[%s800 + $0xa0] sm:$0xff]
        %843 = vst [vmem:[%s801 + $0xa0] sm:$0xff] %v842
        %v844 = vld [vmem:[%s800 + $0xa8] sm:$0xff]
        %845 = vst [vmem:[%s801 + $0xa8] sm:$0xff] %v844
        %v846 = vld [vmem:[%s800 + $0xb0] sm:$0xff]
        %847 = vst [vmem:[%s801 + $0xb0] sm:$0xff] %v846
        %v848 = vld [vmem:[%s800 + $0xb8] sm:$0xff]
        %849 = vst [vmem:[%s801 + $0xb8] sm:$0xff] %v848
        %v850 = vld [vmem:[%s800 + $0xc0] sm:$0xff]
        %851 = vst [vmem:[%s801 + $0xc0] sm:$0xff] %v850
        %v852 = vld [vmem:[%s800 + $0xc8] sm:$0xff]
        %853 = vst [vmem:[%s801 + $0xc8] sm:$0xff] %v852
        %v854 = vld [vmem:[%s800 + $0xd0] sm:$0xff]
        %855 = vst [vmem:[%s801 + $0xd0] sm:$0xff] %v854
        %v856 = vld [vmem:[%s800 + $0xd8] sm:$0xff]
        %857 = vst [vmem:[%s801 + $0xd8] sm:$0xff] %v856
        %v858 = vld [vmem:[%s800 + $0xe0] sm:$0xff]
        %859 = vst [vmem:[%s801 + $0xe0] sm:$0xff] %v858
        %v860 = vld [vmem:[%s800 + $0xe8] sm:$0xff]
        %861 = vst [vmem:[%s801 + $0xe8] sm:$0xff] %v860
        %v862 = vld [vmem:[%s800 + $0xf0] sm:$0xff]
        %863 = vst [vmem:[%s801 + $0xf0] sm:$0xff] %v862
        %v864 = vld [vmem:[%s800 + $0xf8] sm:$0xff]
        %865 = vst [vmem:[%s801 + $0xf8] sm:$0xff] %v864
      $region141: #{reward_network_forward.1} parent=135 // loop_footer
        %s799 = sadd.s32 1, %s795
      $region142: #{reward_network_forward.1} parent=135 // loop_footer_branch
        %794 = sbr.rel target = $region138
      $region143: #{reward_network_forward.1} parent=135 // loop_exit
        _
    $region136: #{reward_network_forward.1} parent=120 // pred_fallthru
      _
    %p866 = pneg %p790
    // Predicated region
    $region144: #{reward_network_forward.1} parent=120 // pred_check
      _
    $region145: #{reward_network_forward.1} parent=120 // pred_check_branch
      %868 = sbr.rel (%p790) target = $region147
    $region146: #{reward_network_forward.1} parent=120 // pred_region
      %s869 = sand.u32 256, 7
    $region147: #{reward_network_forward.1} parent=120 // pred_fallthru
      _
  $region121: #{reward_network_forward.1} parent=0 // pred_fallthru
    _
  // Predicated region
  $region122: #{reward_network_forward.1} parent=0 // pred_check
    %p774 = pneg %p770
  $region123: #{reward_network_forward.1} parent=0 // pred_check_branch
    %776 = sbr.rel (%p774) target = $region125
  $region124: #{reward_network_forward.1} parent=0 // pred_region
    %s777 = sshll.u32 1, 256
    %s778 = ssub.s32 %s777, 1
    loop: start=0, step=1, limit=1
    $region126: #{reward_network_forward.1} parent=124 // loop_pre_header
      _
    $region127: #{reward_network_forward.1} parent=124 // loop_header
      %s780 = sphi 0, %s784
      %p781 = scmp.ge.s32.totalorder %s780, 1
      %s785 = sphi %s14, %s14
      %s786 = sphi [#allocation5], [#allocation5]
    $region128: #{reward_network_forward.1} parent=124 // loop_header_branch
      %783 = sbr.rel (%p781) target = $region132
    $region129: #{reward_network_forward.1} parent=124 // loop_body
      %v787 = vld [vmem:[%s785] sm:%s778]
      %788 = vst [vmem:[%s786] sm:%s778] %v787
    $region130: #{reward_network_forward.1} parent=124 // loop_footer
      %s784 = sadd.s32 1, %s780
    $region131: #{reward_network_forward.1} parent=124 // loop_footer_branch
      %779 = sbr.rel target = $region127
    $region132: #{reward_network_forward.1} parent=124 // loop_exit
      _
  $region125: #{reward_network_forward.1} parent=0 // pred_fallthru
    _
  // Predicated region
  $region148: #{reward_network_forward.1} parent=0 // pred_check
    _
  $region149: #{reward_network_forward.1} parent=0 // pred_check_branch
    %872 = sbr.rel (0) target = $region151
  $region150: #{reward_network_forward.1} parent=0 // pred_region
    %873 = vsyncadd %s768, 4096
  $region151: #{reward_network_forward.1} parent=0 // pred_fallthru
    _
  %v874 = vld [vmem:[%s0] sm:$0xff]
  %v875 = vld [vmem:[%s0 + $0x8] sm:$0xff]
  %v876 = vld [vmem:[%s0 + $0x10] sm:$0xff]
  %v877 = vld [vmem:[%s0 + $0x18] sm:$0xff]
  %v878 = vld [vmem:[%s0 + $0x20] sm:$0xff]
  %v879 = vld [vmem:[%s0 + $0x28] sm:$0xff]
  %v880 = vld [vmem:[%s0 + $0x30] sm:$0xff]
  %v881 = vld [vmem:[%s0 + $0x38] sm:$0xff]
  %v882 = vld [vmem:[%s2] sm:$0xf]
  %v883 = vld [vmem:[%s2 + $0x4] sm:$0xf]
  %v884 = vld [vmem:[%s2 + $0x8] sm:$0xf]
  %v885 = vld [vmem:[%s2 + $0xc] sm:$0xf]
  %v886 = vld [vmem:[%s2 + $0x10] sm:$0xf]
  %v887 = vld [vmem:[%s2 + $0x14] sm:$0xf]
  %v888 = vld [vmem:[%s2 + $0x18] sm:$0xf]
  %v889 = vld [vmem:[%s2 + $0x1c] sm:$0xf]
  %v890 = vld [vmem:[%s2 + $0x20] sm:$0xf]
  %v891 = vld [vmem:[%s2 + $0x24] sm:$0xf]
  %v892 = vld [vmem:[%s2 + $0x28] sm:$0xf]
  %v893 = vld [vmem:[%s2 + $0x2c] sm:$0xf]
  %v894 = vld [vmem:[%s2 + $0x30] sm:$0xf]
  %v895 = vld [vmem:[%s2 + $0x34] sm:$0xf]
  %v896 = vld [vmem:[%s2 + $0x38] sm:$0xf]
  %v897 = vld [vmem:[%s2 + $0x3c] sm:$0xf]
  %v898 = vld [vmem:[%s2 + $0x40] sm:$0xf]
  %v899 = vld [vmem:[%s2 + $0x44] sm:$0xf]
  %v900 = vld [vmem:[%s2 + $0x48] sm:$0xf]
  %v901 = vld [vmem:[%s2 + $0x4c] sm:$0xf]
  %v902 = vld [vmem:[%s2 + $0x50] sm:$0xf]
  %v903 = vld [vmem:[%s2 + $0x54] sm:$0xf]
  %v904 = vld [vmem:[%s2 + $0x58] sm:$0xf]
  %v905 = vld [vmem:[%s2 + $0x5c] sm:$0xf]
  %v906 = vld [vmem:[%s2 + $0x60] sm:$0xf]
  %v907 = vld [vmem:[%s2 + $0x64] sm:$0xf]
  %v908 = vld [vmem:[%s2 + $0x68] sm:$0xf]
  %v909 = vld [vmem:[%s2 + $0x6c] sm:$0xf]
  %v910 = vld [vmem:[%s2 + $0x70] sm:$0xf]
  %v911 = vld [vmem:[%s2 + $0x74] sm:$0xf]
  %v912 = vld [vmem:[%s2 + $0x78] sm:$0xf]
  %v913 = vld [vmem:[%s2 + $0x7c] sm:$0xf]
  %v914 = vld [vmem:[%s2 + $0x80] sm:$0xf]
  %v915 = vld [vmem:[%s2 + $0x84] sm:$0xf]
  %v916 = vld [vmem:[%s2 + $0x88] sm:$0xf]
  %v917 = vld [vmem:[%s2 + $0x8c] sm:$0xf]
  %v918 = vld [vmem:[%s2 + $0x90] sm:$0xf]
  %v919 = vld [vmem:[%s2 + $0x94] sm:$0xf]
  %v920 = vld [vmem:[%s2 + $0x98] sm:$0xf]
  %v921 = vld [vmem:[%s2 + $0x9c] sm:$0xf]
  %v922 = vld [vmem:[%s2 + $0xa0] sm:$0xf]
  %v923 = vld [vmem:[%s2 + $0xa4] sm:$0xf]
  %v924 = vld [vmem:[%s2 + $0xa8] sm:$0xf]
  %v925 = vld [vmem:[%s2 + $0xac] sm:$0xf]
  %v926 = vld [vmem:[%s2 + $0xb0] sm:$0xf]
  %v927 = vld [vmem:[%s2 + $0xb4] sm:$0xf]
  %v928 = vld [vmem:[%s2 + $0xb8] sm:$0xf]
  %v929 = vld [vmem:[%s2 + $0xbc] sm:$0xf]
  %v930 = vld [vmem:[%s2 + $0xc0] sm:$0xf]
  %v931 = vld [vmem:[%s2 + $0xc4] sm:$0xf]
  %v932 = vld [vmem:[%s2 + $0xc8] sm:$0xf]
  %v933 = vld [vmem:[%s2 + $0xcc] sm:$0xf]
  %v934 = vld [vmem:[%s2 + $0xd0] sm:$0xf]
  %v935 = vld [vmem:[%s2 + $0xd4] sm:$0xf]
  %v936 = vld [vmem:[%s3] sm:$0x1]
  %v938 = vlaneseq
  %v939 = vshrl.u32 %v938, 7
  %v940 = vsub.s32 0, %v939
  %v941 = vrot.slane %v936, %v940
  %v951 = vunpack.c.l.b16 %v874
  %v952 = vunpack.c.h.b16 %v874
  %v953 = vunpack.c.l.b16 %v875
  %v954 = vunpack.c.h.b16 %v875
  %v955 = vunpack.c.l.b16 %v876
  %v956 = vunpack.c.h.b16 %v876
  %v957 = vunpack.c.l.b16 %v877
  %v958 = vunpack.c.h.b16 %v877
  %v959 = vunpack.c.l.b16 %v878
  %v960 = vunpack.c.h.b16 %v878
  %v961 = vunpack.c.l.b16 %v879
  %v962 = vunpack.c.h.b16 %v879
  %v963 = vunpack.c.l.b16 %v880
  %v964 = vunpack.c.h.b16 %v880
  %v965 = vunpack.c.l.b16 %v881
  %v966 = vunpack.c.h.b16 %v881
  %v967 = vpack.c.b16 %v955, %v951
  %v968 = vpack.c.b16 %v956, %v952
  %v969 = vpack.c.b16 %v957, %v953
  %v970 = vpack.c.b16 %v958, %v954
  %v971 = vpack.c.b16 %v963, %v959
  %v972 = vpack.c.b16 %v964, %v960
  %v973 = vpack.c.b16 %v965, %v961
  %v974 = vpack.c.b16 %v966, %v962
  %v1035 = vunpack.c.l.b16 %v882
  %v1036 = vunpack.c.l.b16 %v883
  %v1037 = vunpack.c.l.b16 %v884
  %v1038 = vunpack.c.l.b16 %v885
  %v1039 = vunpack.c.l.b16 %v886
  %v1040 = vunpack.c.l.b16 %v887
  %v1041 = vunpack.c.l.b16 %v888
  %v1042 = vunpack.c.l.b16 %v889
  %v1043 = vunpack.c.l.b16 %v890
  %v1044 = vunpack.c.l.b16 %v891
  %v1045 = vunpack.c.l.b16 %v892
  %v1046 = vunpack.c.l.b16 %v893
  %v1047 = vunpack.c.l.b16 %v894
  %v1048 = vunpack.c.l.b16 %v895
  %v1049 = vunpack.c.l.b16 %v896
  %v1050 = vunpack.c.l.b16 %v897
  %v1051 = vunpack.c.l.b16 %v898
  %v1052 = vunpack.c.l.b16 %v899
  %v1053 = vunpack.c.l.b16 %v900
  %v1054 = vunpack.c.l.b16 %v901
  %v1055 = vunpack.c.l.b16 %v902
  %v1056 = vunpack.c.l.b16 %v903
  %v1057 = vunpack.c.l.b16 %v904
  %v1058 = vunpack.c.l.b16 %v905
  %v1059 = vunpack.c.l.b16 %v906
  %v1060 = vunpack.c.l.b16 %v907
  %v1061 = vunpack.c.l.b16 %v908
  %v1062 = vunpack.c.l.b16 %v909
  %v1063 = vunpack.c.l.b16 %v910
  %v1064 = vunpack.c.l.b16 %v911
  %v1065 = vunpack.c.l.b16 %v912
  %v1066 = vunpack.c.l.b16 %v913
  %v1067 = vunpack.c.l.b16 %v914
  %v1068 = vunpack.c.l.b16 %v915
  %v1069 = vunpack.c.l.b16 %v916
  %v1070 = vunpack.c.l.b16 %v917
  %v1071 = vunpack.c.l.b16 %v918
  %v1072 = vunpack.c.l.b16 %v919
  %v1073 = vunpack.c.l.b16 %v920
  %v1074 = vunpack.c.l.b16 %v921
  %v1075 = vunpack.c.l.b16 %v922
  %v1076 = vunpack.c.l.b16 %v923
  %v1077 = vunpack.c.l.b16 %v924
  %v1078 = vunpack.c.l.b16 %v925
  %v1079 = vunpack.c.l.b16 %v926
  %v1080 = vunpack.c.l.b16 %v927
  %v1081 = vunpack.c.l.b16 %v928
  %v1082 = vunpack.c.l.b16 %v929
  %v1083 = vunpack.c.l.b16 %v930
  %v1084 = vunpack.c.l.b16 %v931
  %v1085 = vunpack.c.l.b16 %v932
  %v1086 = vunpack.c.l.b16 %v933
  %v1087 = vunpack.c.l.b16 %v934
  %v1088 = vunpack.c.l.b16 %v935
  %v1089 = vpack.c.b16 %v1036, %v1035
  %v1090 = vpack.c.b16 %v1038, %v1037
  %v1091 = vpack.c.b16 %v1040, %v1039
  %v1092 = vpack.c.b16 %v1042, %v1041
  %v1093 = vpack.c.b16 %v1044, %v1043
  %v1094 = vpack.c.b16 %v1046, %v1045
  %v1095 = vpack.c.b16 %v1048, %v1047
  %v1096 = vpack.c.b16 %v1050, %v1049
  %v1097 = vpack.c.b16 %v1052, %v1051
  %v1098 = vpack.c.b16 %v1054, %v1053
  %v1099 = vpack.c.b16 %v1056, %v1055
  %v1100 = vpack.c.b16 %v1058, %v1057
  %v1101 = vpack.c.b16 %v1060, %v1059
  %v1102 = vpack.c.b16 %v1062, %v1061
  %v1103 = vpack.c.b16 %v1064, %v1063
  %v1104 = vpack.c.b16 %v1066, %v1065
  %v1105 = vpack.c.b16 %v1068, %v1067
  %v1106 = vpack.c.b16 %v1070, %v1069
  %v1107 = vpack.c.b16 %v1072, %v1071
  %v1108 = vpack.c.b16 %v1074, %v1073
  %v1109 = vpack.c.b16 %v1076, %v1075
  %v1110 = vpack.c.b16 %v1078, %v1077
  %v1111 = vpack.c.b16 %v1080, %v1079
  %v1112 = vpack.c.b16 %v1082, %v1081
  %v1113 = vpack.c.b16 %v1084, %v1083
  %v1114 = vpack.c.b16 %v1086, %v1085
  %v1115 = vpack.c.b16 %v1088, %v1087
  %vm1143 = vcmask 392192
  %v1145 = vsel %vm1143, %v970, 0
  %v1148 = vsel %vm1143, %v974, 0
  %1150 = vmatprep.subr.bf16.mxu0 0
  %1151 = vmatpush1.bf16.msra.mxu0 %v1096
  %1152 = vmatprep.subr.bf16.mxu0 0
  %1153 = vmatpush1.bf16.msra.mxu0 %v1095
  %1154 = vmatprep.subr.bf16.mxu0 0
  %1155 = vmatpush1.bf16.msra.mxu0 %v1094
  %1156 = vmatprep.subr.bf16.mxu0 0
  %1157 = vmatpush1.bf16.msra.mxu0 %v1093
  %1158 = vmatprep.subr.bf16.mxu0 0
  %1159 = vmatpush1.bf16.msra.mxu0 %v1092
  %1160 = vmatprep.subr.bf16.mxu0 0
  %1161 = vmatpush1.bf16.msra.mxu0 %v1091
  %1162 = vmatprep.subr.bf16.mxu0 0
  %1163 = vmatpush1.bf16.msra.mxu0 %v1090
  %1164 = vmatprep.subr.bf16.mxu0 0
  %1165 = vmatpush1.bf16.msra.mxu0 %v1089
  %1166 = vmatprep.subr.bf16.mxu0 0
  %1167 = vmatpush2.bf16.msra.mxu0 %v1104
  %1168 = vmatprep.subr.bf16.mxu0 0
  %1169 = vmatpush2.bf16.msra.mxu0 %v1103
  %1170 = vmatprep.subr.bf16.mxu0 0
  %1171 = vmatpush2.bf16.msra.mxu0 %v1102
  %1172 = vmatprep.subr.bf16.mxu0 0
  %1173 = vmatpush2.bf16.msra.mxu0 %v1101
  %1174 = vmatprep.subr.bf16.mxu0 0
  %1175 = vmatpush2.bf16.msra.mxu0 %v1100
  %1176 = vmatprep.subr.bf16.mxu0 0
  %1177 = vmatpush2.bf16.msra.mxu0 %v1099
  %1178 = vmatprep.subr.bf16.mxu0 0
  %1179 = vmatpush2.bf16.msra.mxu0 %v1098
  %1180 = vmatprep.subr.bf16.mxu0 0
  %1181 = vmatpush2.bf16.msra.mxu0 %v1097
  %1182 = vmatprep.mubr.bf16.mxu0 %v968
  %1183 = vmatmul.mubr.bf16.gmra.mxu0 %v967
  %v1184 = vpop.f32.mrf.mxu0
  %v1185 = vadd.f32 %v941, %v1184
  %v1186 = vpop.f32.mrf.mxu0
  %v1187 = vpop.f32.mrf.mxu0
  %v1188 = vadd.f32 %v941, %v1187
  %v1189 = vpop.f32.mrf.mxu0
  %1190 = vmatprep.mubr.bf16.mxu0 %v972
  %1191 = vmatmul.mubr.bf16.gmra.mxu0 %v971
  %v1192 = vpop.f32.mrf.mxu0
  %v1193 = vadd.f32 %v941, %v1192
  %v1194 = vpop.f32.mrf.mxu0
  %v1195 = vpop.f32.mrf.mxu0
  %v1196 = vadd.f32 %v941, %v1195
  %v1197 = vpop.f32.mrf.mxu0
  %1198 = vdwg.mxu0
  %1199 = vmatprep.subr.bf16.mxu0 0
  %1200 = vmatpush1.bf16.msra.mxu0 %v1112
  %1201 = vmatprep.subr.bf16.mxu0 0
  %1202 = vmatpush1.bf16.msra.mxu0 %v1111
  %1203 = vmatprep.subr.bf16.mxu0 0
  %1204 = vmatpush1.bf16.msra.mxu0 %v1110
  %1205 = vmatprep.subr.bf16.mxu0 0
  %1206 = vmatpush1.bf16.msra.mxu0 %v1109
  %1207 = vmatprep.subr.bf16.mxu0 0
  %1208 = vmatpush1.bf16.msra.mxu0 %v1108
  %1209 = vmatprep.subr.bf16.mxu0 0
  %1210 = vmatpush1.bf16.msra.mxu0 %v1107
  %1211 = vmatprep.subr.bf16.mxu0 0
  %1212 = vmatpush1.bf16.msra.mxu0 %v1106
  %1213 = vmatprep.subr.bf16.mxu0 0
  %1214 = vmatpush1.bf16.msra.mxu0 %v1105
  %1215 = vmatprep.subr.bf16.mxu0 0
  %1216 = vmatpush2.bf16.msra.mxu0 0
  %1217 = vmatprep.subr.bf16.mxu0 0
  %1218 = vmatpush2.bf16.msra.mxu0 0
  %1219 = vmatprep.subr.bf16.mxu0 0
  %1220 = vmatpush2.bf16.msra.mxu0 0
  %1221 = vmatprep.subr.bf16.mxu0 0
  %1222 = vmatpush2.bf16.msra.mxu0 0
  %1223 = vmatprep.subr.bf16.mxu0 0
  %1224 = vmatpush2.bf16.msra.mxu0 0
  %1225 = vmatprep.subr.bf16.mxu0 0
  %1226 = vmatpush2.bf16.msra.mxu0 %v1115
  %1227 = vmatprep.subr.bf16.mxu0 0
  %1228 = vmatpush2.bf16.msra.mxu0 %v1114
  %1229 = vmatprep.subr.bf16.mxu0 0
  %1230 = vmatpush2.bf16.msra.mxu0 %v1113
  %1231 = vmatprep.mubr.bf16.mxu0 %v1145
  %1232 = vmatmul.mubr.bf16.gmra.mxu0 %v969
  %v1233 = vpop.f32.mrf.mxu0
  %v1234 = vadd.f32 %v1185, %v1233
  %v1235 = vpop.f32.mrf.mxu0
  %v1236 = vpop.f32.mrf.mxu0
  %v1237 = vadd.f32 %v1188, %v1236
  %v1238 = vpop.f32.mrf.mxu0
  %1239 = vmatprep.mubr.bf16.mxu0 %v1148
  %1240 = vmatmul.mubr.bf16.gmra.mxu0 %v973
  %v1241 = vpop.f32.mrf.mxu0
  %v1242 = vadd.f32 %v1193, %v1241
  %v1243 = vpop.f32.mrf.mxu0
  %v1244 = vpop.f32.mrf.mxu0
  %v1245 = vadd.f32 %v1196, %v1244
  %v1246 = vpop.f32.mrf.mxu0
  %1247 = vdwg.mxu0
  %v1248 = vmax.f32 %v1234, 0.0
  %v1249 = vmax.f32 %v1237, 0.0
  %v1250 = vmax.f32 %v1242, 0.0
  %v1251 = vmax.f32 %v1245, 0.0
  %v1252 = vpack.c.bf16 %v1249, %v1248
  %v1253 = vpack.c.bf16 %v1251, %v1250
  %1254 = vst [vmem:[#allocation2] sm:$0xf] 0
  %1255 = vst [vmem:[#allocation2 + $0x4] sm:$0xf] 0
  %1256 = vst [vmem:[#allocation2 + $0x8] sm:$0xf] 0
  %1257 = vst [vmem:[#allocation2 + $0xc] sm:$0x3] 0
  %1258 = vst [vmem:[#allocation2 + $0x10] sm:$0x4] 0
  %1259 = vst [vmem:[#allocation2 + $0x14] sm:$0x8] 0
  %1260 = vst [vmem:[#allocation2 + $0x1c] sm:$0x1] 0
  %v1262 = vunpack.c.l.b16 %v1252
  %v1263 = vpack.c.b16 %v1262, %v1262
  %v1264 = vrot.slane %v1263, 6
  %v1265 = vrot.slane %v1264, 4
  %1268 = vst [vmem:[#allocation2 + $0xc] sm:$0xc] %v1264
  %1269 = vst [vmem:[#allocation2 + $0x10] sm:$0x3] %v1265
  %v1270 = vunpack.c.h.b16 %v1252
  %v1271 = vpack.c.b16 %v1270, %v1270
  %v1272 = vrot.slane %v1271, 5
  %v1273 = vrot.slane %v1272, 4
  %1276 = vst [vmem:[#allocation2 + $0x10] sm:$0x8] %v1272
  %1277 = vst [vmem:[#allocation2 + $0x14] sm:$0x7] %v1273
  %1278 = vst [vmem:[#allocation2 + $0x18] sm:$0xf] %v1253
  %v1280 = vunpack.c.h.b16 %v1253
  %v1281 = vpack.c.b16 %v1280, %v1280
  %v1282 = vrot.slane %v1281, 7
  %v1283 = vrot.slane %v1282, 4
  %1286 = vst [vmem:[#allocation2 + $0x1c] sm:$0xe] %v1282
  %1287 = vst [vmem:[#allocation2 + $0x20] sm:$0x1] %v1283
  %v1288 = vld [vmem:[#allocation2] sm:$0xc]
  %v1289 = vld [vmem:[#allocation2 + $0x4] sm:$0xf]
  %v1290 = vld [vmem:[#allocation2 + $0x8] sm:$0xf]
  %v1291 = vld [vmem:[#allocation2 + $0xc] sm:$0xf]
  %v1292 = vld [vmem:[#allocation2 + $0x10] sm:$0xf]
  %v1293 = vld [vmem:[#allocation2 + $0x14] sm:$0xf]
  %v1294 = vld [vmem:[#allocation2 + $0x18] sm:$0x7]
  %v1295 = vld [vmem:[#allocation2] sm:$0x8]
  %v1296 = vld [vmem:[#allocation2 + $0x18] sm:$0xf]
  %v1297 = vld [vmem:[#allocation2 + $0x4] sm:$0x8]
  %v1298 = vld [vmem:[#allocation2 + $0x1c] sm:$0xf]
  %v1299 = vld [vmem:[#allocation2 + $0x20] sm:$0x1]
  %v1307 = vunpack.c.l.b16 %v1288
  %v1308 = vunpack.c.l.b16 %v1289
  %v1309 = vunpack.c.l.b16 %v1290
  %v1310 = vunpack.c.l.b16 %v1291
  %v1311 = vunpack.c.l.b16 %v1292
  %v1312 = vunpack.c.l.b16 %v1293
  %v1313 = vunpack.c.l.b16 %v1294
  %v1314 = vpack.c.b16 %v1308, %v1307
  %v1315 = vpack.c.b16 %v1310, %v1309
  %v1316 = vpack.c.b16 %v1312, %v1311
  %v1317 = vpack.c.b16 %v1313, %v1313
  %v1320 = vunpack.c.l.b16 %v1295
  %v1321 = vunpack.c.l.b16 %v1296
  %v1322 = vpack.c.b16 %v1308, %v1320
  %v1323 = vpack.c.b16 %v1321, %v1321
  %vm1324 = vcmask 1046528
  %v1325 = vrot.slane %v1322, 1
  %v1326 = vrot.slane %v1315, 1
  %v1327 = vsel %vm1324, %v1325, %v1326
  %v1328 = vrot.slane %v1316, 1
  %v1329 = vsel %vm1324, %v1326, %v1328
  %v1330 = vrot.slane %v1323, 1
  %v1331 = vsel %vm1324, %v1328, %v1330
  %v1334 = vunpack.c.l.b16 %v1297
  %v1335 = vunpack.c.l.b16 %v1298
  %v1336 = vpack.c.b16 %v1309, %v1334
  %v1337 = vpack.c.b16 %v1311, %v1310
  %v1338 = vpack.c.b16 %v1321, %v1312
  %v1339 = vpack.c.b16 %v1335, %v1335
  %v1340 = vrot.slane %v1336, 1
  %v1341 = vrot.slane %v1337, 1
  %v1342 = vsel %vm1324, %v1340, %v1341
  %v1343 = vrot.slane %v1338, 1
  %v1344 = vsel %vm1324, %v1341, %v1343
  %v1345 = vrot.slane %v1339, 1
  %v1346 = vsel %vm1324, %v1343, %v1345
  %v1348 = vunpack.c.l.b16 %v1299
  %v1349 = vpack.c.b16 %v1335, %v1321
  %v1350 = vpack.c.b16 %v1348, %v1348
  %vm1351 = vcmask 1041408
  %v1352 = vrot.slane %v1315, 6
  %v1353 = vrot.slane %v1316, 6
  %v1354 = vsel %vm1351, %v1352, %v1353
  %v1355 = vrot.slane %v1349, 6
  %v1356 = vsel %vm1351, %v1353, %v1355
  %v1357 = vrot.slane %v1350, 6
  %v1358 = vsel %vm1351, %v1355, %v1357
  %v1359 = vld [vmem:[%s4] sm:$0xf]
  %v1360 = vld [vmem:[%s4 + $0x4] sm:$0xf]
  %v1361 = vld [vmem:[%s4 + $0x8] sm:$0xf]
  %v1362 = vld [vmem:[%s4 + $0xc] sm:$0xf]
  %v1363 = vld [vmem:[%s4 + $0x10] sm:$0xf]
  %v1364 = vld [vmem:[%s4 + $0x14] sm:$0xf]
  %v1365 = vld [vmem:[%s4 + $0x18] sm:$0xf]
  %v1366 = vld [vmem:[%s4 + $0x1c] sm:$0xf]
  %v1367 = vld [vmem:[%s4 + $0x20] sm:$0xf]
  %v1368 = vld [vmem:[%s4 + $0x24] sm:$0xf]
  %v1369 = vld [vmem:[%s4 + $0x28] sm:$0xf]
  %v1370 = vld [vmem:[%s4 + $0x2c] sm:$0xf]
  %v1371 = vld [vmem:[%s4 + $0x30] sm:$0xf]
  %v1372 = vld [vmem:[%s4 + $0x34] sm:$0xf]
  %v1373 = vld [vmem:[%s4 + $0x38] sm:$0xf]
  %v1374 = vld [vmem:[%s4 + $0x3c] sm:$0xf]
  %v1375 = vld [vmem:[%s4 + $0x40] sm:$0xf]
  %v1376 = vld [vmem:[%s4 + $0x44] sm:$0xf]
  %v1377 = vld [vmem:[%s4 + $0x48] sm:$0xf]
  %v1378 = vld [vmem:[%s4 + $0x4c] sm:$0xf]
  %v1379 = vld [vmem:[%s4 + $0x50] sm:$0xf]
  %v1380 = vld [vmem:[%s4 + $0x54] sm:$0xf]
  %v1381 = vld [vmem:[%s4 + $0x58] sm:$0xf]
  %v1382 = vld [vmem:[%s4 + $0x5c] sm:$0xf]
  %v1383 = vld [vmem:[%s4 + $0x60] sm:$0xf]
  %v1384 = vld [vmem:[%s4 + $0x64] sm:$0xf]
  %v1385 = vld [vmem:[%s4 + $0x68] sm:$0xf]
  %v1386 = vld [vmem:[%s4 + $0x6c] sm:$0xf]
  %v1387 = vld [vmem:[%s4 + $0x70] sm:$0xf]
  %v1388 = vld [vmem:[%s4 + $0x74] sm:$0xf]
  %v1389 = vld [vmem:[%s4 + $0x78] sm:$0xf]
  %v1390 = vld [vmem:[%s4 + $0x7c] sm:$0xf]
  %v1391 = vld [vmem:[%s4 + $0x80] sm:$0xf]
  %v1392 = vld [vmem:[%s4 + $0x84] sm:$0xf]
  %v1393 = vld [vmem:[%s4 + $0x88] sm:$0xf]
  %v1394 = vld [vmem:[%s4 + $0x8c] sm:$0xf]
  %v1395 = vld [vmem:[%s4 + $0x90] sm:$0xf]
  %v1396 = vld [vmem:[%s4 + $0x94] sm:$0xf]
  %v1397 = vld [vmem:[%s4 + $0x98] sm:$0xf]
  %v1398 = vld [vmem:[%s4 + $0x9c] sm:$0xf]
  %v1399 = vld [vmem:[%s4 + $0xa0] sm:$0xf]
  %v1400 = vld [vmem:[%s4 + $0xa4] sm:$0xf]
  %v1401 = vld [vmem:[%s4 + $0xa8] sm:$0xf]
  %v1402 = vld [vmem:[%s4 + $0xac] sm:$0xf]
  %v1403 = vld [vmem:[%s4 + $0xb0] sm:$0xf]
  %v1404 = vld [vmem:[%s4 + $0xb4] sm:$0xf]
  %v1405 = vld [vmem:[%s4 + $0xb8] sm:$0xf]
  %v1406 = vld [vmem:[%s4 + $0xbc] sm:$0xf]
  %v1407 = vld [vmem:[%s4 + $0xc0] sm:$0xf]
  %v1408 = vld [vmem:[%s4 + $0xc4] sm:$0xf]
  %v1409 = vld [vmem:[%s4 + $0xc8] sm:$0xf]
  %v1410 = vld [vmem:[%s4 + $0xcc] sm:$0xf]
  %v1411 = vld [vmem:[%s4 + $0xd0] sm:$0xf]
  %v1412 = vld [vmem:[%s4 + $0xd4] sm:$0xf]
  %v1413 = vld [vmem:[%s4 + $0xd8] sm:$0xf]
  %v1414 = vld [vmem:[%s4 + $0xdc] sm:$0xf]
  %v1415 = vld [vmem:[%s4 + $0xe0] sm:$0xf]
  %v1416 = vld [vmem:[%s4 + $0xe4] sm:$0xf]
  %v1417 = vld [vmem:[%s4 + $0xe8] sm:$0xf]
  %v1418 = vld [vmem:[%s4 + $0xec] sm:$0xf]
  %v1419 = vld [vmem:[%s4 + $0xf0] sm:$0xf]
  %v1420 = vld [vmem:[%s4 + $0xf4] sm:$0xf]
  %v1421 = vld [vmem:[%s4 + $0xf8] sm:$0xf]
  %v1422 = vld [vmem:[%s4 + $0xfc] sm:$0xf]
  %v1423 = vld [vmem:[%s5] sm:$0x1]
  %v1425 = vlaneseq
  %v1426 = vshrl.u32 %v1425, 7
  %v1427 = vsub.s32 0, %v1426
  %v1428 = vrot.slane %v1423, %v1427
  %vm1430 = vcmask 1045504
  %v1431 = vrot.slane %v1314, 2
  %v1432 = vrot.slane %v1315, 2
  %v1433 = vsel %vm1430, %v1431, %v1432
  %v1434 = vrot.slane %v1327, 2
  %v1435 = vrot.slane %v1329, 2
  %v1436 = vsel %vm1430, %v1434, %v1435
  %v1437 = vrot.slane %v1342, 2
  %v1438 = vrot.slane %v1344, 2
  %v1439 = vsel %vm1430, %v1437, %v1438
  %v1440 = vrot.slane %v1352, 2
  %v1441 = vrot.slane %v1354, 2
  %v1442 = vsel %vm1430, %v1440, %v1441
  %v1443 = vrot.slane %v1316, 2
  %v1444 = vsel %vm1430, %v1432, %v1443
  %v1445 = vrot.slane %v1331, 2
  %v1446 = vsel %vm1430, %v1435, %v1445
  %v1447 = vrot.slane %v1346, 2
  %v1448 = vsel %vm1430, %v1438, %v1447
  %v1449 = vrot.slane %v1356, 2
  %v1450 = vsel %vm1430, %v1441, %v1449
  %v1451 = vrot.slane %v1317, 2
  %v1452 = vsel %vm1430, %v1443, %v1451
  %v1453 = vrot.slane %v1330, 2
  %v1454 = vsel %vm1430, %v1445, %v1453
  %v1455 = vrot.slane %v1345, 2
  %v1456 = vsel %vm1430, %v1447, %v1455
  %v1457 = vrot.slane %v1358, 2
  %v1458 = vsel %vm1430, %v1449, %v1457
  %v1539 = vunpack.c.l.b16 %v1359
  %v1540 = vunpack.c.l.b16 %v1360
  %v1541 = vunpack.c.l.b16 %v1361
  %v1542 = vunpack.c.l.b16 %v1362
  %v1543 = vunpack.c.l.b16 %v1363
  %v1544 = vunpack.c.l.b16 %v1364
  %v1545 = vunpack.c.l.b16 %v1365
  %v1546 = vunpack.c.l.b16 %v1366
  %v1547 = vunpack.c.l.b16 %v1367
  %v1548 = vunpack.c.l.b16 %v1368
  %v1549 = vunpack.c.l.b16 %v1369
  %v1550 = vunpack.c.l.b16 %v1370
  %v1551 = vunpack.c.l.b16 %v1371
  %v1552 = vunpack.c.l.b16 %v1372
  %v1553 = vunpack.c.l.b16 %v1373
  %v1554 = vunpack.c.l.b16 %v1374
  %v1555 = vunpack.c.l.b16 %v1375
  %v1556 = vunpack.c.l.b16 %v1376
  %v1557 = vunpack.c.l.b16 %v1377
  %v1558 = vunpack.c.l.b16 %v1378
  %v1559 = vunpack.c.l.b16 %v1379
  %v1560 = vunpack.c.l.b16 %v1380
  %v1561 = vunpack.c.l.b16 %v1381
  %v1562 = vunpack.c.l.b16 %v1382
  %v1563 = vunpack.c.l.b16 %v1383
  %v1564 = vunpack.c.l.b16 %v1384
  %v1565 = vunpack.c.l.b16 %v1385
  %v1566 = vunpack.c.l.b16 %v1386
  %v1567 = vunpack.c.l.b16 %v1387
  %v1568 = vunpack.c.l.b16 %v1388
  %v1569 = vunpack.c.l.b16 %v1389
  %v1570 = vunpack.c.l.b16 %v1390
  %v1571 = vunpack.c.l.b16 %v1391
  %v1572 = vunpack.c.l.b16 %v1392
  %v1573 = vunpack.c.l.b16 %v1393
  %v1574 = vunpack.c.l.b16 %v1394
  %v1575 = vunpack.c.l.b16 %v1395
  %v1576 = vunpack.c.l.b16 %v1396
  %v1577 = vunpack.c.l.b16 %v1397
  %v1578 = vunpack.c.l.b16 %v1398
  %v1579 = vunpack.c.l.b16 %v1399
  %v1580 = vunpack.c.l.b16 %v1400
  %v1581 = vunpack.c.l.b16 %v1401
  %v1582 = vunpack.c.l.b16 %v1402
  %v1583 = vunpack.c.l.b16 %v1403
  %v1584 = vunpack.c.l.b16 %v1404
  %v1585 = vunpack.c.l.b16 %v1405
  %v1586 = vunpack.c.l.b16 %v1406
  %v1587 = vunpack.c.l.b16 %v1407
  %v1588 = vunpack.c.l.b16 %v1408
  %v1589 = vunpack.c.l.b16 %v1409
  %v1590 = vunpack.c.l.b16 %v1410
  %v1591 = vunpack.c.l.b16 %v1411
  %v1592 = vunpack.c.l.b16 %v1412
  %v1593 = vunpack.c.l.b16 %v1413
  %v1594 = vunpack.c.l.b16 %v1414
  %v1595 = vunpack.c.l.b16 %v1415
  %v1596 = vunpack.c.l.b16 %v1416
  %v1597 = vunpack.c.l.b16 %v1417
  %v1598 = vunpack.c.l.b16 %v1418
  %v1599 = vunpack.c.l.b16 %v1419
  %v1600 = vunpack.c.l.b16 %v1420
  %v1601 = vunpack.c.l.b16 %v1421
  %v1602 = vunpack.c.l.b16 %v1422
  %v1603 = vpack.c.b16 %v1540, %v1539
  %v1604 = vpack.c.b16 %v1542, %v1541
  %v1605 = vpack.c.b16 %v1544, %v1543
  %v1606 = vpack.c.b16 %v1546, %v1545
  %v1607 = vpack.c.b16 %v1548, %v1547
  %v1608 = vpack.c.b16 %v1550, %v1549
  %v1609 = vpack.c.b16 %v1552, %v1551
  %v1610 = vpack.c.b16 %v1554, %v1553
  %v1611 = vpack.c.b16 %v1556, %v1555
  %v1612 = vpack.c.b16 %v1558, %v1557
  %v1613 = vpack.c.b16 %v1560, %v1559
  %v1614 = vpack.c.b16 %v1562, %v1561
  %v1615 = vpack.c.b16 %v1564, %v1563
  %v1616 = vpack.c.b16 %v1566, %v1565
  %v1617 = vpack.c.b16 %v1568, %v1567
  %v1618 = vpack.c.b16 %v1570, %v1569
  %v1619 = vpack.c.b16 %v1572, %v1571
  %v1620 = vpack.c.b16 %v1574, %v1573
  %v1621 = vpack.c.b16 %v1576, %v1575
  %v1622 = vpack.c.b16 %v1578, %v1577
  %v1623 = vpack.c.b16 %v1580, %v1579
  %v1624 = vpack.c.b16 %v1582, %v1581
  %v1625 = vpack.c.b16 %v1584, %v1583
  %v1626 = vpack.c.b16 %v1586, %v1585
  %v1627 = vpack.c.b16 %v1588, %v1587
  %v1628 = vpack.c.b16 %v1590, %v1589
  %v1629 = vpack.c.b16 %v1592, %v1591
  %v1630 = vpack.c.b16 %v1594, %v1593
  %v1631 = vpack.c.b16 %v1596, %v1595
  %v1632 = vpack.c.b16 %v1598, %v1597
  %v1633 = vpack.c.b16 %v1600, %v1599
  %v1634 = vpack.c.b16 %v1602, %v1601
  %1667 = vmatprep.subr.bf16.mxu0 0
  %1668 = vmatpush1.bf16.msra.mxu0 %v1610
  %1669 = vmatprep.subr.bf16.mxu0 0
  %1670 = vmatpush1.bf16.msra.mxu0 %v1609
  %1671 = vmatprep.subr.bf16.mxu0 0
  %1672 = vmatpush1.bf16.msra.mxu0 %v1608
  %1673 = vmatprep.subr.bf16.mxu0 0
  %1674 = vmatpush1.bf16.msra.mxu0 %v1607
  %1675 = vmatprep.subr.bf16.mxu0 0
  %1676 = vmatpush1.bf16.msra.mxu0 %v1606
  %1677 = vmatprep.subr.bf16.mxu0 0
  %1678 = vmatpush1.bf16.msra.mxu0 %v1605
  %1679 = vmatprep.subr.bf16.mxu0 0
  %1680 = vmatpush1.bf16.msra.mxu0 %v1604
  %1681 = vmatprep.subr.bf16.mxu0 0
  %1682 = vmatpush1.bf16.msra.mxu0 %v1603
  %1683 = vmatprep.subr.bf16.mxu0 0
  %1684 = vmatpush2.bf16.msra.mxu0 %v1618
  %1685 = vmatprep.subr.bf16.mxu0 0
  %1686 = vmatpush2.bf16.msra.mxu0 %v1617
  %1687 = vmatprep.subr.bf16.mxu0 0
  %1688 = vmatpush2.bf16.msra.mxu0 %v1616
  %1689 = vmatprep.subr.bf16.mxu0 0
  %1690 = vmatpush2.bf16.msra.mxu0 %v1615
  %1691 = vmatprep.subr.bf16.mxu0 0
  %1692 = vmatpush2.bf16.msra.mxu0 %v1614
  %1693 = vmatprep.subr.bf16.mxu0 0
  %1694 = vmatpush2.bf16.msra.mxu0 %v1613
  %1695 = vmatprep.subr.bf16.mxu0 0
  %1696 = vmatpush2.bf16.msra.mxu0 %v1612
  %1697 = vmatprep.subr.bf16.mxu0 0
  %1698 = vmatpush2.bf16.msra.mxu0 %v1611
  %1699 = vmatprep.mubr.bf16.mxu0 %v1436
  %1700 = vmatmul.mubr.bf16.gmra.mxu0 %v1433
  %v1701 = vpop.f32.mrf.mxu0
  %v1702 = vpop.f32.mrf.mxu0
  %v1703 = vpop.f32.mrf.mxu0
  %v1704 = vadd.f32 %v1428, %v1703
  %v1705 = vpop.f32.mrf.mxu0
  %1706 = vmatprep.mubr.bf16.mxu0 %v1446
  %1707 = vmatmul.mubr.bf16.gmra.mxu0 %v1444
  %v1708 = vpop.f32.mrf.mxu0
  %v1709 = vadd.f32 %v1428, %v1708
  %v1710 = vpop.f32.mrf.mxu0
  %v1711 = vpop.f32.mrf.mxu0
  %v1712 = vadd.f32 %v1428, %v1711
  %v1713 = vpop.f32.mrf.mxu0
  %1714 = vmatprep.mubr.bf16.mxu0 %v1454
  %1715 = vmatmul.mubr.bf16.gmra.mxu0 %v1452
  %v1716 = vpop.f32.mrf.mxu0
  %v1717 = vadd.f32 %v1428, %v1716
  %v1718 = vpop.f32.mrf.mxu0
  %v1719 = vpop.f32.mrf.mxu0
  %v1720 = vadd.f32 %v1428, %v1719
  %v1721 = vpop.f32.mrf.mxu0
  %1722 = vmatprep.mubr.bf16.mxu0 %v1453
  %1723 = vmatmul.mubr.bf16.gmra.mxu0 %v1451
  %v1724 = vpop.f32.mrf.mxu0
  %v1725 = vadd.f32 %v1428, %v1724
  %v1726 = vpop.f32.mrf.mxu0
  %v1727 = vpop.f32.mrf.mxu0
  %v1728 = vpop.f32.mrf.mxu0
  %1729 = vdwg.mxu0
  %1730 = vmatprep.subr.bf16.mxu0 0
  %1731 = vmatpush1.bf16.msra.mxu0 %v1626
  %1732 = vmatprep.subr.bf16.mxu0 0
  %1733 = vmatpush1.bf16.msra.mxu0 %v1625
  %1734 = vmatprep.subr.bf16.mxu0 0
  %1735 = vmatpush1.bf16.msra.mxu0 %v1624
  %1736 = vmatprep.subr.bf16.mxu0 0
  %1737 = vmatpush1.bf16.msra.mxu0 %v1623
  %1738 = vmatprep.subr.bf16.mxu0 0
  %1739 = vmatpush1.bf16.msra.mxu0 %v1622
  %1740 = vmatprep.subr.bf16.mxu0 0
  %1741 = vmatpush1.bf16.msra.mxu0 %v1621
  %1742 = vmatprep.subr.bf16.mxu0 0
  %1743 = vmatpush1.bf16.msra.mxu0 %v1620
  %1744 = vmatprep.subr.bf16.mxu0 0
  %1745 = vmatpush1.bf16.msra.mxu0 %v1619
  %1746 = vmatprep.subr.bf16.mxu0 0
  %1747 = vmatpush2.bf16.msra.mxu0 %v1634
  %1748 = vmatprep.subr.bf16.mxu0 0
  %1749 = vmatpush2.bf16.msra.mxu0 %v1633
  %1750 = vmatprep.subr.bf16.mxu0 0
  %1751 = vmatpush2.bf16.msra.mxu0 %v1632
  %1752 = vmatprep.subr.bf16.mxu0 0
  %1753 = vmatpush2.bf16.msra.mxu0 %v1631
  %1754 = vmatprep.subr.bf16.mxu0 0
  %1755 = vmatpush2.bf16.msra.mxu0 %v1630
  %1756 = vmatprep.subr.bf16.mxu0 0
  %1757 = vmatpush2.bf16.msra.mxu0 %v1629
  %1758 = vmatprep.subr.bf16.mxu0 0
  %1759 = vmatpush2.bf16.msra.mxu0 %v1628
  %1760 = vmatprep.subr.bf16.mxu0 0
  %1761 = vmatpush2.bf16.msra.mxu0 %v1627
  %1762 = vmatprep.mubr.bf16.mxu0 %v1442
  %1763 = vmatmul.mubr.bf16.gmra.mxu0 %v1439
  %v1764 = vpop.f32.mrf.mxu0
  %v1765 = vpop.f32.mrf.mxu0
  %v1766 = vpop.f32.mrf.mxu0
  %v1767 = vadd.f32 %v1704, %v1766
  %v1768 = vpop.f32.mrf.mxu0
  %1769 = vmatprep.mubr.bf16.mxu0 %v1450
  %1770 = vmatmul.mubr.bf16.gmra.mxu0 %v1448
  %v1771 = vpop.f32.mrf.mxu0
  %v1772 = vadd.f32 %v1709, %v1771
  %v1773 = vpop.f32.mrf.mxu0
  %v1774 = vpop.f32.mrf.mxu0
  %v1775 = vadd.f32 %v1712, %v1774
  %v1776 = vpop.f32.mrf.mxu0
  %1777 = vmatprep.mubr.bf16.mxu0 %v1458
  %1778 = vmatmul.mubr.bf16.gmra.mxu0 %v1456
  %v1779 = vpop.f32.mrf.mxu0
  %v1780 = vadd.f32 %v1717, %v1779
  %v1781 = vpop.f32.mrf.mxu0
  %v1782 = vpop.f32.mrf.mxu0
  %v1783 = vadd.f32 %v1720, %v1782
  %v1784 = vpop.f32.mrf.mxu0
  %1785 = vmatprep.mubr.bf16.mxu0 %v1457
  %1786 = vmatmul.mubr.bf16.gmra.mxu0 %v1455
  %v1787 = vpop.f32.mrf.mxu0
  %v1788 = vadd.f32 %v1725, %v1787
  %v1789 = vpop.f32.mrf.mxu0
  %v1790 = vpop.f32.mrf.mxu0
  %v1791 = vpop.f32.mrf.mxu0
  %1792 = vdwg.mxu0
  %v1793 = vmax.f32 %v1767, 0.0
  %v1794 = vmax.f32 %v1772, 0.0
  %v1795 = vmax.f32 %v1775, 0.0
  %v1796 = vmax.f32 %v1780, 0.0
  %v1797 = vmax.f32 %v1783, 0.0
  %v1798 = vmax.f32 %v1788, 0.0
  %v1800 = vrot.slane %v1793, 2
  %1801 = vrot.lane.b32.xlu0 %v1800, 64
  %v1802 = vpop.permute.xlu0 %1801
  %v1805 = vrot.slane %v1794, 4
  %v1807 = vrot.slane %v1794, 6
  %1808 = vrot.lane.b32.xlu0 %v1807, 64
  %v1809 = vpop.permute.xlu0 %1808
  %v1811 = vrot.slane %v1794, 2
  %v1814 = vrot.slane %v1795, 4
  %1815 = vrot.lane.b32.xlu0 %v1814, 64
  %v1816 = vpop.permute.xlu0 %1815
  %v1818 = vrot.slane %v1795, 6
  %1820 = vrot.lane.b32.xlu0 %v1795, 64
  %v1821 = vpop.permute.xlu0 %1820
  %v1824 = vrot.slane %v1796, 4
  %v1826 = vrot.slane %v1796, 6
  %1827 = vrot.lane.b32.xlu0 %v1826, 64
  %v1828 = vpop.permute.xlu0 %1827
  %v1830 = vrot.slane %v1796, 2
  %1831 = vrot.lane.b32.xlu0 %v1830, 64
  %v1832 = vpop.permute.xlu0 %1831
  %v1835 = vrot.slane %v1797, 6
  %1837 = vrot.lane.b32.xlu0 %v1797, 64
  %v1838 = vpop.permute.xlu0 %1837
  %v1840 = vrot.slane %v1797, 2
  %v1843 = vrot.slane %v1798, 4
  %1844 = vrot.lane.b32.xlu0 %v1843, 64
  %v1845 = vpop.permute.xlu0 %1844
  %vm1847 = vcmask 523264
  %v1848 = vsel %vm1847, %v1793, %v1802
  %v1849 = vsel %vm1847, %v1805, %v1809
  %v1850 = vsel %vm1847, %v1811, %v1816
  %v1851 = vsel %vm1847, %v1818, %v1821
  %v1852 = vsel %vm1847, %v1824, %v1828
  %v1853 = vsel %vm1847, %v1796, %v1832
  %v1854 = vsel %vm1847, %v1835, %v1838
  %v1855 = vsel %vm1847, %v1840, %v1845
  %v1856 = vpack.c.bf16 %v1848, %v1848
  %v1857 = vpack.c.bf16 %v1849, %v1849
  %v1858 = vpack.c.bf16 %v1850, %v1850
  %v1859 = vpack.c.bf16 %v1851, %v1851
  %v1860 = vpack.c.bf16 %v1852, %v1852
  %v1861 = vpack.c.bf16 %v1853, %v1853
  %v1862 = vpack.c.bf16 %v1854, %v1854
  %v1863 = vpack.c.bf16 %v1855, %v1855
  %s1864 = smul.u32 4, 128
  %s1865 = smul.u32 %s1864, 4
  %s1866 = sshll.u32 %s1865, 4
  %1867 = dma.done [#allocation6], %s1866
  %v1868 = vld [vmem:[#allocation3] sm:$0xff]
  %v1869 = vld [vmem:[#allocation3 + $0x8] sm:$0xff]
  %v1870 = vld [vmem:[#allocation3 + $0x10] sm:$0xff]
  %v1871 = vld [vmem:[#allocation3 + $0x18] sm:$0xff]
  %v1872 = vld [vmem:[#allocation3 + $0x20] sm:$0xff]
  %v1873 = vld [vmem:[#allocation3 + $0x28] sm:$0xff]
  %v1874 = vld [vmem:[#allocation3 + $0x30] sm:$0xff]
  %v1875 = vld [vmem:[#allocation3 + $0x38] sm:$0xff]
  %v1876 = vld [vmem:[#allocation3 + $0x40] sm:$0xff]
  %v1877 = vld [vmem:[#allocation3 + $0x48] sm:$0xff]
  %v1878 = vld [vmem:[#allocation3 + $0x50] sm:$0xff]
  %v1879 = vld [vmem:[#allocation3 + $0x58] sm:$0xff]
  %v1880 = vld [vmem:[#allocation3 + $0x60] sm:$0xff]
  %v1881 = vld [vmem:[#allocation3 + $0x68] sm:$0xff]
  %v1882 = vld [vmem:[#allocation3 + $0x70] sm:$0xff]
  %v1883 = vld [vmem:[#allocation3 + $0x78] sm:$0xff]
  %v1884 = vld [vmem:[#allocation3 + $0x80] sm:$0xff]
  %v1885 = vld [vmem:[#allocation3 + $0x88] sm:$0xff]
  %v1886 = vld [vmem:[#allocation3 + $0x90] sm:$0xff]
  %v1887 = vld [vmem:[#allocation3 + $0x98] sm:$0xff]
  %v1888 = vld [vmem:[#allocation3 + $0xa0] sm:$0xff]
  %v1889 = vld [vmem:[#allocation3 + $0xa8] sm:$0xff]
  %v1890 = vld [vmem:[#allocation3 + $0xb0] sm:$0xff]
  %v1891 = vld [vmem:[#allocation3 + $0xb8] sm:$0xff]
  %v1892 = vld [vmem:[#allocation3 + $0xc0] sm:$0xff]
  %v1893 = vld [vmem:[#allocation3 + $0xc8] sm:$0xff]
  %v1894 = vld [vmem:[#allocation3 + $0xd0] sm:$0xff]
  %v1895 = vld [vmem:[#allocation3 + $0xd8] sm:$0xff]
  %v1896 = vld [vmem:[#allocation3 + $0xe0] sm:$0xff]
  %v1897 = vld [vmem:[#allocation3 + $0xe8] sm:$0xff]
  %v1898 = vld [vmem:[#allocation3 + $0xf0] sm:$0xff]
  %v1899 = vld [vmem:[#allocation3 + $0xf8] sm:$0xff]
  %v1900 = vld [vmem:[#allocation3 + $0x100] sm:$0xff]
  %v1901 = vld [vmem:[#allocation3 + $0x108] sm:$0xff]
  %v1902 = vld [vmem:[#allocation3 + $0x110] sm:$0xff]
  %v1903 = vld [vmem:[#allocation3 + $0x118] sm:$0xff]
  %v1904 = vld [vmem:[#allocation3 + $0x120] sm:$0xff]
  %v1905 = vld [vmem:[#allocation3 + $0x128] sm:$0xff]
  %v1906 = vld [vmem:[#allocation3 + $0x130] sm:$0xff]
  %v1907 = vld [vmem:[#allocation3 + $0x138] sm:$0xff]
  %v1908 = vld [vmem:[#allocation3 + $0x140] sm:$0xff]
  %v1909 = vld [vmem:[#allocation3 + $0x148] sm:$0xff]
  %v1910 = vld [vmem:[#allocation3 + $0x150] sm:$0xff]
  %v1911 = vld [vmem:[#allocation3 + $0x158] sm:$0xff]
  %v1912 = vld [vmem:[#allocation3 + $0x160] sm:$0xff]
  %v1913 = vld [vmem:[#allocation3 + $0x168] sm:$0xff]
  %v1914 = vld [vmem:[#allocation3 + $0x170] sm:$0xff]
  %v1915 = vld [vmem:[#allocation3 + $0x178] sm:$0xff]
  %v1916 = vld [vmem:[#allocation3 + $0x180] sm:$0xff]
  %v1917 = vld [vmem:[#allocation3 + $0x188] sm:$0xff]
  %v1918 = vld [vmem:[#allocation3 + $0x190] sm:$0xff]
  %v1919 = vld [vmem:[#allocation3 + $0x198] sm:$0xff]
  %v1920 = vld [vmem:[#allocation3 + $0x1a0] sm:$0xff]
  %v1921 = vld [vmem:[#allocation3 + $0x1a8] sm:$0xff]
  %v1922 = vld [vmem:[#allocation3 + $0x1b0] sm:$0xff]
  %v1923 = vld [vmem:[#allocation3 + $0x1b8] sm:$0xff]
  %v1924 = vld [vmem:[#allocation3 + $0x1c0] sm:$0xff]
  %v1925 = vld [vmem:[#allocation3 + $0x1c8] sm:$0xff]
  %v1926 = vld [vmem:[#allocation3 + $0x1d0] sm:$0xff]
  %v1927 = vld [vmem:[#allocation3 + $0x1d8] sm:$0xff]
  %v1928 = vld [vmem:[#allocation3 + $0x1e0] sm:$0xff]
  %v1929 = vld [vmem:[#allocation3 + $0x1e8] sm:$0xff]
  %v1930 = vld [vmem:[#allocation3 + $0x1f0] sm:$0xff]
  %v1931 = vld [vmem:[#allocation3 + $0x1f8] sm:$0xff]
  %v1932 = vld [vmem:[#allocation3 + $0x200] sm:$0xff]
  %v1933 = vld [vmem:[#allocation3 + $0x208] sm:$0xff]
  %v1934 = vld [vmem:[#allocation3 + $0x210] sm:$0xff]
  %v1935 = vld [vmem:[#allocation3 + $0x218] sm:$0xff]
  %v1936 = vld [vmem:[#allocation3 + $0x220] sm:$0xff]
  %v1937 = vld [vmem:[#allocation3 + $0x228] sm:$0xff]
  %v1938 = vld [vmem:[#allocation3 + $0x230] sm:$0xff]
  %v1939 = vld [vmem:[#allocation3 + $0x238] sm:$0xff]
  %v1940 = vld [vmem:[#allocation3 + $0x240] sm:$0xff]
  %v1941 = vld [vmem:[#allocation3 + $0x248] sm:$0xff]
  %v1942 = vld [vmem:[#allocation3 + $0x250] sm:$0xff]
  %v1943 = vld [vmem:[#allocation3 + $0x258] sm:$0xff]
  %v1944 = vld [vmem:[#allocation3 + $0x260] sm:$0xff]
  %v1945 = vld [vmem:[#allocation3 + $0x268] sm:$0xff]
  %v1946 = vld [vmem:[#allocation3 + $0x270] sm:$0xff]
  %v1947 = vld [vmem:[#allocation3 + $0x278] sm:$0xff]
  %v1948 = vld [vmem:[#allocation3 + $0x280] sm:$0xff]
  %v1949 = vld [vmem:[#allocation3 + $0x288] sm:$0xff]
  %v1950 = vld [vmem:[#allocation3 + $0x290] sm:$0xff]
  %v1951 = vld [vmem:[#allocation3 + $0x298] sm:$0xff]
  %v1952 = vld [vmem:[#allocation3 + $0x2a0] sm:$0xff]
  %v1953 = vld [vmem:[#allocation3 + $0x2a8] sm:$0xff]
  %v1954 = vld [vmem:[#allocation3 + $0x2b0] sm:$0xff]
  %v1955 = vld [vmem:[#allocation3 + $0x2b8] sm:$0xff]
  %v1956 = vld [vmem:[#allocation3 + $0x2c0] sm:$0xff]
  %v1957 = vld [vmem:[#allocation3 + $0x2c8] sm:$0xff]
  %v1958 = vld [vmem:[#allocation3 + $0x2d0] sm:$0xff]
  %v1959 = vld [vmem:[#allocation3 + $0x2d8] sm:$0xff]
  %v1960 = vld [vmem:[#allocation3 + $0x2e0] sm:$0xff]
  %v1961 = vld [vmem:[#allocation3 + $0x2e8] sm:$0xff]
  %v1962 = vld [vmem:[#allocation3 + $0x2f0] sm:$0xff]
  %v1963 = vld [vmem:[#allocation3 + $0x2f8] sm:$0xff]
  %v1964 = vld [vmem:[#allocation3 + $0x300] sm:$0xff]
  %v1965 = vld [vmem:[#allocation3 + $0x308] sm:$0xff]
  %v1966 = vld [vmem:[#allocation3 + $0x310] sm:$0xff]
  %v1967 = vld [vmem:[#allocation3 + $0x318] sm:$0xff]
  %v1968 = vld [vmem:[#allocation3 + $0x320] sm:$0xff]
  %v1969 = vld [vmem:[#allocation3 + $0x328] sm:$0xff]
  %v1970 = vld [vmem:[#allocation3 + $0x330] sm:$0xff]
  %v1971 = vld [vmem:[#allocation3 + $0x338] sm:$0xff]
  %v1972 = vld [vmem:[#allocation3 + $0x340] sm:$0xff]
  %v1973 = vld [vmem:[#allocation3 + $0x348] sm:$0xff]
  %v1974 = vld [vmem:[#allocation3 + $0x350] sm:$0xff]
  %v1975 = vld [vmem:[#allocation3 + $0x358] sm:$0xff]
  %v1976 = vld [vmem:[#allocation3 + $0x360] sm:$0xff]
  %v1977 = vld [vmem:[#allocation3 + $0x368] sm:$0xff]
  %v1978 = vld [vmem:[#allocation3 + $0x370] sm:$0xff]
  %v1979 = vld [vmem:[#allocation3 + $0x378] sm:$0xff]
  %v1980 = vld [vmem:[#allocation3 + $0x380] sm:$0xff]
  %v1981 = vld [vmem:[#allocation3 + $0x388] sm:$0xff]
  %v1982 = vld [vmem:[#allocation3 + $0x390] sm:$0xff]
  %v1983 = vld [vmem:[#allocation3 + $0x398] sm:$0xff]
  %v1984 = vld [vmem:[#allocation3 + $0x3a0] sm:$0xff]
  %v1985 = vld [vmem:[#allocation3 + $0x3a8] sm:$0xff]
  %v1986 = vld [vmem:[#allocation3 + $0x3b0] sm:$0xff]
  %v1987 = vld [vmem:[#allocation3 + $0x3b8] sm:$0xff]
  %v1988 = vld [vmem:[#allocation3 + $0x3c0] sm:$0xff]
  %v1989 = vld [vmem:[#allocation3 + $0x3c8] sm:$0xff]
  %v1990 = vld [vmem:[#allocation3 + $0x3d0] sm:$0xff]
  %v1991 = vld [vmem:[#allocation3 + $0x3d8] sm:$0xff]
  %v1992 = vld [vmem:[#allocation3 + $0x3e0] sm:$0xff]
  %v1993 = vld [vmem:[#allocation3 + $0x3e8] sm:$0xff]
  %v1994 = vld [vmem:[#allocation3 + $0x3f0] sm:$0xff]
  %v1995 = vld [vmem:[#allocation3 + $0x3f8] sm:$0xff]
  %v1996 = vld [vmem:[#allocation3 + $0x400] sm:$0xff]
  %v1997 = vld [vmem:[#allocation3 + $0x408] sm:$0xff]
  %v1998 = vld [vmem:[#allocation3 + $0x410] sm:$0xff]
  %v1999 = vld [vmem:[#allocation3 + $0x418] sm:$0xff]
  %v2000 = vld [vmem:[#allocation3 + $0x420] sm:$0xff]
  %v2001 = vld [vmem:[#allocation3 + $0x428] sm:$0xff]
  %v2002 = vld [vmem:[#allocation3 + $0x430] sm:$0xff]
  %v2003 = vld [vmem:[#allocation3 + $0x438] sm:$0xff]
  %v2004 = vld [vmem:[#allocation3 + $0x440] sm:$0xff]
  %v2005 = vld [vmem:[#allocation3 + $0x448] sm:$0xff]
  %v2006 = vld [vmem:[#allocation3 + $0x450] sm:$0xff]
  %v2007 = vld [vmem:[#allocation3 + $0x458] sm:$0xff]
  %v2008 = vld [vmem:[#allocation3 + $0x460] sm:$0xff]
  %v2009 = vld [vmem:[#allocation3 + $0x468] sm:$0xff]
  %v2010 = vld [vmem:[#allocation3 + $0x470] sm:$0xff]
  %v2011 = vld [vmem:[#allocation3 + $0x478] sm:$0xff]
  %v2012 = vld [vmem:[#allocation3 + $0x480] sm:$0xff]
  %v2013 = vld [vmem:[#allocation3 + $0x488] sm:$0xff]
  %v2014 = vld [vmem:[#allocation3 + $0x490] sm:$0xff]
  %v2015 = vld [vmem:[#allocation3 + $0x498] sm:$0xff]
  %v2016 = vld [vmem:[#allocation3 + $0x4a0] sm:$0xff]
  %v2017 = vld [vmem:[#allocation3 + $0x4a8] sm:$0xff]
  %v2018 = vld [vmem:[#allocation3 + $0x4b0] sm:$0xff]
  %v2019 = vld [vmem:[#allocation3 + $0x4b8] sm:$0xff]
  %v2020 = vld [vmem:[#allocation3 + $0x4c0] sm:$0xff]
  %v2021 = vld [vmem:[#allocation3 + $0x4c8] sm:$0xff]
  %v2022 = vld [vmem:[#allocation3 + $0x4d0] sm:$0xff]
  %v2023 = vld [vmem:[#allocation3 + $0x4d8] sm:$0xff]
  %v2024 = vld [vmem:[#allocation3 + $0x4e0] sm:$0xff]
  %v2025 = vld [vmem:[#allocation3 + $0x4e8] sm:$0xff]
  %v2026 = vld [vmem:[#allocation3 + $0x4f0] sm:$0xff]
  %v2027 = vld [vmem:[#allocation3 + $0x4f8] sm:$0xff]
  %v2028 = vld [vmem:[#allocation3 + $0x500] sm:$0xff]
  %v2029 = vld [vmem:[#allocation3 + $0x508] sm:$0xff]
  %v2030 = vld [vmem:[#allocation3 + $0x510] sm:$0xff]
  %v2031 = vld [vmem:[#allocation3 + $0x518] sm:$0xff]
  %v2032 = vld [vmem:[#allocation3 + $0x520] sm:$0xff]
  %v2033 = vld [vmem:[#allocation3 + $0x528] sm:$0xff]
  %v2034 = vld [vmem:[#allocation3 + $0x530] sm:$0xff]
  %v2035 = vld [vmem:[#allocation3 + $0x538] sm:$0xff]
  %v2036 = vld [vmem:[#allocation3 + $0x540] sm:$0xff]
  %v2037 = vld [vmem:[#allocation3 + $0x548] sm:$0xff]
  %v2038 = vld [vmem:[#allocation3 + $0x550] sm:$0xff]
  %v2039 = vld [vmem:[#allocation3 + $0x558] sm:$0xff]
  %v2040 = vld [vmem:[#allocation3 + $0x560] sm:$0xff]
  %v2041 = vld [vmem:[#allocation3 + $0x568] sm:$0xff]
  %v2042 = vld [vmem:[#allocation3 + $0x570] sm:$0xff]
  %v2043 = vld [vmem:[#allocation3 + $0x578] sm:$0xff]
  %v2044 = vld [vmem:[#allocation3 + $0x580] sm:$0xff]
  %v2045 = vld [vmem:[#allocation3 + $0x588] sm:$0xff]
  %v2046 = vld [vmem:[#allocation3 + $0x590] sm:$0xff]
  %v2047 = vld [vmem:[#allocation3 + $0x598] sm:$0xff]
  %v2048 = vld [vmem:[#allocation3 + $0x5a0] sm:$0xff]
  %v2049 = vld [vmem:[#allocation3 + $0x5a8] sm:$0xff]
  %v2050 = vld [vmem:[#allocation3 + $0x5b0] sm:$0xff]
  %v2051 = vld [vmem:[#allocation3 + $0x5b8] sm:$0xff]
  %v2052 = vld [vmem:[#allocation3 + $0x5c0] sm:$0xff]
  %v2053 = vld [vmem:[#allocation3 + $0x5c8] sm:$0xff]
  %v2054 = vld [vmem:[#allocation3 + $0x5d0] sm:$0xff]
  %v2055 = vld [vmem:[#allocation3 + $0x5d8] sm:$0xff]
  %v2056 = vld [vmem:[#allocation3 + $0x5e0] sm:$0xff]
  %v2057 = vld [vmem:[#allocation3 + $0x5e8] sm:$0xff]
  %v2058 = vld [vmem:[#allocation3 + $0x5f0] sm:$0xff]
  %v2059 = vld [vmem:[#allocation3 + $0x5f8] sm:$0xff]
  %v2060 = vld [vmem:[#allocation3 + $0x600] sm:$0xff]
  %v2061 = vld [vmem:[#allocation3 + $0x608] sm:$0xff]
  %v2062 = vld [vmem:[#allocation3 + $0x610] sm:$0xff]
  %v2063 = vld [vmem:[#allocation3 + $0x618] sm:$0xff]
  %v2064 = vld [vmem:[#allocation3 + $0x620] sm:$0xff]
  %v2065 = vld [vmem:[#allocation3 + $0x628] sm:$0xff]
  %v2066 = vld [vmem:[#allocation3 + $0x630] sm:$0xff]
  %v2067 = vld [vmem:[#allocation3 + $0x638] sm:$0xff]
  %v2068 = vld [vmem:[#allocation3 + $0x640] sm:$0xff]
  %v2069 = vld [vmem:[#allocation3 + $0x648] sm:$0xff]
  %v2070 = vld [vmem:[#allocation3 + $0x650] sm:$0xff]
  %v2071 = vld [vmem:[#allocation3 + $0x658] sm:$0xff]
  %v2072 = vld [vmem:[#allocation3 + $0x660] sm:$0xff]
  %v2073 = vld [vmem:[#allocation3 + $0x668] sm:$0xff]
  %v2074 = vld [vmem:[#allocation3 + $0x670] sm:$0xff]
  %v2075 = vld [vmem:[#allocation3 + $0x678] sm:$0xff]
  %v2076 = vld [vmem:[#allocation3 + $0x680] sm:$0xff]
  %v2077 = vld [vmem:[#allocation3 + $0x688] sm:$0xff]
  %v2078 = vld [vmem:[#allocation3 + $0x690] sm:$0xff]
  %v2079 = vld [vmem:[#allocation3 + $0x698] sm:$0xff]
  %v2080 = vld [vmem:[#allocation3 + $0x6a0] sm:$0xff]
  %v2081 = vld [vmem:[#allocation3 + $0x6a8] sm:$0xff]
  %v2082 = vld [vmem:[#allocation3 + $0x6b0] sm:$0xff]
  %v2083 = vld [vmem:[#allocation3 + $0x6b8] sm:$0xff]
  %v2084 = vld [vmem:[#allocation3 + $0x6c0] sm:$0xff]
  %v2085 = vld [vmem:[#allocation3 + $0x6c8] sm:$0xff]
  %v2086 = vld [vmem:[#allocation3 + $0x6d0] sm:$0xff]
  %v2087 = vld [vmem:[#allocation3 + $0x6d8] sm:$0xff]
  %v2088 = vld [vmem:[#allocation3 + $0x6e0] sm:$0xff]
  %v2089 = vld [vmem:[#allocation3 + $0x6e8] sm:$0xff]
  %v2090 = vld [vmem:[#allocation3 + $0x6f0] sm:$0xff]
  %v2091 = vld [vmem:[#allocation3 + $0x6f8] sm:$0xff]
  %v2092 = vld [vmem:[#allocation3 + $0x700] sm:$0xff]
  %v2093 = vld [vmem:[#allocation3 + $0x708] sm:$0xff]
  %v2094 = vld [vmem:[#allocation3 + $0x710] sm:$0xff]
  %v2095 = vld [vmem:[#allocation3 + $0x718] sm:$0xff]
  %v2096 = vld [vmem:[#allocation3 + $0x720] sm:$0xff]
  %v2097 = vld [vmem:[#allocation3 + $0x728] sm:$0xff]
  %v2098 = vld [vmem:[#allocation3 + $0x730] sm:$0xff]
  %v2099 = vld [vmem:[#allocation3 + $0x738] sm:$0xff]
  %v2100 = vld [vmem:[#allocation3 + $0x740] sm:$0xff]
  %v2101 = vld [vmem:[#allocation3 + $0x748] sm:$0xff]
  %v2102 = vld [vmem:[#allocation3 + $0x750] sm:$0xff]
  %v2103 = vld [vmem:[#allocation3 + $0x758] sm:$0xff]
  %v2104 = vld [vmem:[#allocation3 + $0x760] sm:$0xff]
  %v2105 = vld [vmem:[#allocation3 + $0x768] sm:$0xff]
  %v2106 = vld [vmem:[#allocation3 + $0x770] sm:$0xff]
  %v2107 = vld [vmem:[#allocation3 + $0x778] sm:$0xff]
  %v2108 = vld [vmem:[#allocation3 + $0x780] sm:$0xff]
  %v2109 = vld [vmem:[#allocation3 + $0x788] sm:$0xff]
  %v2110 = vld [vmem:[#allocation3 + $0x790] sm:$0xff]
  %v2111 = vld [vmem:[#allocation3 + $0x798] sm:$0xff]
  %v2112 = vld [vmem:[#allocation3 + $0x7a0] sm:$0xff]
  %v2113 = vld [vmem:[#allocation3 + $0x7a8] sm:$0xff]
  %v2114 = vld [vmem:[#allocation3 + $0x7b0] sm:$0xff]
  %v2115 = vld [vmem:[#allocation3 + $0x7b8] sm:$0xff]
  %v2116 = vld [vmem:[#allocation3 + $0x7c0] sm:$0xff]
  %v2117 = vld [vmem:[#allocation3 + $0x7c8] sm:$0xff]
  %v2118 = vld [vmem:[#allocation3 + $0x7d0] sm:$0xff]
  %v2119 = vld [vmem:[#allocation3 + $0x7d8] sm:$0xff]
  %v2120 = vld [vmem:[#allocation3 + $0x7e0] sm:$0xff]
  %v2121 = vld [vmem:[#allocation3 + $0x7e8] sm:$0xff]
  %v2122 = vld [vmem:[#allocation3 + $0x7f0] sm:$0xff]
  %v2123 = vld [vmem:[#allocation3 + $0x7f8] sm:$0xff]
  %v2124 = vld [vmem:[%s6] sm:$0xf]
  %v2126 = vlaneseq
  %v2127 = vshrl.u32 %v2126, 7
  %v2128 = vsub.s32 0, %v2127
  %v2129 = vrot.slane %v2124, %v2128
  %v2130 = vlaneseq
  %v2131 = vshrl.u32 %v2130, 7
  %v2132 = vsub.s32 1, %v2131
  %v2133 = vrot.slane %v2124, %v2132
  %v2134 = vlaneseq
  %v2135 = vshrl.u32 %v2134, 7
  %v2136 = vsub.s32 2, %v2135
  %v2137 = vrot.slane %v2124, %v2136
  %v2138 = vlaneseq
  %v2139 = vshrl.u32 %v2138, 7
  %v2140 = vsub.s32 3, %v2139
  %v2141 = vrot.slane %v2124, %v2140
  %v2154 = vrot.slane %v1856, 2
  %v2155 = vrot.slane %v1857, 2
  %v2156 = vrot.slane %v1858, 2
  %v2157 = vrot.slane %v1859, 2
  %v2158 = vrot.slane %v1860, 2
  %v2159 = vrot.slane %v1861, 2
  %v2160 = vrot.slane %v1862, 2
  %v2161 = vrot.slane %v1863, 2
  %v2426 = vunpack.c.l.b16 %v1868
  %v2427 = vunpack.c.h.b16 %v1868
  %v2428 = vunpack.c.l.b16 %v1869
  %v2429 = vunpack.c.h.b16 %v1869
  %v2430 = vunpack.c.l.b16 %v1870
  %v2431 = vunpack.c.h.b16 %v1870
  %v2432 = vunpack.c.l.b16 %v1871
  %v2433 = vunpack.c.h.b16 %v1871
  %v2434 = vunpack.c.l.b16 %v1872
  %v2435 = vunpack.c.h.b16 %v1872
  %v2436 = vunpack.c.l.b16 %v1873
  %v2437 = vunpack.c.h.b16 %v1873
  %v2438 = vunpack.c.l.b16 %v1874
  %v2439 = vunpack.c.h.b16 %v1874
  %v2440 = vunpack.c.l.b16 %v1875
  %v2441 = vunpack.c.h.b16 %v1875
  %v2442 = vunpack.c.l.b16 %v1876
  %v2443 = vunpack.c.h.b16 %v1876
  %v2444 = vunpack.c.l.b16 %v1877
  %v2445 = vunpack.c.h.b16 %v1877
  %v2446 = vunpack.c.l.b16 %v1878
  %v2447 = vunpack.c.h.b16 %v1878
  %v2448 = vunpack.c.l.b16 %v1879
  %v2449 = vunpack.c.h.b16 %v1879
  %v2450 = vunpack.c.l.b16 %v1880
  %v2451 = vunpack.c.h.b16 %v1880
  %v2452 = vunpack.c.l.b16 %v1881
  %v2453 = vunpack.c.h.b16 %v1881
  %v2454 = vunpack.c.l.b16 %v1882
  %v2455 = vunpack.c.h.b16 %v1882
  %v2456 = vunpack.c.l.b16 %v1883
  %v2457 = vunpack.c.h.b16 %v1883
  %v2458 = vunpack.c.l.b16 %v1884
  %v2459 = vunpack.c.h.b16 %v1884
  %v2460 = vunpack.c.l.b16 %v1885
  %v2461 = vunpack.c.h.b16 %v1885
  %v2462 = vunpack.c.l.b16 %v1886
  %v2463 = vunpack.c.h.b16 %v1886
  %v2464 = vunpack.c.l.b16 %v1887
  %v2465 = vunpack.c.h.b16 %v1887
  %v2466 = vunpack.c.l.b16 %v1888
  %v2467 = vunpack.c.h.b16 %v1888
  %v2468 = vunpack.c.l.b16 %v1889
  %v2469 = vunpack.c.h.b16 %v1889
  %v2470 = vunpack.c.l.b16 %v1890
  %v2471 = vunpack.c.h.b16 %v1890
  %v2472 = vunpack.c.l.b16 %v1891
  %v2473 = vunpack.c.h.b16 %v1891
  %v2474 = vunpack.c.l.b16 %v1892
  %v2475 = vunpack.c.h.b16 %v1892
  %v2476 = vunpack.c.l.b16 %v1893
  %v2477 = vunpack.c.h.b16 %v1893
  %v2478 = vunpack.c.l.b16 %v1894
  %v2479 = vunpack.c.h.b16 %v1894
  %v2480 = vunpack.c.l.b16 %v1895
  %v2481 = vunpack.c.h.b16 %v1895
  %v2482 = vunpack.c.l.b16 %v1896
  %v2483 = vunpack.c.h.b16 %v1896
  %v2484 = vunpack.c.l.b16 %v1897
  %v2485 = vunpack.c.h.b16 %v1897
  %v2486 = vunpack.c.l.b16 %v1898
  %v2487 = vunpack.c.h.b16 %v1898
  %v2488 = vunpack.c.l.b16 %v1899
  %v2489 = vunpack.c.h.b16 %v1899
  %v2490 = vunpack.c.l.b16 %v1900
  %v2491 = vunpack.c.h.b16 %v1900
  %v2492 = vunpack.c.l.b16 %v1901
  %v2493 = vunpack.c.h.b16 %v1901
  %v2494 = vunpack.c.l.b16 %v1902
  %v2495 = vunpack.c.h.b16 %v1902
  %v2496 = vunpack.c.l.b16 %v1903
  %v2497 = vunpack.c.h.b16 %v1903
  %v2498 = vunpack.c.l.b16 %v1904
  %v2499 = vunpack.c.h.b16 %v1904
  %v2500 = vunpack.c.l.b16 %v1905
  %v2501 = vunpack.c.h.b16 %v1905
  %v2502 = vunpack.c.l.b16 %v1906
  %v2503 = vunpack.c.h.b16 %v1906
  %v2504 = vunpack.c.l.b16 %v1907
  %v2505 = vunpack.c.h.b16 %v1907
  %v2506 = vunpack.c.l.b16 %v1908
  %v2507 = vunpack.c.h.b16 %v1908
  %v2508 = vunpack.c.l.b16 %v1909
  %v2509 = vunpack.c.h.b16 %v1909
  %v2510 = vunpack.c.l.b16 %v1910
  %v2511 = vunpack.c.h.b16 %v1910
  %v2512 = vunpack.c.l.b16 %v1911
  %v2513 = vunpack.c.h.b16 %v1911
  %v2514 = vunpack.c.l.b16 %v1912
  %v2515 = vunpack.c.h.b16 %v1912
  %v2516 = vunpack.c.l.b16 %v1913
  %v2517 = vunpack.c.h.b16 %v1913
  %v2518 = vunpack.c.l.b16 %v1914
  %v2519 = vunpack.c.h.b16 %v1914
  %v2520 = vunpack.c.l.b16 %v1915
  %v2521 = vunpack.c.h.b16 %v1915
  %v2522 = vunpack.c.l.b16 %v1916
  %v2523 = vunpack.c.h.b16 %v1916
  %v2524 = vunpack.c.l.b16 %v1917
  %v2525 = vunpack.c.h.b16 %v1917
  %v2526 = vunpack.c.l.b16 %v1918
  %v2527 = vunpack.c.h.b16 %v1918
  %v2528 = vunpack.c.l.b16 %v1919
  %v2529 = vunpack.c.h.b16 %v1919
  %v2530 = vunpack.c.l.b16 %v1920
  %v2531 = vunpack.c.h.b16 %v1920
  %v2532 = vunpack.c.l.b16 %v1921
  %v2533 = vunpack.c.h.b16 %v1921
  %v2534 = vunpack.c.l.b16 %v1922
  %v2535 = vunpack.c.h.b16 %v1922
  %v2536 = vunpack.c.l.b16 %v1923
  %v2537 = vunpack.c.h.b16 %v1923
  %v2538 = vunpack.c.l.b16 %v1924
  %v2539 = vunpack.c.h.b16 %v1924
  %v2540 = vunpack.c.l.b16 %v1925
  %v2541 = vunpack.c.h.b16 %v1925
  %v2542 = vunpack.c.l.b16 %v1926
  %v2543 = vunpack.c.h.b16 %v1926
  %v2544 = vunpack.c.l.b16 %v1927
  %v2545 = vunpack.c.h.b16 %v1927
  %v2546 = vunpack.c.l.b16 %v1928
  %v2547 = vunpack.c.h.b16 %v1928
  %v2548 = vunpack.c.l.b16 %v1929
  %v2549 = vunpack.c.h.b16 %v1929
  %v2550 = vunpack.c.l.b16 %v1930
  %v2551 = vunpack.c.h.b16 %v1930
  %v2552 = vunpack.c.l.b16 %v1931
  %v2553 = vunpack.c.h.b16 %v1931
  %v2554 = vunpack.c.l.b16 %v1932
  %v2555 = vunpack.c.h.b16 %v1932
  %v2556 = vunpack.c.l.b16 %v1933
  %v2557 = vunpack.c.h.b16 %v1933
  %v2558 = vunpack.c.l.b16 %v1934
  %v2559 = vunpack.c.h.b16 %v1934
  %v2560 = vunpack.c.l.b16 %v1935
  %v2561 = vunpack.c.h.b16 %v1935
  %v2562 = vunpack.c.l.b16 %v1936
  %v2563 = vunpack.c.h.b16 %v1936
  %v2564 = vunpack.c.l.b16 %v1937
  %v2565 = vunpack.c.h.b16 %v1937
  %v2566 = vunpack.c.l.b16 %v1938
  %v2567 = vunpack.c.h.b16 %v1938
  %v2568 = vunpack.c.l.b16 %v1939
  %v2569 = vunpack.c.h.b16 %v1939
  %v2570 = vunpack.c.l.b16 %v1940
  %v2571 = vunpack.c.h.b16 %v1940
  %v2572 = vunpack.c.l.b16 %v1941
  %v2573 = vunpack.c.h.b16 %v1941
  %v2574 = vunpack.c.l.b16 %v1942
  %v2575 = vunpack.c.h.b16 %v1942
  %v2576 = vunpack.c.l.b16 %v1943
  %v2577 = vunpack.c.h.b16 %v1943
  %v2578 = vunpack.c.l.b16 %v1944
  %v2579 = vunpack.c.h.b16 %v1944
  %v2580 = vunpack.c.l.b16 %v1945
  %v2581 = vunpack.c.h.b16 %v1945
  %v2582 = vunpack.c.l.b16 %v1946
  %v2583 = vunpack.c.h.b16 %v1946
  %v2584 = vunpack.c.l.b16 %v1947
  %v2585 = vunpack.c.h.b16 %v1947
  %v2586 = vunpack.c.l.b16 %v1948
  %v2587 = vunpack.c.h.b16 %v1948
  %v2588 = vunpack.c.l.b16 %v1949
  %v2589 = vunpack.c.h.b16 %v1949
  %v2590 = vunpack.c.l.b16 %v1950
  %v2591 = vunpack.c.h.b16 %v1950
  %v2592 = vunpack.c.l.b16 %v1951
  %v2593 = vunpack.c.h.b16 %v1951
  %v2594 = vunpack.c.l.b16 %v1952
  %v2595 = vunpack.c.h.b16 %v1952
  %v2596 = vunpack.c.l.b16 %v1953
  %v2597 = vunpack.c.h.b16 %v1953
  %v2598 = vunpack.c.l.b16 %v1954
  %v2599 = vunpack.c.h.b16 %v1954
  %v2600 = vunpack.c.l.b16 %v1955
  %v2601 = vunpack.c.h.b16 %v1955
  %v2602 = vunpack.c.l.b16 %v1956
  %v2603 = vunpack.c.h.b16 %v1956
  %v2604 = vunpack.c.l.b16 %v1957
  %v2605 = vunpack.c.h.b16 %v1957
  %v2606 = vunpack.c.l.b16 %v1958
  %v2607 = vunpack.c.h.b16 %v1958
  %v2608 = vunpack.c.l.b16 %v1959
  %v2609 = vunpack.c.h.b16 %v1959
  %v2610 = vunpack.c.l.b16 %v1960
  %v2611 = vunpack.c.h.b16 %v1960
  %v2612 = vunpack.c.l.b16 %v1961
  %v2613 = vunpack.c.h.b16 %v1961
  %v2614 = vunpack.c.l.b16 %v1962
  %v2615 = vunpack.c.h.b16 %v1962
  %v2616 = vunpack.c.l.b16 %v1963
  %v2617 = vunpack.c.h.b16 %v1963
  %v2618 = vunpack.c.l.b16 %v1964
  %v2619 = vunpack.c.h.b16 %v1964
  %v2620 = vunpack.c.l.b16 %v1965
  %v2621 = vunpack.c.h.b16 %v1965
  %v2622 = vunpack.c.l.b16 %v1966
  %v2623 = vunpack.c.h.b16 %v1966
  %v2624 = vunpack.c.l.b16 %v1967
  %v2625 = vunpack.c.h.b16 %v1967
  %v2626 = vunpack.c.l.b16 %v1968
  %v2627 = vunpack.c.h.b16 %v1968
  %v2628 = vunpack.c.l.b16 %v1969
  %v2629 = vunpack.c.h.b16 %v1969
  %v2630 = vunpack.c.l.b16 %v1970
  %v2631 = vunpack.c.h.b16 %v1970
  %v2632 = vunpack.c.l.b16 %v1971
  %v2633 = vunpack.c.h.b16 %v1971
  %v2634 = vunpack.c.l.b16 %v1972
  %v2635 = vunpack.c.h.b16 %v1972
  %v2636 = vunpack.c.l.b16 %v1973
  %v2637 = vunpack.c.h.b16 %v1973
  %v2638 = vunpack.c.l.b16 %v1974
  %v2639 = vunpack.c.h.b16 %v1974
  %v2640 = vunpack.c.l.b16 %v1975
  %v2641 = vunpack.c.h.b16 %v1975
  %v2642 = vunpack.c.l.b16 %v1976
  %v2643 = vunpack.c.h.b16 %v1976
  %v2644 = vunpack.c.l.b16 %v1977
  %v2645 = vunpack.c.h.b16 %v1977
  %v2646 = vunpack.c.l.b16 %v1978
  %v2647 = vunpack.c.h.b16 %v1978
  %v2648 = vunpack.c.l.b16 %v1979
  %v2649 = vunpack.c.h.b16 %v1979
  %v2650 = vunpack.c.l.b16 %v1980
  %v2651 = vunpack.c.h.b16 %v1980
  %v2652 = vunpack.c.l.b16 %v1981
  %v2653 = vunpack.c.h.b16 %v1981
  %v2654 = vunpack.c.l.b16 %v1982
  %v2655 = vunpack.c.h.b16 %v1982
  %v2656 = vunpack.c.l.b16 %v1983
  %v2657 = vunpack.c.h.b16 %v1983
  %v2658 = vunpack.c.l.b16 %v1984
  %v2659 = vunpack.c.h.b16 %v1984
  %v2660 = vunpack.c.l.b16 %v1985
  %v2661 = vunpack.c.h.b16 %v1985
  %v2662 = vunpack.c.l.b16 %v1986
  %v2663 = vunpack.c.h.b16 %v1986
  %v2664 = vunpack.c.l.b16 %v1987
  %v2665 = vunpack.c.h.b16 %v1987
  %v2666 = vunpack.c.l.b16 %v1988
  %v2667 = vunpack.c.h.b16 %v1988
  %v2668 = vunpack.c.l.b16 %v1989
  %v2669 = vunpack.c.h.b16 %v1989
  %v2670 = vunpack.c.l.b16 %v1990
  %v2671 = vunpack.c.h.b16 %v1990
  %v2672 = vunpack.c.l.b16 %v1991
  %v2673 = vunpack.c.h.b16 %v1991
  %v2674 = vunpack.c.l.b16 %v1992
  %v2675 = vunpack.c.h.b16 %v1992
  %v2676 = vunpack.c.l.b16 %v1993
  %v2677 = vunpack.c.h.b16 %v1993
  %v2678 = vunpack.c.l.b16 %v1994
  %v2679 = vunpack.c.h.b16 %v1994
  %v2680 = vunpack.c.l.b16 %v1995
  %v2681 = vunpack.c.h.b16 %v1995
  %v2682 = vunpack.c.l.b16 %v1996
  %v2683 = vunpack.c.h.b16 %v1996
  %v2684 = vunpack.c.l.b16 %v1997
  %v2685 = vunpack.c.h.b16 %v1997
  %v2686 = vunpack.c.l.b16 %v1998
  %v2687 = vunpack.c.h.b16 %v1998
  %v2688 = vunpack.c.l.b16 %v1999
  %v2689 = vunpack.c.h.b16 %v1999
  %v2690 = vunpack.c.l.b16 %v2000
  %v2691 = vunpack.c.h.b16 %v2000
  %v2692 = vunpack.c.l.b16 %v2001
  %v2693 = vunpack.c.h.b16 %v2001
  %v2694 = vunpack.c.l.b16 %v2002
  %v2695 = vunpack.c.h.b16 %v2002
  %v2696 = vunpack.c.l.b16 %v2003
  %v2697 = vunpack.c.h.b16 %v2003
  %v2698 = vunpack.c.l.b16 %v2004
  %v2699 = vunpack.c.h.b16 %v2004
  %v2700 = vunpack.c.l.b16 %v2005
  %v2701 = vunpack.c.h.b16 %v2005
  %v2702 = vunpack.c.l.b16 %v2006
  %v2703 = vunpack.c.h.b16 %v2006
  %v2704 = vunpack.c.l.b16 %v2007
  %v2705 = vunpack.c.h.b16 %v2007
  %v2706 = vunpack.c.l.b16 %v2008
  %v2707 = vunpack.c.h.b16 %v2008
  %v2708 = vunpack.c.l.b16 %v2009
  %v2709 = vunpack.c.h.b16 %v2009
  %v2710 = vunpack.c.l.b16 %v2010
  %v2711 = vunpack.c.h.b16 %v2010
  %v2712 = vunpack.c.l.b16 %v2011
  %v2713 = vunpack.c.h.b16 %v2011
  %v2714 = vunpack.c.l.b16 %v2012
  %v2715 = vunpack.c.h.b16 %v2012
  %v2716 = vunpack.c.l.b16 %v2013
  %v2717 = vunpack.c.h.b16 %v2013
  %v2718 = vunpack.c.l.b16 %v2014
  %v2719 = vunpack.c.h.b16 %v2014
  %v2720 = vunpack.c.l.b16 %v2015
  %v2721 = vunpack.c.h.b16 %v2015
  %v2722 = vunpack.c.l.b16 %v2016
  %v2723 = vunpack.c.h.b16 %v2016
  %v2724 = vunpack.c.l.b16 %v2017
  %v2725 = vunpack.c.h.b16 %v2017
  %v2726 = vunpack.c.l.b16 %v2018
  %v2727 = vunpack.c.h.b16 %v2018
  %v2728 = vunpack.c.l.b16 %v2019
  %v2729 = vunpack.c.h.b16 %v2019
  %v2730 = vunpack.c.l.b16 %v2020
  %v2731 = vunpack.c.h.b16 %v2020
  %v2732 = vunpack.c.l.b16 %v2021
  %v2733 = vunpack.c.h.b16 %v2021
  %v2734 = vunpack.c.l.b16 %v2022
  %v2735 = vunpack.c.h.b16 %v2022
  %v2736 = vunpack.c.l.b16 %v2023
  %v2737 = vunpack.c.h.b16 %v2023
  %v2738 = vunpack.c.l.b16 %v2024
  %v2739 = vunpack.c.h.b16 %v2024
  %v2740 = vunpack.c.l.b16 %v2025
  %v2741 = vunpack.c.h.b16 %v2025
  %v2742 = vunpack.c.l.b16 %v2026
  %v2743 = vunpack.c.h.b16 %v2026
  %v2744 = vunpack.c.l.b16 %v2027
  %v2745 = vunpack.c.h.b16 %v2027
  %v2746 = vunpack.c.l.b16 %v2028
  %v2747 = vunpack.c.h.b16 %v2028
  %v2748 = vunpack.c.l.b16 %v2029
  %v2749 = vunpack.c.h.b16 %v2029
  %v2750 = vunpack.c.l.b16 %v2030
  %v2751 = vunpack.c.h.b16 %v2030
  %v2752 = vunpack.c.l.b16 %v2031
  %v2753 = vunpack.c.h.b16 %v2031
  %v2754 = vunpack.c.l.b16 %v2032
  %v2755 = vunpack.c.h.b16 %v2032
  %v2756 = vunpack.c.l.b16 %v2033
  %v2757 = vunpack.c.h.b16 %v2033
  %v2758 = vunpack.c.l.b16 %v2034
  %v2759 = vunpack.c.h.b16 %v2034
  %v2760 = vunpack.c.l.b16 %v2035
  %v2761 = vunpack.c.h.b16 %v2035
  %v2762 = vunpack.c.l.b16 %v2036
  %v2763 = vunpack.c.h.b16 %v2036
  %v2764 = vunpack.c.l.b16 %v2037
  %v2765 = vunpack.c.h.b16 %v2037
  %v2766 = vunpack.c.l.b16 %v2038
  %v2767 = vunpack.c.h.b16 %v2038
  %v2768 = vunpack.c.l.b16 %v2039
  %v2769 = vunpack.c.h.b16 %v2039
  %v2770 = vunpack.c.l.b16 %v2040
  %v2771 = vunpack.c.h.b16 %v2040
  %v2772 = vunpack.c.l.b16 %v2041
  %v2773 = vunpack.c.h.b16 %v2041
  %v2774 = vunpack.c.l.b16 %v2042
  %v2775 = vunpack.c.h.b16 %v2042
  %v2776 = vunpack.c.l.b16 %v2043
  %v2777 = vunpack.c.h.b16 %v2043
  %v2778 = vunpack.c.l.b16 %v2044
  %v2779 = vunpack.c.h.b16 %v2044
  %v2780 = vunpack.c.l.b16 %v2045
  %v2781 = vunpack.c.h.b16 %v2045
  %v2782 = vunpack.c.l.b16 %v2046
  %v2783 = vunpack.c.h.b16 %v2046
  %v2784 = vunpack.c.l.b16 %v2047
  %v2785 = vunpack.c.h.b16 %v2047
  %v2786 = vunpack.c.l.b16 %v2048
  %v2787 = vunpack.c.h.b16 %v2048
  %v2788 = vunpack.c.l.b16 %v2049
  %v2789 = vunpack.c.h.b16 %v2049
  %v2790 = vunpack.c.l.b16 %v2050
  %v2791 = vunpack.c.h.b16 %v2050
  %v2792 = vunpack.c.l.b16 %v2051
  %v2793 = vunpack.c.h.b16 %v2051
  %v2794 = vunpack.c.l.b16 %v2052
  %v2795 = vunpack.c.h.b16 %v2052
  %v2796 = vunpack.c.l.b16 %v2053
  %v2797 = vunpack.c.h.b16 %v2053
  %v2798 = vunpack.c.l.b16 %v2054
  %v2799 = vunpack.c.h.b16 %v2054
  %v2800 = vunpack.c.l.b16 %v2055
  %v2801 = vunpack.c.h.b16 %v2055
  %v2802 = vunpack.c.l.b16 %v2056
  %v2803 = vunpack.c.h.b16 %v2056
  %v2804 = vunpack.c.l.b16 %v2057
  %v2805 = vunpack.c.h.b16 %v2057
  %v2806 = vunpack.c.l.b16 %v2058
  %v2807 = vunpack.c.h.b16 %v2058
  %v2808 = vunpack.c.l.b16 %v2059
  %v2809 = vunpack.c.h.b16 %v2059
  %v2810 = vunpack.c.l.b16 %v2060
  %v2811 = vunpack.c.h.b16 %v2060
  %v2812 = vunpack.c.l.b16 %v2061
  %v2813 = vunpack.c.h.b16 %v2061
  %v2814 = vunpack.c.l.b16 %v2062
  %v2815 = vunpack.c.h.b16 %v2062
  %v2816 = vunpack.c.l.b16 %v2063
  %v2817 = vunpack.c.h.b16 %v2063
  %v2818 = vunpack.c.l.b16 %v2064
  %v2819 = vunpack.c.h.b16 %v2064
  %v2820 = vunpack.c.l.b16 %v2065
  %v2821 = vunpack.c.h.b16 %v2065
  %v2822 = vunpack.c.l.b16 %v2066
  %v2823 = vunpack.c.h.b16 %v2066
  %v2824 = vunpack.c.l.b16 %v2067
  %v2825 = vunpack.c.h.b16 %v2067
  %v2826 = vunpack.c.l.b16 %v2068
  %v2827 = vunpack.c.h.b16 %v2068
  %v2828 = vunpack.c.l.b16 %v2069
  %v2829 = vunpack.c.h.b16 %v2069
  %v2830 = vunpack.c.l.b16 %v2070
  %v2831 = vunpack.c.h.b16 %v2070
  %v2832 = vunpack.c.l.b16 %v2071
  %v2833 = vunpack.c.h.b16 %v2071
  %v2834 = vunpack.c.l.b16 %v2072
  %v2835 = vunpack.c.h.b16 %v2072
  %v2836 = vunpack.c.l.b16 %v2073
  %v2837 = vunpack.c.h.b16 %v2073
  %v2838 = vunpack.c.l.b16 %v2074
  %v2839 = vunpack.c.h.b16 %v2074
  %v2840 = vunpack.c.l.b16 %v2075
  %v2841 = vunpack.c.h.b16 %v2075
  %v2842 = vunpack.c.l.b16 %v2076
  %v2843 = vunpack.c.h.b16 %v2076
  %v2844 = vunpack.c.l.b16 %v2077
  %v2845 = vunpack.c.h.b16 %v2077
  %v2846 = vunpack.c.l.b16 %v2078
  %v2847 = vunpack.c.h.b16 %v2078
  %v2848 = vunpack.c.l.b16 %v2079
  %v2849 = vunpack.c.h.b16 %v2079
  %v2850 = vunpack.c.l.b16 %v2080
  %v2851 = vunpack.c.h.b16 %v2080
  %v2852 = vunpack.c.l.b16 %v2081
  %v2853 = vunpack.c.h.b16 %v2081
  %v2854 = vunpack.c.l.b16 %v2082
  %v2855 = vunpack.c.h.b16 %v2082
  %v2856 = vunpack.c.l.b16 %v2083
  %v2857 = vunpack.c.h.b16 %v2083
  %v2858 = vunpack.c.l.b16 %v2084
  %v2859 = vunpack.c.h.b16 %v2084
  %v2860 = vunpack.c.l.b16 %v2085
  %v2861 = vunpack.c.h.b16 %v2085
  %v2862 = vunpack.c.l.b16 %v2086
  %v2863 = vunpack.c.h.b16 %v2086
  %v2864 = vunpack.c.l.b16 %v2087
  %v2865 = vunpack.c.h.b16 %v2087
  %v2866 = vunpack.c.l.b16 %v2088
  %v2867 = vunpack.c.h.b16 %v2088
  %v2868 = vunpack.c.l.b16 %v2089
  %v2869 = vunpack.c.h.b16 %v2089
  %v2870 = vunpack.c.l.b16 %v2090
  %v2871 = vunpack.c.h.b16 %v2090
  %v2872 = vunpack.c.l.b16 %v2091
  %v2873 = vunpack.c.h.b16 %v2091
  %v2874 = vunpack.c.l.b16 %v2092
  %v2875 = vunpack.c.h.b16 %v2092
  %v2876 = vunpack.c.l.b16 %v2093
  %v2877 = vunpack.c.h.b16 %v2093
  %v2878 = vunpack.c.l.b16 %v2094
  %v2879 = vunpack.c.h.b16 %v2094
  %v2880 = vunpack.c.l.b16 %v2095
  %v2881 = vunpack.c.h.b16 %v2095
  %v2882 = vunpack.c.l.b16 %v2096
  %v2883 = vunpack.c.h.b16 %v2096
  %v2884 = vunpack.c.l.b16 %v2097
  %v2885 = vunpack.c.h.b16 %v2097
  %v2886 = vunpack.c.l.b16 %v2098
  %v2887 = vunpack.c.h.b16 %v2098
  %v2888 = vunpack.c.l.b16 %v2099
  %v2889 = vunpack.c.h.b16 %v2099
  %v2890 = vunpack.c.l.b16 %v2100
  %v2891 = vunpack.c.h.b16 %v2100
  %v2892 = vunpack.c.l.b16 %v2101
  %v2893 = vunpack.c.h.b16 %v2101
  %v2894 = vunpack.c.l.b16 %v2102
  %v2895 = vunpack.c.h.b16 %v2102
  %v2896 = vunpack.c.l.b16 %v2103
  %v2897 = vunpack.c.h.b16 %v2103
  %v2898 = vunpack.c.l.b16 %v2104
  %v2899 = vunpack.c.h.b16 %v2104
  %v2900 = vunpack.c.l.b16 %v2105
  %v2901 = vunpack.c.h.b16 %v2105
  %v2902 = vunpack.c.l.b16 %v2106
  %v2903 = vunpack.c.h.b16 %v2106
  %v2904 = vunpack.c.l.b16 %v2107
  %v2905 = vunpack.c.h.b16 %v2107
  %v2906 = vunpack.c.l.b16 %v2108
  %v2907 = vunpack.c.h.b16 %v2108
  %v2908 = vunpack.c.l.b16 %v2109
  %v2909 = vunpack.c.h.b16 %v2109
  %v2910 = vunpack.c.l.b16 %v2110
  %v2911 = vunpack.c.h.b16 %v2110
  %v2912 = vunpack.c.l.b16 %v2111
  %v2913 = vunpack.c.h.b16 %v2111
  %v2914 = vunpack.c.l.b16 %v2112
  %v2915 = vunpack.c.h.b16 %v2112
  %v2916 = vunpack.c.l.b16 %v2113
  %v2917 = vunpack.c.h.b16 %v2113
  %v2918 = vunpack.c.l.b16 %v2114
  %v2919 = vunpack.c.h.b16 %v2114
  %v2920 = vunpack.c.l.b16 %v2115
  %v2921 = vunpack.c.h.b16 %v2115
  %v2922 = vunpack.c.l.b16 %v2116
  %v2923 = vunpack.c.h.b16 %v2116
  %v2924 = vunpack.c.l.b16 %v2117
  %v2925 = vunpack.c.h.b16 %v2117
  %v2926 = vunpack.c.l.b16 %v2118
  %v2927 = vunpack.c.h.b16 %v2118
  %v2928 = vunpack.c.l.b16 %v2119
  %v2929 = vunpack.c.h.b16 %v2119
  %v2930 = vunpack.c.l.b16 %v2120
  %v2931 = vunpack.c.h.b16 %v2120
  %v2932 = vunpack.c.l.b16 %v2121
  %v2933 = vunpack.c.h.b16 %v2121
  %v2934 = vunpack.c.l.b16 %v2122
  %v2935 = vunpack.c.h.b16 %v2122
  %v2936 = vunpack.c.l.b16 %v2123
  %v2937 = vunpack.c.h.b16 %v2123
  %v2938 = vpack.c.b16 %v2430, %v2426
  %v2939 = vpack.c.b16 %v2431, %v2427
  %v2940 = vpack.c.b16 %v2432, %v2428
  %v2941 = vpack.c.b16 %v2433, %v2429
  %v2942 = vpack.c.b16 %v2438, %v2434
  %v2943 = vpack.c.b16 %v2439, %v2435
  %v2944 = vpack.c.b16 %v2440, %v2436
  %v2945 = vpack.c.b16 %v2441, %v2437
  %v2946 = vpack.c.b16 %v2446, %v2442
  %v2947 = vpack.c.b16 %v2447, %v2443
  %v2948 = vpack.c.b16 %v2448, %v2444
  %v2949 = vpack.c.b16 %v2449, %v2445
  %v2950 = vpack.c.b16 %v2454, %v2450
  %v2951 = vpack.c.b16 %v2455, %v2451
  %v2952 = vpack.c.b16 %v2456, %v2452
  %v2953 = vpack.c.b16 %v2457, %v2453
  %v2954 = vpack.c.b16 %v2462, %v2458
  %v2955 = vpack.c.b16 %v2463, %v2459
  %v2956 = vpack.c.b16 %v2464, %v2460
  %v2957 = vpack.c.b16 %v2465, %v2461
  %v2958 = vpack.c.b16 %v2470, %v2466
  %v2959 = vpack.c.b16 %v2471, %v2467
  %v2960 = vpack.c.b16 %v2472, %v2468
  %v2961 = vpack.c.b16 %v2473, %v2469
  %v2962 = vpack.c.b16 %v2478, %v2474
  %v2963 = vpack.c.b16 %v2479, %v2475
  %v2964 = vpack.c.b16 %v2480, %v2476
  %v2965 = vpack.c.b16 %v2481, %v2477
  %v2966 = vpack.c.b16 %v2486, %v2482
  %v2967 = vpack.c.b16 %v2487, %v2483
  %v2968 = vpack.c.b16 %v2488, %v2484
  %v2969 = vpack.c.b16 %v2489, %v2485
  %v2970 = vpack.c.b16 %v2494, %v2490
  %v2971 = vpack.c.b16 %v2495, %v2491
  %v2972 = vpack.c.b16 %v2496, %v2492
  %v2973 = vpack.c.b16 %v2497, %v2493
  %v2974 = vpack.c.b16 %v2502, %v2498
  %v2975 = vpack.c.b16 %v2503, %v2499
  %v2976 = vpack.c.b16 %v2504, %v2500
  %v2977 = vpack.c.b16 %v2505, %v2501
  %v2978 = vpack.c.b16 %v2510, %v2506
  %v2979 = vpack.c.b16 %v2511, %v2507
  %v2980 = vpack.c.b16 %v2512, %v2508
  %v2981 = vpack.c.b16 %v2513, %v2509
  %v2982 = vpack.c.b16 %v2518, %v2514
  %v2983 = vpack.c.b16 %v2519, %v2515
  %v2984 = vpack.c.b16 %v2520, %v2516
  %v2985 = vpack.c.b16 %v2521, %v2517
  %v2986 = vpack.c.b16 %v2526, %v2522
  %v2987 = vpack.c.b16 %v2527, %v2523
  %v2988 = vpack.c.b16 %v2528, %v2524
  %v2989 = vpack.c.b16 %v2529, %v2525
  %v2990 = vpack.c.b16 %v2534, %v2530
  %v2991 = vpack.c.b16 %v2535, %v2531
  %v2992 = vpack.c.b16 %v2536, %v2532
  %v2993 = vpack.c.b16 %v2537, %v2533
  %v2994 = vpack.c.b16 %v2542, %v2538
  %v2995 = vpack.c.b16 %v2543, %v2539
  %v2996 = vpack.c.b16 %v2544, %v2540
  %v2997 = vpack.c.b16 %v2545, %v2541
  %v2998 = vpack.c.b16 %v2550, %v2546
  %v2999 = vpack.c.b16 %v2551, %v2547
  %v3000 = vpack.c.b16 %v2552, %v2548
  %v3001 = vpack.c.b16 %v2553, %v2549
  %v3002 = vpack.c.b16 %v2558, %v2554
  %v3003 = vpack.c.b16 %v2559, %v2555
  %v3004 = vpack.c.b16 %v2560, %v2556
  %v3005 = vpack.c.b16 %v2561, %v2557
  %v3006 = vpack.c.b16 %v2566, %v2562
  %v3007 = vpack.c.b16 %v2567, %v2563
  %v3008 = vpack.c.b16 %v2568, %v2564
  %v3009 = vpack.c.b16 %v2569, %v2565
  %v3010 = vpack.c.b16 %v2574, %v2570
  %v3011 = vpack.c.b16 %v2575, %v2571
  %v3012 = vpack.c.b16 %v2576, %v2572
  %v3013 = vpack.c.b16 %v2577, %v2573
  %v3014 = vpack.c.b16 %v2582, %v2578
  %v3015 = vpack.c.b16 %v2583, %v2579
  %v3016 = vpack.c.b16 %v2584, %v2580
  %v3017 = vpack.c.b16 %v2585, %v2581
  %v3018 = vpack.c.b16 %v2590, %v2586
  %v3019 = vpack.c.b16 %v2591, %v2587
  %v3020 = vpack.c.b16 %v2592, %v2588
  %v3021 = vpack.c.b16 %v2593, %v2589
  %v3022 = vpack.c.b16 %v2598, %v2594
  %v3023 = vpack.c.b16 %v2599, %v2595
  %v3024 = vpack.c.b16 %v2600, %v2596
  %v3025 = vpack.c.b16 %v2601, %v2597
  %v3026 = vpack.c.b16 %v2606, %v2602
  %v3027 = vpack.c.b16 %v2607, %v2603
  %v3028 = vpack.c.b16 %v2608, %v2604
  %v3029 = vpack.c.b16 %v2609, %v2605
  %v3030 = vpack.c.b16 %v2614, %v2610
  %v3031 = vpack.c.b16 %v2615, %v2611
  %v3032 = vpack.c.b16 %v2616, %v2612
  %v3033 = vpack.c.b16 %v2617, %v2613
  %v3034 = vpack.c.b16 %v2622, %v2618
  %v3035 = vpack.c.b16 %v2623, %v2619
  %v3036 = vpack.c.b16 %v2624, %v2620
  %v3037 = vpack.c.b16 %v2625, %v2621
  %v3038 = vpack.c.b16 %v2630, %v2626
  %v3039 = vpack.c.b16 %v2631, %v2627
  %v3040 = vpack.c.b16 %v2632, %v2628
  %v3041 = vpack.c.b16 %v2633, %v2629
  %v3042 = vpack.c.b16 %v2638, %v2634
  %v3043 = vpack.c.b16 %v2639, %v2635
  %v3044 = vpack.c.b16 %v2640, %v2636
  %v3045 = vpack.c.b16 %v2641, %v2637
  %v3046 = vpack.c.b16 %v2646, %v2642
  %v3047 = vpack.c.b16 %v2647, %v2643
  %v3048 = vpack.c.b16 %v2648, %v2644
  %v3049 = vpack.c.b16 %v2649, %v2645
  %v3050 = vpack.c.b16 %v2654, %v2650
  %v3051 = vpack.c.b16 %v2655, %v2651
  %v3052 = vpack.c.b16 %v2656, %v2652
  %v3053 = vpack.c.b16 %v2657, %v2653
  %v3054 = vpack.c.b16 %v2662, %v2658
  %v3055 = vpack.c.b16 %v2663, %v2659
  %v3056 = vpack.c.b16 %v2664, %v2660
  %v3057 = vpack.c.b16 %v2665, %v2661
  %v3058 = vpack.c.b16 %v2670, %v2666
  %v3059 = vpack.c.b16 %v2671, %v2667
  %v3060 = vpack.c.b16 %v2672, %v2668
  %v3061 = vpack.c.b16 %v2673, %v2669
  %v3062 = vpack.c.b16 %v2678, %v2674
  %v3063 = vpack.c.b16 %v2679, %v2675
  %v3064 = vpack.c.b16 %v2680, %v2676
  %v3065 = vpack.c.b16 %v2681, %v2677
  %v3066 = vpack.c.b16 %v2686, %v2682
  %v3067 = vpack.c.b16 %v2687, %v2683
  %v3068 = vpack.c.b16 %v2688, %v2684
  %v3069 = vpack.c.b16 %v2689, %v2685
  %v3070 = vpack.c.b16 %v2694, %v2690
  %v3071 = vpack.c.b16 %v2695, %v2691
  %v3072 = vpack.c.b16 %v2696, %v2692
  %v3073 = vpack.c.b16 %v2697, %v2693
  %v3074 = vpack.c.b16 %v2702, %v2698
  %v3075 = vpack.c.b16 %v2703, %v2699
  %v3076 = vpack.c.b16 %v2704, %v2700
  %v3077 = vpack.c.b16 %v2705, %v2701
  %v3078 = vpack.c.b16 %v2710, %v2706
  %v3079 = vpack.c.b16 %v2711, %v2707
  %v3080 = vpack.c.b16 %v2712, %v2708
  %v3081 = vpack.c.b16 %v2713, %v2709
  %v3082 = vpack.c.b16 %v2718, %v2714
  %v3083 = vpack.c.b16 %v2719, %v2715
  %v3084 = vpack.c.b16 %v2720, %v2716
  %v3085 = vpack.c.b16 %v2721, %v2717
  %v3086 = vpack.c.b16 %v2726, %v2722
  %v3087 = vpack.c.b16 %v2727, %v2723
  %v3088 = vpack.c.b16 %v2728, %v2724
  %v3089 = vpack.c.b16 %v2729, %v2725
  %v3090 = vpack.c.b16 %v2734, %v2730
  %v3091 = vpack.c.b16 %v2735, %v2731
  %v3092 = vpack.c.b16 %v2736, %v2732
  %v3093 = vpack.c.b16 %v2737, %v2733
  %v3094 = vpack.c.b16 %v2742, %v2738
  %v3095 = vpack.c.b16 %v2743, %v2739
  %v3096 = vpack.c.b16 %v2744, %v2740
  %v3097 = vpack.c.b16 %v2745, %v2741
  %v3098 = vpack.c.b16 %v2750, %v2746
  %v3099 = vpack.c.b16 %v2751, %v2747
  %v3100 = vpack.c.b16 %v2752, %v2748
  %v3101 = vpack.c.b16 %v2753, %v2749
  %v3102 = vpack.c.b16 %v2758, %v2754
  %v3103 = vpack.c.b16 %v2759, %v2755
  %v3104 = vpack.c.b16 %v2760, %v2756
  %v3105 = vpack.c.b16 %v2761, %v2757
  %v3106 = vpack.c.b16 %v2766, %v2762
  %v3107 = vpack.c.b16 %v2767, %v2763
  %v3108 = vpack.c.b16 %v2768, %v2764
  %v3109 = vpack.c.b16 %v2769, %v2765
  %v3110 = vpack.c.b16 %v2774, %v2770
  %v3111 = vpack.c.b16 %v2775, %v2771
  %v3112 = vpack.c.b16 %v2776, %v2772
  %v3113 = vpack.c.b16 %v2777, %v2773
  %v3114 = vpack.c.b16 %v2782, %v2778
  %v3115 = vpack.c.b16 %v2783, %v2779
  %v3116 = vpack.c.b16 %v2784, %v2780
  %v3117 = vpack.c.b16 %v2785, %v2781
  %v3118 = vpack.c.b16 %v2790, %v2786
  %v3119 = vpack.c.b16 %v2791, %v2787
  %v3120 = vpack.c.b16 %v2792, %v2788
  %v3121 = vpack.c.b16 %v2793, %v2789
  %v3122 = vpack.c.b16 %v2798, %v2794
  %v3123 = vpack.c.b16 %v2799, %v2795
  %v3124 = vpack.c.b16 %v2800, %v2796
  %v3125 = vpack.c.b16 %v2801, %v2797
  %v3126 = vpack.c.b16 %v2806, %v2802
  %v3127 = vpack.c.b16 %v2807, %v2803
  %v3128 = vpack.c.b16 %v2808, %v2804
  %v3129 = vpack.c.b16 %v2809, %v2805
  %v3130 = vpack.c.b16 %v2814, %v2810
  %v3131 = vpack.c.b16 %v2815, %v2811
  %v3132 = vpack.c.b16 %v2816, %v2812
  %v3133 = vpack.c.b16 %v2817, %v2813
  %v3134 = vpack.c.b16 %v2822, %v2818
  %v3135 = vpack.c.b16 %v2823, %v2819
  %v3136 = vpack.c.b16 %v2824, %v2820
  %v3137 = vpack.c.b16 %v2825, %v2821
  %v3138 = vpack.c.b16 %v2830, %v2826
  %v3139 = vpack.c.b16 %v2831, %v2827
  %v3140 = vpack.c.b16 %v2832, %v2828
  %v3141 = vpack.c.b16 %v2833, %v2829
  %v3142 = vpack.c.b16 %v2838, %v2834
  %v3143 = vpack.c.b16 %v2839, %v2835
  %v3144 = vpack.c.b16 %v2840, %v2836
  %v3145 = vpack.c.b16 %v2841, %v2837
  %v3146 = vpack.c.b16 %v2846, %v2842
  %v3147 = vpack.c.b16 %v2847, %v2843
  %v3148 = vpack.c.b16 %v2848, %v2844
  %v3149 = vpack.c.b16 %v2849, %v2845
  %v3150 = vpack.c.b16 %v2854, %v2850
  %v3151 = vpack.c.b16 %v2855, %v2851
  %v3152 = vpack.c.b16 %v2856, %v2852
  %v3153 = vpack.c.b16 %v2857, %v2853
  %v3154 = vpack.c.b16 %v2862, %v2858
  %v3155 = vpack.c.b16 %v2863, %v2859
  %v3156 = vpack.c.b16 %v2864, %v2860
  %v3157 = vpack.c.b16 %v2865, %v2861
  %v3158 = vpack.c.b16 %v2870, %v2866
  %v3159 = vpack.c.b16 %v2871, %v2867
  %v3160 = vpack.c.b16 %v2872, %v2868
  %v3161 = vpack.c.b16 %v2873, %v2869
  %v3162 = vpack.c.b16 %v2878, %v2874
  %v3163 = vpack.c.b16 %v2879, %v2875
  %v3164 = vpack.c.b16 %v2880, %v2876
  %v3165 = vpack.c.b16 %v2881, %v2877
  %v3166 = vpack.c.b16 %v2886, %v2882
  %v3167 = vpack.c.b16 %v2887, %v2883
  %v3168 = vpack.c.b16 %v2888, %v2884
  %v3169 = vpack.c.b16 %v2889, %v2885
  %v3170 = vpack.c.b16 %v2894, %v2890
  %v3171 = vpack.c.b16 %v2895, %v2891
  %v3172 = vpack.c.b16 %v2896, %v2892
  %v3173 = vpack.c.b16 %v2897, %v2893
  %v3174 = vpack.c.b16 %v2902, %v2898
  %v3175 = vpack.c.b16 %v2903, %v2899
  %v3176 = vpack.c.b16 %v2904, %v2900
  %v3177 = vpack.c.b16 %v2905, %v2901
  %v3178 = vpack.c.b16 %v2910, %v2906
  %v3179 = vpack.c.b16 %v2911, %v2907
  %v3180 = vpack.c.b16 %v2912, %v2908
  %v3181 = vpack.c.b16 %v2913, %v2909
  %v3182 = vpack.c.b16 %v2918, %v2914
  %v3183 = vpack.c.b16 %v2919, %v2915
  %v3184 = vpack.c.b16 %v2920, %v2916
  %v3185 = vpack.c.b16 %v2921, %v2917
  %v3186 = vpack.c.b16 %v2926, %v2922
  %v3187 = vpack.c.b16 %v2927, %v2923
  %v3188 = vpack.c.b16 %v2928, %v2924
  %v3189 = vpack.c.b16 %v2929, %v2925
  %v3190 = vpack.c.b16 %v2934, %v2930
  %v3191 = vpack.c.b16 %v2935, %v2931
  %v3192 = vpack.c.b16 %v2936, %v2932
  %v3193 = vpack.c.b16 %v2937, %v2933
  %3450 = vmatprep.subr.bf16.mxu0 %v2967
  %3451 = vmatpush1.bf16.msra.mxu0 %v2966
  %3452 = vmatprep.subr.bf16.mxu0 %v2963
  %3453 = vmatpush1.bf16.msra.mxu0 %v2962
  %3454 = vmatprep.subr.bf16.mxu0 %v2959
  %3455 = vmatpush1.bf16.msra.mxu0 %v2958
  %3456 = vmatprep.subr.bf16.mxu0 %v2955
  %3457 = vmatpush1.bf16.msra.mxu0 %v2954
  %3458 = vmatprep.subr.bf16.mxu0 %v2951
  %3459 = vmatpush1.bf16.msra.mxu0 %v2950
  %3460 = vmatprep.subr.bf16.mxu0 %v2947
  %3461 = vmatpush1.bf16.msra.mxu0 %v2946
  %3462 = vmatprep.subr.bf16.mxu0 %v2943
  %3463 = vmatpush1.bf16.msra.mxu0 %v2942
  %3464 = vmatprep.subr.bf16.mxu0 %v2939
  %3465 = vmatpush1.bf16.msra.mxu0 %v2938
  %3466 = vmatprep.subr.bf16.mxu0 %v2999
  %3467 = vmatpush2.bf16.msra.mxu0 %v2998
  %3468 = vmatprep.subr.bf16.mxu0 %v2995
  %3469 = vmatpush2.bf16.msra.mxu0 %v2994
  %3470 = vmatprep.subr.bf16.mxu0 %v2991
  %3471 = vmatpush2.bf16.msra.mxu0 %v2990
  %3472 = vmatprep.subr.bf16.mxu0 %v2987
  %3473 = vmatpush2.bf16.msra.mxu0 %v2986
  %3474 = vmatprep.subr.bf16.mxu0 %v2983
  %3475 = vmatpush2.bf16.msra.mxu0 %v2982
  %3476 = vmatprep.subr.bf16.mxu0 %v2979
  %3477 = vmatpush2.bf16.msra.mxu0 %v2978
  %3478 = vmatprep.subr.bf16.mxu0 %v2975
  %3479 = vmatpush2.bf16.msra.mxu0 %v2974
  %3480 = vmatprep.subr.bf16.mxu0 %v2971
  %3481 = vmatpush2.bf16.msra.mxu0 %v2970
  %3482 = vmatprep.mubr.bf16.mxu0 %v2155
  %3483 = vmatmul.mubr.bf16.gmra.mxu0 %v2154
  %v3484 = vpop.f32.mrf.mxu0
  %v3485 = vadd.f32 %v2129, %v3484
  %v3486 = vpop.f32.mrf.mxu0
  %v3487 = vadd.f32 %v2133, %v3486
  %v3488 = vpop.f32.mrf.mxu0
  %v3489 = vpop.f32.mrf.mxu0
  %3490 = vdwg.mxu0
  %3491 = vmatprep.subr.bf16.mxu0 %v3031
  %3492 = vmatpush1.bf16.msra.mxu0 %v3030
  %3493 = vmatprep.subr.bf16.mxu0 %v3027
  %3494 = vmatpush1.bf16.msra.mxu0 %v3026
  %3495 = vmatprep.subr.bf16.mxu0 %v3023
  %3496 = vmatpush1.bf16.msra.mxu0 %v3022
  %3497 = vmatprep.subr.bf16.mxu0 %v3019
  %3498 = vmatpush1.bf16.msra.mxu0 %v3018
  %3499 = vmatprep.subr.bf16.mxu0 %v3015
  %3500 = vmatpush1.bf16.msra.mxu0 %v3014
  %3501 = vmatprep.subr.bf16.mxu0 %v3011
  %3502 = vmatpush1.bf16.msra.mxu0 %v3010
  %3503 = vmatprep.subr.bf16.mxu0 %v3007
  %3504 = vmatpush1.bf16.msra.mxu0 %v3006
  %3505 = vmatprep.subr.bf16.mxu0 %v3003
  %3506 = vmatpush1.bf16.msra.mxu0 %v3002
  %3507 = vmatprep.subr.bf16.mxu0 %v3063
  %3508 = vmatpush2.bf16.msra.mxu0 %v3062
  %3509 = vmatprep.subr.bf16.mxu0 %v3059
  %3510 = vmatpush2.bf16.msra.mxu0 %v3058
  %3511 = vmatprep.subr.bf16.mxu0 %v3055
  %3512 = vmatpush2.bf16.msra.mxu0 %v3054
  %3513 = vmatprep.subr.bf16.mxu0 %v3051
  %3514 = vmatpush2.bf16.msra.mxu0 %v3050
  %3515 = vmatprep.subr.bf16.mxu0 %v3047
  %3516 = vmatpush2.bf16.msra.mxu0 %v3046
  %3517 = vmatprep.subr.bf16.mxu0 %v3043
  %3518 = vmatpush2.bf16.msra.mxu0 %v3042
  %3519 = vmatprep.subr.bf16.mxu0 %v3039
  %3520 = vmatpush2.bf16.msra.mxu0 %v3038
  %3521 = vmatprep.subr.bf16.mxu0 %v3035
  %3522 = vmatpush2.bf16.msra.mxu0 %v3034
  %3523 = vmatprep.mubr.bf16.mxu0 %v2157
  %3524 = vmatmul.mubr.bf16.gmra.mxu0 %v2156
  %v3525 = vpop.f32.mrf.mxu0
  %v3526 = vadd.f32 %v3485, %v3525
  %v3527 = vpop.f32.mrf.mxu0
  %v3528 = vadd.f32 %v3487, %v3527
  %v3529 = vpop.f32.mrf.mxu0
  %v3530 = vpop.f32.mrf.mxu0
  %3531 = vdwg.mxu0
  %3532 = vmatprep.subr.bf16.mxu0 %v3095
  %3533 = vmatpush1.bf16.msra.mxu0 %v3094
  %3534 = vmatprep.subr.bf16.mxu0 %v3091
  %3535 = vmatpush1.bf16.msra.mxu0 %v3090
  %3536 = vmatprep.subr.bf16.mxu0 %v3087
  %3537 = vmatpush1.bf16.msra.mxu0 %v3086
  %3538 = vmatprep.subr.bf16.mxu0 %v3083
  %3539 = vmatpush1.bf16.msra.mxu0 %v3082
  %3540 = vmatprep.subr.bf16.mxu0 %v3079
  %3541 = vmatpush1.bf16.msra.mxu0 %v3078
  %3542 = vmatprep.subr.bf16.mxu0 %v3075
  %3543 = vmatpush1.bf16.msra.mxu0 %v3074
  %3544 = vmatprep.subr.bf16.mxu0 %v3071
  %3545 = vmatpush1.bf16.msra.mxu0 %v3070
  %3546 = vmatprep.subr.bf16.mxu0 %v3067
  %3547 = vmatpush1.bf16.msra.mxu0 %v3066
  %3548 = vmatprep.subr.bf16.mxu0 %v3127
  %3549 = vmatpush2.bf16.msra.mxu0 %v3126
  %3550 = vmatprep.subr.bf16.mxu0 %v3123
  %3551 = vmatpush2.bf16.msra.mxu0 %v3122
  %3552 = vmatprep.subr.bf16.mxu0 %v3119
  %3553 = vmatpush2.bf16.msra.mxu0 %v3118
  %3554 = vmatprep.subr.bf16.mxu0 %v3115
  %3555 = vmatpush2.bf16.msra.mxu0 %v3114
  %3556 = vmatprep.subr.bf16.mxu0 %v3111
  %3557 = vmatpush2.bf16.msra.mxu0 %v3110
  %3558 = vmatprep.subr.bf16.mxu0 %v3107
  %3559 = vmatpush2.bf16.msra.mxu0 %v3106
  %3560 = vmatprep.subr.bf16.mxu0 %v3103
  %3561 = vmatpush2.bf16.msra.mxu0 %v3102
  %3562 = vmatprep.subr.bf16.mxu0 %v3099
  %3563 = vmatpush2.bf16.msra.mxu0 %v3098
  %3564 = vmatprep.mubr.bf16.mxu0 %v2159
  %3565 = vmatmul.mubr.bf16.gmra.mxu0 %v2158
  %v3566 = vpop.f32.mrf.mxu0
  %v3567 = vadd.f32 %v3526, %v3566
  %v3568 = vpop.f32.mrf.mxu0
  %v3569 = vadd.f32 %v3528, %v3568
  %v3570 = vpop.f32.mrf.mxu0
  %v3571 = vpop.f32.mrf.mxu0
  %3572 = vdwg.mxu0
  %3573 = vmatprep.subr.bf16.mxu0 %v3159
  %3574 = vmatpush1.bf16.msra.mxu0 %v3158
  %3575 = vmatprep.subr.bf16.mxu0 %v3155
  %3576 = vmatpush1.bf16.msra.mxu0 %v3154
  %3577 = vmatprep.subr.bf16.mxu0 %v3151
  %3578 = vmatpush1.bf16.msra.mxu0 %v3150
  %3579 = vmatprep.subr.bf16.mxu0 %v3147
  %3580 = vmatpush1.bf16.msra.mxu0 %v3146
  %3581 = vmatprep.subr.bf16.mxu0 %v3143
  %3582 = vmatpush1.bf16.msra.mxu0 %v3142
  %3583 = vmatprep.subr.bf16.mxu0 %v3139
  %3584 = vmatpush1.bf16.msra.mxu0 %v3138
  %3585 = vmatprep.subr.bf16.mxu0 %v3135
  %3586 = vmatpush1.bf16.msra.mxu0 %v3134
  %3587 = vmatprep.subr.bf16.mxu0 %v3131
  %3588 = vmatpush1.bf16.msra.mxu0 %v3130
  %3589 = vmatprep.subr.bf16.mxu0 %v3191
  %3590 = vmatpush2.bf16.msra.mxu0 %v3190
  %3591 = vmatprep.subr.bf16.mxu0 %v3187
  %3592 = vmatpush2.bf16.msra.mxu0 %v3186
  %3593 = vmatprep.subr.bf16.mxu0 %v3183
  %3594 = vmatpush2.bf16.msra.mxu0 %v3182
  %3595 = vmatprep.subr.bf16.mxu0 %v3179
  %3596 = vmatpush2.bf16.msra.mxu0 %v3178
  %3597 = vmatprep.subr.bf16.mxu0 %v3175
  %3598 = vmatpush2.bf16.msra.mxu0 %v3174
  %3599 = vmatprep.subr.bf16.mxu0 %v3171
  %3600 = vmatpush2.bf16.msra.mxu0 %v3170
  %3601 = vmatprep.subr.bf16.mxu0 %v3167
  %3602 = vmatpush2.bf16.msra.mxu0 %v3166
  %3603 = vmatprep.subr.bf16.mxu0 %v3163
  %3604 = vmatpush2.bf16.msra.mxu0 %v3162
  %3605 = vmatprep.mubr.bf16.mxu0 %v2161
  %3606 = vmatmul.mubr.bf16.gmra.mxu0 %v2160
  %v3607 = vpop.f32.mrf.mxu0
  %v3608 = vadd.f32 %v3567, %v3607
  %v3609 = vpop.f32.mrf.mxu0
  %v3610 = vadd.f32 %v3569, %v3609
  %v3611 = vpop.f32.mrf.mxu0
  %v3612 = vpop.f32.mrf.mxu0
  %3613 = vdwg.mxu0
  %3614 = vmatprep.subr.bf16.mxu0 %v2969
  %3615 = vmatpush1.bf16.msra.mxu0 %v2968
  %3616 = vmatprep.subr.bf16.mxu0 %v2965
  %3617 = vmatpush1.bf16.msra.mxu0 %v2964
  %3618 = vmatprep.subr.bf16.mxu0 %v2961
  %3619 = vmatpush1.bf16.msra.mxu0 %v2960
  %3620 = vmatprep.subr.bf16.mxu0 %v2957
  %3621 = vmatpush1.bf16.msra.mxu0 %v2956
  %3622 = vmatprep.subr.bf16.mxu0 %v2953
  %3623 = vmatpush1.bf16.msra.mxu0 %v2952
  %3624 = vmatprep.subr.bf16.mxu0 %v2949
  %3625 = vmatpush1.bf16.msra.mxu0 %v2948
  %3626 = vmatprep.subr.bf16.mxu0 %v2945
  %3627 = vmatpush1.bf16.msra.mxu0 %v2944
  %3628 = vmatprep.subr.bf16.mxu0 %v2941
  %3629 = vmatpush1.bf16.msra.mxu0 %v2940
  %3630 = vmatprep.subr.bf16.mxu0 %v3001
  %3631 = vmatpush2.bf16.msra.mxu0 %v3000
  %3632 = vmatprep.subr.bf16.mxu0 %v2997
  %3633 = vmatpush2.bf16.msra.mxu0 %v2996
  %3634 = vmatprep.subr.bf16.mxu0 %v2993
  %3635 = vmatpush2.bf16.msra.mxu0 %v2992
  %3636 = vmatprep.subr.bf16.mxu0 %v2989
  %3637 = vmatpush2.bf16.msra.mxu0 %v2988
  %3638 = vmatprep.subr.bf16.mxu0 %v2985
  %3639 = vmatpush2.bf16.msra.mxu0 %v2984
  %3640 = vmatprep.subr.bf16.mxu0 %v2981
  %3641 = vmatpush2.bf16.msra.mxu0 %v2980
  %3642 = vmatprep.subr.bf16.mxu0 %v2977
  %3643 = vmatpush2.bf16.msra.mxu0 %v2976
  %3644 = vmatprep.subr.bf16.mxu0 %v2973
  %3645 = vmatpush2.bf16.msra.mxu0 %v2972
  %3646 = vmatprep.mubr.bf16.mxu0 %v2155
  %3647 = vmatmul.mubr.bf16.gmra.mxu0 %v2154
  %v3648 = vpop.f32.mrf.mxu0
  %v3649 = vadd.f32 %v2137, %v3648
  %v3650 = vpop.f32.mrf.mxu0
  %v3651 = vadd.f32 %v2141, %v3650
  %v3652 = vpop.f32.mrf.mxu0
  %v3653 = vpop.f32.mrf.mxu0
  %3654 = vdwg.mxu0
  %3655 = vmatprep.subr.bf16.mxu0 %v3033
  %3656 = vmatpush1.bf16.msra.mxu0 %v3032
  %3657 = vmatprep.subr.bf16.mxu0 %v3029
  %3658 = vmatpush1.bf16.msra.mxu0 %v3028
  %3659 = vmatprep.subr.bf16.mxu0 %v3025
  %3660 = vmatpush1.bf16.msra.mxu0 %v3024
  %3661 = vmatprep.subr.bf16.mxu0 %v3021
  %3662 = vmatpush1.bf16.msra.mxu0 %v3020
  %3663 = vmatprep.subr.bf16.mxu0 %v3017
  %3664 = vmatpush1.bf16.msra.mxu0 %v3016
  %3665 = vmatprep.subr.bf16.mxu0 %v3013
  %3666 = vmatpush1.bf16.msra.mxu0 %v3012
  %3667 = vmatprep.subr.bf16.mxu0 %v3009
  %3668 = vmatpush1.bf16.msra.mxu0 %v3008
  %3669 = vmatprep.subr.bf16.mxu0 %v3005
  %3670 = vmatpush1.bf16.msra.mxu0 %v3004
  %3671 = vmatprep.subr.bf16.mxu0 %v3065
  %3672 = vmatpush2.bf16.msra.mxu0 %v3064
  %3673 = vmatprep.subr.bf16.mxu0 %v3061
  %3674 = vmatpush2.bf16.msra.mxu0 %v3060
  %3675 = vmatprep.subr.bf16.mxu0 %v3057
  %3676 = vmatpush2.bf16.msra.mxu0 %v3056
  %3677 = vmatprep.subr.bf16.mxu0 %v3053
  %3678 = vmatpush2.bf16.msra.mxu0 %v3052
  %3679 = vmatprep.subr.bf16.mxu0 %v3049
  %3680 = vmatpush2.bf16.msra.mxu0 %v3048
  %3681 = vmatprep.subr.bf16.mxu0 %v3045
  %3682 = vmatpush2.bf16.msra.mxu0 %v3044
  %3683 = vmatprep.subr.bf16.mxu0 %v3041
  %3684 = vmatpush2.bf16.msra.mxu0 %v3040
  %3685 = vmatprep.subr.bf16.mxu0 %v3037
  %3686 = vmatpush2.bf16.msra.mxu0 %v3036
  %3687 = vmatprep.mubr.bf16.mxu0 %v2157
  %3688 = vmatmul.mubr.bf16.gmra.mxu0 %v2156
  %v3689 = vpop.f32.mrf.mxu0
  %v3690 = vadd.f32 %v3649, %v3689
  %v3691 = vpop.f32.mrf.mxu0
  %v3692 = vadd.f32 %v3651, %v3691
  %v3693 = vpop.f32.mrf.mxu0
  %v3694 = vpop.f32.mrf.mxu0
  %3695 = vdwg.mxu0
  %3696 = vmatprep.subr.bf16.mxu0 %v3097
  %3697 = vmatpush1.bf16.msra.mxu0 %v3096
  %3698 = vmatprep.subr.bf16.mxu0 %v3093
  %3699 = vmatpush1.bf16.msra.mxu0 %v3092
  %3700 = vmatprep.subr.bf16.mxu0 %v3089
  %3701 = vmatpush1.bf16.msra.mxu0 %v3088
  %3702 = vmatprep.subr.bf16.mxu0 %v3085
  %3703 = vmatpush1.bf16.msra.mxu0 %v3084
  %3704 = vmatprep.subr.bf16.mxu0 %v3081
  %3705 = vmatpush1.bf16.msra.mxu0 %v3080
  %3706 = vmatprep.subr.bf16.mxu0 %v3077
  %3707 = vmatpush1.bf16.msra.mxu0 %v3076
  %3708 = vmatprep.subr.bf16.mxu0 %v3073
  %3709 = vmatpush1.bf16.msra.mxu0 %v3072
  %3710 = vmatprep.subr.bf16.mxu0 %v3069
  %3711 = vmatpush1.bf16.msra.mxu0 %v3068
  %3712 = vmatprep.subr.bf16.mxu0 %v3129
  %3713 = vmatpush2.bf16.msra.mxu0 %v3128
  %3714 = vmatprep.subr.bf16.mxu0 %v3125
  %3715 = vmatpush2.bf16.msra.mxu0 %v3124
  %3716 = vmatprep.subr.bf16.mxu0 %v3121
  %3717 = vmatpush2.bf16.msra.mxu0 %v3120
  %3718 = vmatprep.subr.bf16.mxu0 %v3117
  %3719 = vmatpush2.bf16.msra.mxu0 %v3116
  %3720 = vmatprep.subr.bf16.mxu0 %v3113
  %3721 = vmatpush2.bf16.msra.mxu0 %v3112
  %3722 = vmatprep.subr.bf16.mxu0 %v3109
  %3723 = vmatpush2.bf16.msra.mxu0 %v3108
  %3724 = vmatprep.subr.bf16.mxu0 %v3105
  %3725 = vmatpush2.bf16.msra.mxu0 %v3104
  %3726 = vmatprep.subr.bf16.mxu0 %v3101
  %3727 = vmatpush2.bf16.msra.mxu0 %v3100
  %3728 = vmatprep.mubr.bf16.mxu0 %v2159
  %3729 = vmatmul.mubr.bf16.gmra.mxu0 %v2158
  %v3730 = vpop.f32.mrf.mxu0
  %v3731 = vadd.f32 %v3690, %v3730
  %v3732 = vpop.f32.mrf.mxu0
  %v3733 = vadd.f32 %v3692, %v3732
  %v3734 = vpop.f32.mrf.mxu0
  %v3735 = vpop.f32.mrf.mxu0
  %3736 = vdwg.mxu0
  %3737 = vmatprep.subr.bf16.mxu0 %v3161
  %3738 = vmatpush1.bf16.msra.mxu0 %v3160
  %3739 = vmatprep.subr.bf16.mxu0 %v3157
  %3740 = vmatpush1.bf16.msra.mxu0 %v3156
  %3741 = vmatprep.subr.bf16.mxu0 %v3153
  %3742 = vmatpush1.bf16.msra.mxu0 %v3152
  %3743 = vmatprep.subr.bf16.mxu0 %v3149
  %3744 = vmatpush1.bf16.msra.mxu0 %v3148
  %3745 = vmatprep.subr.bf16.mxu0 %v3145
  %3746 = vmatpush1.bf16.msra.mxu0 %v3144
  %3747 = vmatprep.subr.bf16.mxu0 %v3141
  %3748 = vmatpush1.bf16.msra.mxu0 %v3140
  %3749 = vmatprep.subr.bf16.mxu0 %v3137
  %3750 = vmatpush1.bf16.msra.mxu0 %v3136
  %3751 = vmatprep.subr.bf16.mxu0 %v3133
  %3752 = vmatpush1.bf16.msra.mxu0 %v3132
  %3753 = vmatprep.subr.bf16.mxu0 %v3193
  %3754 = vmatpush2.bf16.msra.mxu0 %v3192
  %3755 = vmatprep.subr.bf16.mxu0 %v3189
  %3756 = vmatpush2.bf16.msra.mxu0 %v3188
  %3757 = vmatprep.subr.bf16.mxu0 %v3185
  %3758 = vmatpush2.bf16.msra.mxu0 %v3184
  %3759 = vmatprep.subr.bf16.mxu0 %v3181
  %3760 = vmatpush2.bf16.msra.mxu0 %v3180
  %3761 = vmatprep.subr.bf16.mxu0 %v3177
  %3762 = vmatpush2.bf16.msra.mxu0 %v3176
  %3763 = vmatprep.subr.bf16.mxu0 %v3173
  %3764 = vmatpush2.bf16.msra.mxu0 %v3172
  %3765 = vmatprep.subr.bf16.mxu0 %v3169
  %3766 = vmatpush2.bf16.msra.mxu0 %v3168
  %3767 = vmatprep.subr.bf16.mxu0 %v3165
  %3768 = vmatpush2.bf16.msra.mxu0 %v3164
  %3769 = vmatprep.mubr.bf16.mxu0 %v2161
  %3770 = vmatmul.mubr.bf16.gmra.mxu0 %v2160
  %v3771 = vpop.f32.mrf.mxu0
  %v3772 = vadd.f32 %v3731, %v3771
  %v3773 = vpop.f32.mrf.mxu0
  %v3774 = vadd.f32 %v3733, %v3773
  %v3775 = vpop.f32.mrf.mxu0
  %v3776 = vpop.f32.mrf.mxu0
  %3777 = vdwg.mxu0
  %v3778 = vmax.f32 %v3608, 0.0
  %v3779 = vmax.f32 %v3610, 0.0
  %v3780 = vmax.f32 %v3772, 0.0
  %v3781 = vmax.f32 %v3774, 0.0
  %v3782 = vpack.c.bf16 %v3778, %v3778
  %v3783 = vpack.c.bf16 %v3779, %v3779
  %v3784 = vpack.c.bf16 %v3780, %v3780
  %v3785 = vpack.c.bf16 %v3781, %v3781
  %s3786 = smul.u32 4, 64
  %s3787 = smul.u32 %s3786, 2
  %s3788 = sshll.u32 %s3787, 4
  %3789 = dma.done %s598, %s3788
  %v3790 = vld [vmem:[#allocation4] sm:$0xff]
  %v3791 = vld [vmem:[#allocation4 + $0x8] sm:$0xff]
  %v3792 = vld [vmem:[#allocation4 + $0x10] sm:$0xff]
  %v3793 = vld [vmem:[#allocation4 + $0x18] sm:$0xff]
  %v3794 = vld [vmem:[#allocation4 + $0x20] sm:$0xff]
  %v3795 = vld [vmem:[#allocation4 + $0x28] sm:$0xff]
  %v3796 = vld [vmem:[#allocation4 + $0x30] sm:$0xff]
  %v3797 = vld [vmem:[#allocation4 + $0x38] sm:$0xff]
  %v3798 = vld [vmem:[#allocation4 + $0x40] sm:$0xff]
  %v3799 = vld [vmem:[#allocation4 + $0x48] sm:$0xff]
  %v3800 = vld [vmem:[#allocation4 + $0x50] sm:$0xff]
  %v3801 = vld [vmem:[#allocation4 + $0x58] sm:$0xff]
  %v3802 = vld [vmem:[#allocation4 + $0x60] sm:$0xff]
  %v3803 = vld [vmem:[#allocation4 + $0x68] sm:$0xff]
  %v3804 = vld [vmem:[#allocation4 + $0x70] sm:$0xff]
  %v3805 = vld [vmem:[#allocation4 + $0x78] sm:$0xff]
  %v3806 = vld [vmem:[#allocation4 + $0x80] sm:$0xff]
  %v3807 = vld [vmem:[#allocation4 + $0x88] sm:$0xff]
  %v3808 = vld [vmem:[#allocation4 + $0x90] sm:$0xff]
  %v3809 = vld [vmem:[#allocation4 + $0x98] sm:$0xff]
  %v3810 = vld [vmem:[#allocation4 + $0xa0] sm:$0xff]
  %v3811 = vld [vmem:[#allocation4 + $0xa8] sm:$0xff]
  %v3812 = vld [vmem:[#allocation4 + $0xb0] sm:$0xff]
  %v3813 = vld [vmem:[#allocation4 + $0xb8] sm:$0xff]
  %v3814 = vld [vmem:[#allocation4 + $0xc0] sm:$0xff]
  %v3815 = vld [vmem:[#allocation4 + $0xc8] sm:$0xff]
  %v3816 = vld [vmem:[#allocation4 + $0xd0] sm:$0xff]
  %v3817 = vld [vmem:[#allocation4 + $0xd8] sm:$0xff]
  %v3818 = vld [vmem:[#allocation4 + $0xe0] sm:$0xff]
  %v3819 = vld [vmem:[#allocation4 + $0xe8] sm:$0xff]
  %v3820 = vld [vmem:[#allocation4 + $0xf0] sm:$0xff]
  %v3821 = vld [vmem:[#allocation4 + $0xf8] sm:$0xff]
  %v3822 = vld [vmem:[#allocation4 + $0x100] sm:$0xff]
  %v3823 = vld [vmem:[#allocation4 + $0x108] sm:$0xff]
  %v3824 = vld [vmem:[#allocation4 + $0x110] sm:$0xff]
  %v3825 = vld [vmem:[#allocation4 + $0x118] sm:$0xff]
  %v3826 = vld [vmem:[#allocation4 + $0x120] sm:$0xff]
  %v3827 = vld [vmem:[#allocation4 + $0x128] sm:$0xff]
  %v3828 = vld [vmem:[#allocation4 + $0x130] sm:$0xff]
  %v3829 = vld [vmem:[#allocation4 + $0x138] sm:$0xff]
  %v3830 = vld [vmem:[#allocation4 + $0x140] sm:$0xff]
  %v3831 = vld [vmem:[#allocation4 + $0x148] sm:$0xff]
  %v3832 = vld [vmem:[#allocation4 + $0x150] sm:$0xff]
  %v3833 = vld [vmem:[#allocation4 + $0x158] sm:$0xff]
  %v3834 = vld [vmem:[#allocation4 + $0x160] sm:$0xff]
  %v3835 = vld [vmem:[#allocation4 + $0x168] sm:$0xff]
  %v3836 = vld [vmem:[#allocation4 + $0x170] sm:$0xff]
  %v3837 = vld [vmem:[#allocation4 + $0x178] sm:$0xff]
  %v3838 = vld [vmem:[#allocation4 + $0x180] sm:$0xff]
  %v3839 = vld [vmem:[#allocation4 + $0x188] sm:$0xff]
  %v3840 = vld [vmem:[#allocation4 + $0x190] sm:$0xff]
  %v3841 = vld [vmem:[#allocation4 + $0x198] sm:$0xff]
  %v3842 = vld [vmem:[#allocation4 + $0x1a0] sm:$0xff]
  %v3843 = vld [vmem:[#allocation4 + $0x1a8] sm:$0xff]
  %v3844 = vld [vmem:[#allocation4 + $0x1b0] sm:$0xff]
  %v3845 = vld [vmem:[#allocation4 + $0x1b8] sm:$0xff]
  %v3846 = vld [vmem:[#allocation4 + $0x1c0] sm:$0xff]
  %v3847 = vld [vmem:[#allocation4 + $0x1c8] sm:$0xff]
  %v3848 = vld [vmem:[#allocation4 + $0x1d0] sm:$0xff]
  %v3849 = vld [vmem:[#allocation4 + $0x1d8] sm:$0xff]
  %v3850 = vld [vmem:[#allocation4 + $0x1e0] sm:$0xff]
  %v3851 = vld [vmem:[#allocation4 + $0x1e8] sm:$0xff]
  %v3852 = vld [vmem:[#allocation4 + $0x1f0] sm:$0xff]
  %v3853 = vld [vmem:[#allocation4 + $0x1f8] sm:$0xff]
  %v3854 = vld [vmem:[%s1] sm:$0x1]
  %v3855 = vld [vmem:[%s7] sm:$0xff]
  %v3857 = vunpack.c.l.b16 %v3855
  %v3858 = vunpack.c.h.b16 %v3855
  %v3859 = vpack.c.b16 %v3857, %v3857
  %v3860 = vpack.c.b16 %v3858, %v3858
  %vm3861 = vcmask 64512
  %v3863 = vsel %vm3861, %v3854, 0
  %vm3865 = vcmask 1043456
  %v3867 = vsel %vm3865, %v3859, 0
  %v3870 = vsel %vm3865, %v3860, 0
  %3872 = vmatprep.subr.bf16.mxu0 0
  %3873 = vmatpush1.bf16.msra.mxu0 0
  %3874 = vmatprep.subr.bf16.mxu0 0
  %3875 = vmatpush1.bf16.msra.mxu0 0
  %3876 = vmatprep.subr.bf16.mxu0 0
  %3877 = vmatpush1.bf16.msra.mxu0 0
  %3878 = vmatprep.subr.bf16.mxu0 0
  %3879 = vmatpush1.bf16.msra.mxu0 0
  %3880 = vmatprep.subr.bf16.mxu0 0
  %3881 = vmatpush1.bf16.msra.mxu0 0
  %3882 = vmatprep.subr.bf16.mxu0 0
  %3883 = vmatpush1.bf16.msra.mxu0 0
  %3884 = vmatprep.subr.bf16.mxu0 0
  %3885 = vmatpush1.bf16.msra.mxu0 0
  %3886 = vmatprep.subr.bf16.mxu0 %v3870
  %3887 = vmatpush1.bf16.msra.mxu0 %v3867
  %3888 = vmatprep.subr.bf16.mxu0 0
  %3889 = vmatpush2.bf16.msra.mxu0 0
  %3890 = vmatprep.subr.bf16.mxu0 0
  %3891 = vmatpush2.bf16.msra.mxu0 0
  %3892 = vmatprep.subr.bf16.mxu0 0
  %3893 = vmatpush2.bf16.msra.mxu0 0
  %3894 = vmatprep.subr.bf16.mxu0 0
  %3895 = vmatpush2.bf16.msra.mxu0 0
  %3896 = vmatprep.subr.bf16.mxu0 0
  %3897 = vmatpush2.bf16.msra.mxu0 0
  %3898 = vmatprep.subr.bf16.mxu0 0
  %3899 = vmatpush2.bf16.msra.mxu0 0
  %3900 = vmatprep.subr.bf16.mxu0 0
  %3901 = vmatpush2.bf16.msra.mxu0 0
  %3902 = vmatprep.subr.bf16.mxu0 0
  %3903 = vmatpush2.bf16.msra.mxu0 0
  %3904 = vmatprep.mubr.bf16.mxu0 0
  %3905 = vmatmul.mubr.bf16.gmra.mxu0 %v3863
  %v3906 = vpop.f32.mrf.mxu0
  %v3907 = vadd.f32 0.0, %v3906
  %v3908 = vpop.f32.mrf.mxu0
  %v3909 = vadd.f32 0.0, %v3908
  %v3910 = vpop.f32.mrf.mxu0
  %v3911 = vpop.f32.mrf.mxu0
  %3912 = vdwg.mxu0
  %v3977 = vunpack.c.l.b16 %v3790
  %v3978 = vunpack.c.h.b16 %v3790
  %v3979 = vunpack.c.l.b16 %v3791
  %v3980 = vunpack.c.h.b16 %v3791
  %v3981 = vunpack.c.l.b16 %v3792
  %v3982 = vunpack.c.h.b16 %v3792
  %v3983 = vunpack.c.l.b16 %v3793
  %v3984 = vunpack.c.h.b16 %v3793
  %v3985 = vunpack.c.l.b16 %v3794
  %v3986 = vunpack.c.h.b16 %v3794
  %v3987 = vunpack.c.l.b16 %v3795
  %v3988 = vunpack.c.h.b16 %v3795
  %v3989 = vunpack.c.l.b16 %v3796
  %v3990 = vunpack.c.h.b16 %v3796
  %v3991 = vunpack.c.l.b16 %v3797
  %v3992 = vunpack.c.h.b16 %v3797
  %v3993 = vunpack.c.l.b16 %v3798
  %v3994 = vunpack.c.h.b16 %v3798
  %v3995 = vunpack.c.l.b16 %v3799
  %v3996 = vunpack.c.h.b16 %v3799
  %v3997 = vunpack.c.l.b16 %v3800
  %v3998 = vunpack.c.h.b16 %v3800
  %v3999 = vunpack.c.l.b16 %v3801
  %v4000 = vunpack.c.h.b16 %v3801
  %v4001 = vunpack.c.l.b16 %v3802
  %v4002 = vunpack.c.h.b16 %v3802
  %v4003 = vunpack.c.l.b16 %v3803
  %v4004 = vunpack.c.h.b16 %v3803
  %v4005 = vunpack.c.l.b16 %v3804
  %v4006 = vunpack.c.h.b16 %v3804
  %v4007 = vunpack.c.l.b16 %v3805
  %v4008 = vunpack.c.h.b16 %v3805
  %v4009 = vunpack.c.l.b16 %v3806
  %v4010 = vunpack.c.h.b16 %v3806
  %v4011 = vunpack.c.l.b16 %v3807
  %v4012 = vunpack.c.h.b16 %v3807
  %v4013 = vunpack.c.l.b16 %v3808
  %v4014 = vunpack.c.h.b16 %v3808
  %v4015 = vunpack.c.l.b16 %v3809
  %v4016 = vunpack.c.h.b16 %v3809
  %v4017 = vunpack.c.l.b16 %v3810
  %v4018 = vunpack.c.h.b16 %v3810
  %v4019 = vunpack.c.l.b16 %v3811
  %v4020 = vunpack.c.h.b16 %v3811
  %v4021 = vunpack.c.l.b16 %v3812
  %v4022 = vunpack.c.h.b16 %v3812
  %v4023 = vunpack.c.l.b16 %v3813
  %v4024 = vunpack.c.h.b16 %v3813
  %v4025 = vunpack.c.l.b16 %v3814
  %v4026 = vunpack.c.h.b16 %v3814
  %v4027 = vunpack.c.l.b16 %v3815
  %v4028 = vunpack.c.h.b16 %v3815
  %v4029 = vunpack.c.l.b16 %v3816
  %v4030 = vunpack.c.h.b16 %v3816
  %v4031 = vunpack.c.l.b16 %v3817
  %v4032 = vunpack.c.h.b16 %v3817
  %v4033 = vunpack.c.l.b16 %v3818
  %v4034 = vunpack.c.h.b16 %v3818
  %v4035 = vunpack.c.l.b16 %v3819
  %v4036 = vunpack.c.h.b16 %v3819
  %v4037 = vunpack.c.l.b16 %v3820
  %v4038 = vunpack.c.h.b16 %v3820
  %v4039 = vunpack.c.l.b16 %v3821
  %v4040 = vunpack.c.h.b16 %v3821
  %v4041 = vunpack.c.l.b16 %v3822
  %v4042 = vunpack.c.h.b16 %v3822
  %v4043 = vunpack.c.l.b16 %v3823
  %v4044 = vunpack.c.h.b16 %v3823
  %v4045 = vunpack.c.l.b16 %v3824
  %v4046 = vunpack.c.h.b16 %v3824
  %v4047 = vunpack.c.l.b16 %v3825
  %v4048 = vunpack.c.h.b16 %v3825
  %v4049 = vunpack.c.l.b16 %v3826
  %v4050 = vunpack.c.h.b16 %v3826
  %v4051 = vunpack.c.l.b16 %v3827
  %v4052 = vunpack.c.h.b16 %v3827
  %v4053 = vunpack.c.l.b16 %v3828
  %v4054 = vunpack.c.h.b16 %v3828
  %v4055 = vunpack.c.l.b16 %v3829
  %v4056 = vunpack.c.h.b16 %v3829
  %v4057 = vunpack.c.l.b16 %v3830
  %v4058 = vunpack.c.h.b16 %v3830
  %v4059 = vunpack.c.l.b16 %v3831
  %v4060 = vunpack.c.h.b16 %v3831
  %v4061 = vunpack.c.l.b16 %v3832
  %v4062 = vunpack.c.h.b16 %v3832
  %v4063 = vunpack.c.l.b16 %v3833
  %v4064 = vunpack.c.h.b16 %v3833
  %v4065 = vunpack.c.l.b16 %v3834
  %v4066 = vunpack.c.h.b16 %v3834
  %v4067 = vunpack.c.l.b16 %v3835
  %v4068 = vunpack.c.h.b16 %v3835
  %v4069 = vunpack.c.l.b16 %v3836
  %v4070 = vunpack.c.h.b16 %v3836
  %v4071 = vunpack.c.l.b16 %v3837
  %v4072 = vunpack.c.h.b16 %v3837
  %v4073 = vunpack.c.l.b16 %v3838
  %v4074 = vunpack.c.h.b16 %v3838
  %v4075 = vunpack.c.l.b16 %v3839
  %v4076 = vunpack.c.h.b16 %v3839
  %v4077 = vunpack.c.l.b16 %v3840
  %v4078 = vunpack.c.h.b16 %v3840
  %v4079 = vunpack.c.l.b16 %v3841
  %v4080 = vunpack.c.h.b16 %v3841
  %v4081 = vunpack.c.l.b16 %v3842
  %v4082 = vunpack.c.h.b16 %v3842
  %v4083 = vunpack.c.l.b16 %v3843
  %v4084 = vunpack.c.h.b16 %v3843
  %v4085 = vunpack.c.l.b16 %v3844
  %v4086 = vunpack.c.h.b16 %v3844
  %v4087 = vunpack.c.l.b16 %v3845
  %v4088 = vunpack.c.h.b16 %v3845
  %v4089 = vunpack.c.l.b16 %v3846
  %v4090 = vunpack.c.h.b16 %v3846
  %v4091 = vunpack.c.l.b16 %v3847
  %v4092 = vunpack.c.h.b16 %v3847
  %v4093 = vunpack.c.l.b16 %v3848
  %v4094 = vunpack.c.h.b16 %v3848
  %v4095 = vunpack.c.l.b16 %v3849
  %v4096 = vunpack.c.h.b16 %v3849
  %v4097 = vunpack.c.l.b16 %v3850
  %v4098 = vunpack.c.h.b16 %v3850
  %v4099 = vunpack.c.l.b16 %v3851
  %v4100 = vunpack.c.h.b16 %v3851
  %v4101 = vunpack.c.l.b16 %v3852
  %v4102 = vunpack.c.h.b16 %v3852
  %v4103 = vunpack.c.l.b16 %v3853
  %v4104 = vunpack.c.h.b16 %v3853
  %v4105 = vpack.c.b16 %v3979, %v3977
  %v4106 = vpack.c.b16 %v3980, %v3978
  %v4107 = vpack.c.b16 %v3983, %v3981
  %v4108 = vpack.c.b16 %v3984, %v3982
  %v4109 = vpack.c.b16 %v3987, %v3985
  %v4110 = vpack.c.b16 %v3988, %v3986
  %v4111 = vpack.c.b16 %v3991, %v3989
  %v4112 = vpack.c.b16 %v3992, %v3990
  %v4113 = vpack.c.b16 %v3995, %v3993
  %v4114 = vpack.c.b16 %v3996, %v3994
  %v4115 = vpack.c.b16 %v3999, %v3997
  %v4116 = vpack.c.b16 %v4000, %v3998
  %v4117 = vpack.c.b16 %v4003, %v4001
  %v4118 = vpack.c.b16 %v4004, %v4002
  %v4119 = vpack.c.b16 %v4007, %v4005
  %v4120 = vpack.c.b16 %v4008, %v4006
  %v4121 = vpack.c.b16 %v4011, %v4009
  %v4122 = vpack.c.b16 %v4012, %v4010
  %v4123 = vpack.c.b16 %v4015, %v4013
  %v4124 = vpack.c.b16 %v4016, %v4014
  %v4125 = vpack.c.b16 %v4019, %v4017
  %v4126 = vpack.c.b16 %v4020, %v4018
  %v4127 = vpack.c.b16 %v4023, %v4021
  %v4128 = vpack.c.b16 %v4024, %v4022
  %v4129 = vpack.c.b16 %v4027, %v4025
  %v4130 = vpack.c.b16 %v4028, %v4026
  %v4131 = vpack.c.b16 %v4031, %v4029
  %v4132 = vpack.c.b16 %v4032, %v4030
  %v4133 = vpack.c.b16 %v4035, %v4033
  %v4134 = vpack.c.b16 %v4036, %v4034
  %v4135 = vpack.c.b16 %v4039, %v4037
  %v4136 = vpack.c.b16 %v4040, %v4038
  %v4137 = vpack.c.b16 %v4043, %v4041
  %v4138 = vpack.c.b16 %v4044, %v4042
  %v4139 = vpack.c.b16 %v4047, %v4045
  %v4140 = vpack.c.b16 %v4048, %v4046
  %v4141 = vpack.c.b16 %v4051, %v4049
  %v4142 = vpack.c.b16 %v4052, %v4050
  %v4143 = vpack.c.b16 %v4055, %v4053
  %v4144 = vpack.c.b16 %v4056, %v4054
  %v4145 = vpack.c.b16 %v4059, %v4057
  %v4146 = vpack.c.b16 %v4060, %v4058
  %v4147 = vpack.c.b16 %v4063, %v4061
  %v4148 = vpack.c.b16 %v4064, %v4062
  %v4149 = vpack.c.b16 %v4067, %v4065
  %v4150 = vpack.c.b16 %v4068, %v4066
  %v4151 = vpack.c.b16 %v4071, %v4069
  %v4152 = vpack.c.b16 %v4072, %v4070
  %v4153 = vpack.c.b16 %v4075, %v4073
  %v4154 = vpack.c.b16 %v4076, %v4074
  %v4155 = vpack.c.b16 %v4079, %v4077
  %v4156 = vpack.c.b16 %v4080, %v4078
  %v4157 = vpack.c.b16 %v4083, %v4081
  %v4158 = vpack.c.b16 %v4084, %v4082
  %v4159 = vpack.c.b16 %v4087, %v4085
  %v4160 = vpack.c.b16 %v4088, %v4086
  %v4161 = vpack.c.b16 %v4091, %v4089
  %v4162 = vpack.c.b16 %v4092, %v4090
  %v4163 = vpack.c.b16 %v4095, %v4093
  %v4164 = vpack.c.b16 %v4096, %v4094
  %v4165 = vpack.c.b16 %v4099, %v4097
  %v4166 = vpack.c.b16 %v4100, %v4098
  %v4167 = vpack.c.b16 %v4103, %v4101
  %v4168 = vpack.c.b16 %v4104, %v4102
  %4233 = vmatprep.subr.bf16.mxu0 %v4120
  %4234 = vmatpush1.bf16.msra.mxu0 %v4119
  %4235 = vmatprep.subr.bf16.mxu0 %v4118
  %4236 = vmatpush1.bf16.msra.mxu0 %v4117
  %4237 = vmatprep.subr.bf16.mxu0 %v4116
  %4238 = vmatpush1.bf16.msra.mxu0 %v4115
  %4239 = vmatprep.subr.bf16.mxu0 %v4114
  %4240 = vmatpush1.bf16.msra.mxu0 %v4113
  %4241 = vmatprep.subr.bf16.mxu0 %v4112
  %4242 = vmatpush1.bf16.msra.mxu0 %v4111
  %4243 = vmatprep.subr.bf16.mxu0 %v4110
  %4244 = vmatpush1.bf16.msra.mxu0 %v4109
  %4245 = vmatprep.subr.bf16.mxu0 %v4108
  %4246 = vmatpush1.bf16.msra.mxu0 %v4107
  %4247 = vmatprep.subr.bf16.mxu0 %v4106
  %4248 = vmatpush1.bf16.msra.mxu0 %v4105
  %4249 = vmatprep.subr.bf16.mxu0 %v4136
  %4250 = vmatpush2.bf16.msra.mxu0 %v4135
  %4251 = vmatprep.subr.bf16.mxu0 %v4134
  %4252 = vmatpush2.bf16.msra.mxu0 %v4133
  %4253 = vmatprep.subr.bf16.mxu0 %v4132
  %4254 = vmatpush2.bf16.msra.mxu0 %v4131
  %4255 = vmatprep.subr.bf16.mxu0 %v4130
  %4256 = vmatpush2.bf16.msra.mxu0 %v4129
  %4257 = vmatprep.subr.bf16.mxu0 %v4128
  %4258 = vmatpush2.bf16.msra.mxu0 %v4127
  %4259 = vmatprep.subr.bf16.mxu0 %v4126
  %4260 = vmatpush2.bf16.msra.mxu0 %v4125
  %4261 = vmatprep.subr.bf16.mxu0 %v4124
  %4262 = vmatpush2.bf16.msra.mxu0 %v4123
  %4263 = vmatprep.subr.bf16.mxu0 %v4122
  %4264 = vmatpush2.bf16.msra.mxu0 %v4121
  %4265 = vmatprep.mubr.bf16.mxu0 %v3783
  %4266 = vmatmul.mubr.bf16.gmra.mxu0 %v3782
  %v4267 = vpop.f32.mrf.mxu0
  %v4268 = vadd.f32 %v3907, %v4267
  %v4269 = vpop.f32.mrf.mxu0
  %v4270 = vadd.f32 %v3909, %v4269
  %v4271 = vpop.f32.mrf.mxu0
  %v4272 = vpop.f32.mrf.mxu0
  %4273 = vdwg.mxu0
  %4274 = vmatprep.subr.bf16.mxu0 %v4152
  %4275 = vmatpush1.bf16.msra.mxu0 %v4151
  %4276 = vmatprep.subr.bf16.mxu0 %v4150
  %4277 = vmatpush1.bf16.msra.mxu0 %v4149
  %4278 = vmatprep.subr.bf16.mxu0 %v4148
  %4279 = vmatpush1.bf16.msra.mxu0 %v4147
  %4280 = vmatprep.subr.bf16.mxu0 %v4146
  %4281 = vmatpush1.bf16.msra.mxu0 %v4145
  %4282 = vmatprep.subr.bf16.mxu0 %v4144
  %4283 = vmatpush1.bf16.msra.mxu0 %v4143
  %4284 = vmatprep.subr.bf16.mxu0 %v4142
  %4285 = vmatpush1.bf16.msra.mxu0 %v4141
  %4286 = vmatprep.subr.bf16.mxu0 %v4140
  %4287 = vmatpush1.bf16.msra.mxu0 %v4139
  %4288 = vmatprep.subr.bf16.mxu0 %v4138
  %4289 = vmatpush1.bf16.msra.mxu0 %v4137
  %4290 = vmatprep.subr.bf16.mxu0 %v4168
  %4291 = vmatpush2.bf16.msra.mxu0 %v4167
  %4292 = vmatprep.subr.bf16.mxu0 %v4166
  %4293 = vmatpush2.bf16.msra.mxu0 %v4165
  %4294 = vmatprep.subr.bf16.mxu0 %v4164
  %4295 = vmatpush2.bf16.msra.mxu0 %v4163
  %4296 = vmatprep.subr.bf16.mxu0 %v4162
  %4297 = vmatpush2.bf16.msra.mxu0 %v4161
  %4298 = vmatprep.subr.bf16.mxu0 %v4160
  %4299 = vmatpush2.bf16.msra.mxu0 %v4159
  %4300 = vmatprep.subr.bf16.mxu0 %v4158
  %4301 = vmatpush2.bf16.msra.mxu0 %v4157
  %4302 = vmatprep.subr.bf16.mxu0 %v4156
  %4303 = vmatpush2.bf16.msra.mxu0 %v4155
  %4304 = vmatprep.subr.bf16.mxu0 %v4154
  %4305 = vmatpush2.bf16.msra.mxu0 %v4153
  %4306 = vmatprep.mubr.bf16.mxu0 %v3785
  %4307 = vmatmul.mubr.bf16.gmra.mxu0 %v3784
  %v4308 = vpop.f32.mrf.mxu0
  %v4309 = vadd.f32 %v4268, %v4308
  %v4310 = vpop.f32.mrf.mxu0
  %v4311 = vadd.f32 %v4270, %v4310
  %v4312 = vpop.f32.mrf.mxu0
  %v4313 = vpop.f32.mrf.mxu0
  %4314 = vdwg.mxu0
  %v4315 = vld [vmem:[%s8] sm:$0x3]
  %v4317 = vlaneseq
  %v4318 = vshrl.u32 %v4317, 7
  %v4319 = vsub.s32 0, %v4318
  %v4320 = vrot.slane %v4315, %v4319
  %v4321 = vlaneseq
  %v4322 = vshrl.u32 %v4321, 7
  %v4323 = vsub.s32 1, %v4322
  %v4324 = vrot.slane %v4315, %v4323
  %v4327 = vadd.f32 %v4309, %v4320
  %v4328 = vadd.f32 %v4311, %v4324
  %v4329 = vmax.f32 %v4327, 0.0
  %v4330 = vmax.f32 %v4328, 0.0
  %v4331 = vpack.c.bf16 %v4329, %v4329
  %v4332 = vpack.c.bf16 %v4330, %v4330
  %s4333 = smul.u32 4, 32
  %s4334 = smul.u32 %s4333, 2
  %s4335 = sshll.u32 %s4334, 4
  %4336 = dma.done %s768, %s4335
  %v4337 = vld [vmem:[#allocation5] sm:$0xff]
  %v4338 = vld [vmem:[#allocation5 + $0x8] sm:$0xff]
  %v4339 = vld [vmem:[#allocation5 + $0x10] sm:$0xff]
  %v4340 = vld [vmem:[#allocation5 + $0x18] sm:$0xff]
  %v4341 = vld [vmem:[#allocation5 + $0x20] sm:$0xff]
  %v4342 = vld [vmem:[#allocation5 + $0x28] sm:$0xff]
  %v4343 = vld [vmem:[#allocation5 + $0x30] sm:$0xff]
  %v4344 = vld [vmem:[#allocation5 + $0x38] sm:$0xff]
  %v4345 = vld [vmem:[#allocation5 + $0x40] sm:$0xff]
  %v4346 = vld [vmem:[#allocation5 + $0x48] sm:$0xff]
  %v4347 = vld [vmem:[#allocation5 + $0x50] sm:$0xff]
  %v4348 = vld [vmem:[#allocation5 + $0x58] sm:$0xff]
  %v4349 = vld [vmem:[#allocation5 + $0x60] sm:$0xff]
  %v4350 = vld [vmem:[#allocation5 + $0x68] sm:$0xff]
  %v4351 = vld [vmem:[#allocation5 + $0x70] sm:$0xff]
  %v4352 = vld [vmem:[#allocation5 + $0x78] sm:$0xff]
  %v4353 = vld [vmem:[#allocation5 + $0x80] sm:$0xff]
  %v4354 = vld [vmem:[#allocation5 + $0x88] sm:$0xff]
  %v4355 = vld [vmem:[#allocation5 + $0x90] sm:$0xff]
  %v4356 = vld [vmem:[#allocation5 + $0x98] sm:$0xff]
  %v4357 = vld [vmem:[#allocation5 + $0xa0] sm:$0xff]
  %v4358 = vld [vmem:[#allocation5 + $0xa8] sm:$0xff]
  %v4359 = vld [vmem:[#allocation5 + $0xb0] sm:$0xff]
  %v4360 = vld [vmem:[#allocation5 + $0xb8] sm:$0xff]
  %v4361 = vld [vmem:[#allocation5 + $0xc0] sm:$0xff]
  %v4362 = vld [vmem:[#allocation5 + $0xc8] sm:$0xff]
  %v4363 = vld [vmem:[#allocation5 + $0xd0] sm:$0xff]
  %v4364 = vld [vmem:[#allocation5 + $0xd8] sm:$0xff]
  %v4365 = vld [vmem:[#allocation5 + $0xe0] sm:$0xff]
  %v4366 = vld [vmem:[#allocation5 + $0xe8] sm:$0xff]
  %v4367 = vld [vmem:[#allocation5 + $0xf0] sm:$0xff]
  %v4368 = vld [vmem:[#allocation5 + $0xf8] sm:$0xff]
  %v4369 = vld [vmem:[%s9] sm:$0x3]
  %v4371 = vlaneseq
  %v4372 = vshrl.u32 %v4371, 7
  %v4373 = vsub.s32 0, %v4372
  %v4374 = vrot.slane %v4369, %v4373
  %v4375 = vlaneseq
  %v4376 = vshrl.u32 %v4375, 7
  %v4377 = vsub.s32 1, %v4376
  %v4378 = vrot.slane %v4369, %v4377
  %v4413 = vunpack.c.l.b16 %v4337
  %v4414 = vunpack.c.h.b16 %v4337
  %v4415 = vunpack.c.l.b16 %v4338
  %v4416 = vunpack.c.h.b16 %v4338
  %v4417 = vunpack.c.l.b16 %v4339
  %v4418 = vunpack.c.h.b16 %v4339
  %v4419 = vunpack.c.l.b16 %v4340
  %v4420 = vunpack.c.h.b16 %v4340
  %v4421 = vunpack.c.l.b16 %v4341
  %v4422 = vunpack.c.h.b16 %v4341
  %v4423 = vunpack.c.l.b16 %v4342
  %v4424 = vunpack.c.h.b16 %v4342
  %v4425 = vunpack.c.l.b16 %v4343
  %v4426 = vunpack.c.h.b16 %v4343
  %v4427 = vunpack.c.l.b16 %v4344
  %v4428 = vunpack.c.h.b16 %v4344
  %v4429 = vunpack.c.l.b16 %v4345
  %v4430 = vunpack.c.h.b16 %v4345
  %v4431 = vunpack.c.l.b16 %v4346
  %v4432 = vunpack.c.h.b16 %v4346
  %v4433 = vunpack.c.l.b16 %v4347
  %v4434 = vunpack.c.h.b16 %v4347
  %v4435 = vunpack.c.l.b16 %v4348
  %v4436 = vunpack.c.h.b16 %v4348
  %v4437 = vunpack.c.l.b16 %v4349
  %v4438 = vunpack.c.h.b16 %v4349
  %v4439 = vunpack.c.l.b16 %v4350
  %v4440 = vunpack.c.h.b16 %v4350
  %v4441 = vunpack.c.l.b16 %v4351
  %v4442 = vunpack.c.h.b16 %v4351
  %v4443 = vunpack.c.l.b16 %v4352
  %v4444 = vunpack.c.h.b16 %v4352
  %v4445 = vunpack.c.l.b16 %v4353
  %v4446 = vunpack.c.h.b16 %v4353
  %v4447 = vunpack.c.l.b16 %v4354
  %v4448 = vunpack.c.h.b16 %v4354
  %v4449 = vunpack.c.l.b16 %v4355
  %v4450 = vunpack.c.h.b16 %v4355
  %v4451 = vunpack.c.l.b16 %v4356
  %v4452 = vunpack.c.h.b16 %v4356
  %v4453 = vunpack.c.l.b16 %v4357
  %v4454 = vunpack.c.h.b16 %v4357
  %v4455 = vunpack.c.l.b16 %v4358
  %v4456 = vunpack.c.h.b16 %v4358
  %v4457 = vunpack.c.l.b16 %v4359
  %v4458 = vunpack.c.h.b16 %v4359
  %v4459 = vunpack.c.l.b16 %v4360
  %v4460 = vunpack.c.h.b16 %v4360
  %v4461 = vunpack.c.l.b16 %v4361
  %v4462 = vunpack.c.h.b16 %v4361
  %v4463 = vunpack.c.l.b16 %v4362
  %v4464 = vunpack.c.h.b16 %v4362
  %v4465 = vunpack.c.l.b16 %v4363
  %v4466 = vunpack.c.h.b16 %v4363
  %v4467 = vunpack.c.l.b16 %v4364
  %v4468 = vunpack.c.h.b16 %v4364
  %v4469 = vunpack.c.l.b16 %v4365
  %v4470 = vunpack.c.h.b16 %v4365
  %v4471 = vunpack.c.l.b16 %v4366
  %v4472 = vunpack.c.h.b16 %v4366
  %v4473 = vunpack.c.l.b16 %v4367
  %v4474 = vunpack.c.h.b16 %v4367
  %v4475 = vunpack.c.l.b16 %v4368
  %v4476 = vunpack.c.h.b16 %v4368
  %v4477 = vpack.c.b16 %v4415, %v4413
  %v4478 = vpack.c.b16 %v4416, %v4414
  %v4479 = vpack.c.b16 %v4419, %v4417
  %v4480 = vpack.c.b16 %v4420, %v4418
  %v4481 = vpack.c.b16 %v4423, %v4421
  %v4482 = vpack.c.b16 %v4424, %v4422
  %v4483 = vpack.c.b16 %v4427, %v4425
  %v4484 = vpack.c.b16 %v4428, %v4426
  %v4485 = vpack.c.b16 %v4431, %v4429
  %v4486 = vpack.c.b16 %v4432, %v4430
  %v4487 = vpack.c.b16 %v4435, %v4433
  %v4488 = vpack.c.b16 %v4436, %v4434
  %v4489 = vpack.c.b16 %v4439, %v4437
  %v4490 = vpack.c.b16 %v4440, %v4438
  %v4491 = vpack.c.b16 %v4443, %v4441
  %v4492 = vpack.c.b16 %v4444, %v4442
  %v4493 = vpack.c.b16 %v4447, %v4445
  %v4494 = vpack.c.b16 %v4448, %v4446
  %v4495 = vpack.c.b16 %v4451, %v4449
  %v4496 = vpack.c.b16 %v4452, %v4450
  %v4497 = vpack.c.b16 %v4455, %v4453
  %v4498 = vpack.c.b16 %v4456, %v4454
  %v4499 = vpack.c.b16 %v4459, %v4457
  %v4500 = vpack.c.b16 %v4460, %v4458
  %v4501 = vpack.c.b16 %v4463, %v4461
  %v4502 = vpack.c.b16 %v4464, %v4462
  %v4503 = vpack.c.b16 %v4467, %v4465
  %v4504 = vpack.c.b16 %v4468, %v4466
  %v4505 = vpack.c.b16 %v4471, %v4469
  %v4506 = vpack.c.b16 %v4472, %v4470
  %v4507 = vpack.c.b16 %v4475, %v4473
  %v4508 = vpack.c.b16 %v4476, %v4474
  %4541 = vmatprep.subr.bf16.mxu0 %v4492
  %4542 = vmatpush1.bf16.msra.mxu0 %v4491
  %4543 = vmatprep.subr.bf16.mxu0 %v4490
  %4544 = vmatpush1.bf16.msra.mxu0 %v4489
  %4545 = vmatprep.subr.bf16.mxu0 %v4488
  %4546 = vmatpush1.bf16.msra.mxu0 %v4487
  %4547 = vmatprep.subr.bf16.mxu0 %v4486
  %4548 = vmatpush1.bf16.msra.mxu0 %v4485
  %4549 = vmatprep.subr.bf16.mxu0 %v4484
  %4550 = vmatpush1.bf16.msra.mxu0 %v4483
  %4551 = vmatprep.subr.bf16.mxu0 %v4482
  %4552 = vmatpush1.bf16.msra.mxu0 %v4481
  %4553 = vmatprep.subr.bf16.mxu0 %v4480
  %4554 = vmatpush1.bf16.msra.mxu0 %v4479
  %4555 = vmatprep.subr.bf16.mxu0 %v4478
  %4556 = vmatpush1.bf16.msra.mxu0 %v4477
  %4557 = vmatprep.subr.bf16.mxu0 %v4508
  %4558 = vmatpush2.bf16.msra.mxu0 %v4507
  %4559 = vmatprep.subr.bf16.mxu0 %v4506
  %4560 = vmatpush2.bf16.msra.mxu0 %v4505
  %4561 = vmatprep.subr.bf16.mxu0 %v4504
  %4562 = vmatpush2.bf16.msra.mxu0 %v4503
  %4563 = vmatprep.subr.bf16.mxu0 %v4502
  %4564 = vmatpush2.bf16.msra.mxu0 %v4501
  %4565 = vmatprep.subr.bf16.mxu0 %v4500
  %4566 = vmatpush2.bf16.msra.mxu0 %v4499
  %4567 = vmatprep.subr.bf16.mxu0 %v4498
  %4568 = vmatpush2.bf16.msra.mxu0 %v4497
  %4569 = vmatprep.subr.bf16.mxu0 %v4496
  %4570 = vmatpush2.bf16.msra.mxu0 %v4495
  %4571 = vmatprep.subr.bf16.mxu0 %v4494
  %4572 = vmatpush2.bf16.msra.mxu0 %v4493
  %4573 = vmatprep.mubr.bf16.mxu0 %v4332
  %4574 = vmatmul.mubr.bf16.gmra.mxu0 %v4331
  %v4575 = vpop.f32.mrf.mxu0
  %v4576 = vadd.f32 %v4374, %v4575
  %v4577 = vpop.f32.mrf.mxu0
  %v4578 = vadd.f32 %v4378, %v4577
  %v4579 = vpop.f32.mrf.mxu0
  %v4580 = vpop.f32.mrf.mxu0
  %4581 = vdwg.mxu0
  %v4582 = vmax.f32 %v4576, 0.0
  %v4583 = vmax.f32 %v4578, 0.0
  %v4584 = vpack.c.bf16 %v4582, %v4582
  %v4585 = vpack.c.bf16 %v4583, %v4583
  %v4586 = vld [vmem:[%s10] sm:$0xf]
  %v4587 = vld [vmem:[%s10 + $0x4] sm:$0xf]
  %v4588 = vld [vmem:[%s10 + $0x8] sm:$0xf]
  %v4589 = vld [vmem:[%s10 + $0xc] sm:$0xf]
  %v4590 = vld [vmem:[%s10 + $0x10] sm:$0xf]
  %v4591 = vld [vmem:[%s10 + $0x14] sm:$0xf]
  %v4592 = vld [vmem:[%s10 + $0x18] sm:$0xf]
  %v4593 = vld [vmem:[%s10 + $0x1c] sm:$0xf]
  %v4594 = vld [vmem:[%s10 + $0x20] sm:$0xf]
  %v4595 = vld [vmem:[%s10 + $0x24] sm:$0xf]
  %v4596 = vld [vmem:[%s10 + $0x28] sm:$0xf]
  %v4597 = vld [vmem:[%s10 + $0x2c] sm:$0xf]
  %v4598 = vld [vmem:[%s10 + $0x30] sm:$0xf]
  %v4599 = vld [vmem:[%s10 + $0x34] sm:$0xf]
  %v4600 = vld [vmem:[%s10 + $0x38] sm:$0xf]
  %v4601 = vld [vmem:[%s10 + $0x3c] sm:$0xf]
  %v4602 = vld [vmem:[%s10 + $0x40] sm:$0xf]
  %v4603 = vld [vmem:[%s10 + $0x44] sm:$0xf]
  %v4604 = vld [vmem:[%s10 + $0x48] sm:$0xf]
  %v4605 = vld [vmem:[%s10 + $0x4c] sm:$0xf]
  %v4606 = vld [vmem:[%s10 + $0x50] sm:$0xf]
  %v4607 = vld [vmem:[%s10 + $0x54] sm:$0xf]
  %v4608 = vld [vmem:[%s10 + $0x58] sm:$0xf]
  %v4609 = vld [vmem:[%s10 + $0x5c] sm:$0xf]
  %v4610 = vld [vmem:[%s10 + $0x60] sm:$0xf]
  %v4611 = vld [vmem:[%s10 + $0x64] sm:$0xf]
  %v4612 = vld [vmem:[%s10 + $0x68] sm:$0xf]
  %v4613 = vld [vmem:[%s10 + $0x6c] sm:$0xf]
  %v4614 = vld [vmem:[%s10 + $0x70] sm:$0xf]
  %v4615 = vld [vmem:[%s10 + $0x74] sm:$0xf]
  %v4616 = vld [vmem:[%s10 + $0x78] sm:$0xf]
  %v4617 = vld [vmem:[%s10 + $0x7c] sm:$0xf]
  %v4618 = vld [vmem:[%s11] sm:$0x1]
  %v4620 = vlaneseq
  %v4621 = vshrl.u32 %v4620, 7
  %v4622 = vsub.s32 0, %v4621
  %v4623 = vrot.slane %v4618, %v4622
  %v4657 = vunpack.c.l.b16 %v4586
  %v4658 = vunpack.c.l.b16 %v4587
  %v4659 = vunpack.c.l.b16 %v4588
  %v4660 = vunpack.c.l.b16 %v4589
  %v4661 = vunpack.c.l.b16 %v4590
  %v4662 = vunpack.c.l.b16 %v4591
  %v4663 = vunpack.c.l.b16 %v4592
  %v4664 = vunpack.c.l.b16 %v4593
  %v4665 = vunpack.c.l.b16 %v4594
  %v4666 = vunpack.c.l.b16 %v4595
  %v4667 = vunpack.c.l.b16 %v4596
  %v4668 = vunpack.c.l.b16 %v4597
  %v4669 = vunpack.c.l.b16 %v4598
  %v4670 = vunpack.c.l.b16 %v4599
  %v4671 = vunpack.c.l.b16 %v4600
  %v4672 = vunpack.c.l.b16 %v4601
  %v4673 = vunpack.c.l.b16 %v4602
  %v4674 = vunpack.c.l.b16 %v4603
  %v4675 = vunpack.c.l.b16 %v4604
  %v4676 = vunpack.c.l.b16 %v4605
  %v4677 = vunpack.c.l.b16 %v4606
  %v4678 = vunpack.c.l.b16 %v4607
  %v4679 = vunpack.c.l.b16 %v4608
  %v4680 = vunpack.c.l.b16 %v4609
  %v4681 = vunpack.c.l.b16 %v4610
  %v4682 = vunpack.c.l.b16 %v4611
  %v4683 = vunpack.c.l.b16 %v4612
  %v4684 = vunpack.c.l.b16 %v4613
  %v4685 = vunpack.c.l.b16 %v4614
  %v4686 = vunpack.c.l.b16 %v4615
  %v4687 = vunpack.c.l.b16 %v4616
  %v4688 = vunpack.c.l.b16 %v4617
  %v4689 = vpack.c.b16 %v4658, %v4657
  %v4690 = vpack.c.b16 %v4660, %v4659
  %v4691 = vpack.c.b16 %v4662, %v4661
  %v4692 = vpack.c.b16 %v4664, %v4663
  %v4693 = vpack.c.b16 %v4666, %v4665
  %v4694 = vpack.c.b16 %v4668, %v4667
  %v4695 = vpack.c.b16 %v4670, %v4669
  %v4696 = vpack.c.b16 %v4672, %v4671
  %v4697 = vpack.c.b16 %v4674, %v4673
  %v4698 = vpack.c.b16 %v4676, %v4675
  %v4699 = vpack.c.b16 %v4678, %v4677
  %v4700 = vpack.c.b16 %v4680, %v4679
  %v4701 = vpack.c.b16 %v4682, %v4681
  %v4702 = vpack.c.b16 %v4684, %v4683
  %v4703 = vpack.c.b16 %v4686, %v4685
  %v4704 = vpack.c.b16 %v4688, %v4687
  %4721 = vmatprep.subr.bf16.mxu0 0
  %4722 = vmatpush1.bf16.msra.mxu0 %v4696
  %4723 = vmatprep.subr.bf16.mxu0 0
  %4724 = vmatpush1.bf16.msra.mxu0 %v4695
  %4725 = vmatprep.subr.bf16.mxu0 0
  %4726 = vmatpush1.bf16.msra.mxu0 %v4694
  %4727 = vmatprep.subr.bf16.mxu0 0
  %4728 = vmatpush1.bf16.msra.mxu0 %v4693
  %4729 = vmatprep.subr.bf16.mxu0 0
  %4730 = vmatpush1.bf16.msra.mxu0 %v4692
  %4731 = vmatprep.subr.bf16.mxu0 0
  %4732 = vmatpush1.bf16.msra.mxu0 %v4691
  %4733 = vmatprep.subr.bf16.mxu0 0
  %4734 = vmatpush1.bf16.msra.mxu0 %v4690
  %4735 = vmatprep.subr.bf16.mxu0 0
  %4736 = vmatpush1.bf16.msra.mxu0 %v4689
  %4737 = vmatprep.subr.bf16.mxu0 0
  %4738 = vmatpush2.bf16.msra.mxu0 %v4704
  %4739 = vmatprep.subr.bf16.mxu0 0
  %4740 = vmatpush2.bf16.msra.mxu0 %v4703
  %4741 = vmatprep.subr.bf16.mxu0 0
  %4742 = vmatpush2.bf16.msra.mxu0 %v4702
  %4743 = vmatprep.subr.bf16.mxu0 0
  %4744 = vmatpush2.bf16.msra.mxu0 %v4701
  %4745 = vmatprep.subr.bf16.mxu0 0
  %4746 = vmatpush2.bf16.msra.mxu0 %v4700
  %4747 = vmatprep.subr.bf16.mxu0 0
  %4748 = vmatpush2.bf16.msra.mxu0 %v4699
  %4749 = vmatprep.subr.bf16.mxu0 0
  %4750 = vmatpush2.bf16.msra.mxu0 %v4698
  %4751 = vmatprep.subr.bf16.mxu0 0
  %4752 = vmatpush2.bf16.msra.mxu0 %v4697
  %4753 = vmatprep.mubr.bf16.mxu0 %v4585
  %4754 = vmatmul.mubr.bf16.gmra.mxu0 %v4584
  %v4755 = vpop.f32.mrf.mxu0
  %v4756 = vadd.f32 %v4623, %v4755
  %v4757 = vpop.f32.mrf.mxu0
  %v4758 = vpop.f32.mrf.mxu0
  %v4759 = vpop.f32.mrf.mxu0
  %4760 = vdwg.mxu0
  %4761 = vst [vmem:[%s15] sm:$0x3] %v4756
  // Predicated region
  $region152: #{reward_network_forward.1} parent=0 // pred_check
    _
  $region153: #{reward_network_forward.1} parent=0 // pred_check_branch
    %4763 = sbr.rel (0) target = $region155
  $region154: #{reward_network_forward.1} parent=0 // pred_region
    _
  $region155: #{reward_network_forward.1} parent=0 // pred_fallthru
    _
  // Predicated region
  $region156: #{reward_network_forward.1} parent=0 // pred_check
    _
  $region157: #{reward_network_forward.1} parent=0 // pred_check_branch
    %4765 = sbr.rel (0) target = $region159
  $region158: #{reward_network_forward.1} parent=0 // pred_region
    _
  $region159: #{reward_network_forward.1} parent=0 // pred_fallthru
    _
  %4766 = vsyncmov [#allocation6]
  %s4767 = vpop.sfrf %4766
  %p4768 = scmp.eq.s32.totalorder %s4767, 0
  %p4769 = pneg %p4768
  %4771 = shalt.err (%p4769)
  %s4772 = scalar_lea.sflag [#allocation6], 1
  %4773 = vsyncmov %s4772
  %s4774 = vpop.sfrf %4773
  %p4775 = scmp.eq.s32.totalorder %s4774, 0
  %p4776 = pneg %p4775
  %4778 = shalt.err (%p4776)
  %s4779 = scalar_lea.sflag [#allocation6], 2
  %4780 = vsyncmov %s4779
  %s4781 = vpop.sfrf %4780
  %p4782 = scmp.eq.s32.totalorder %s4781, 0
  %p4783 = pneg %p4782
  %4785 = shalt.err (%p4783)

</llo_original>
